<compile_context>
chip_gen: v7x
topology: tpu7x:2x2x1
jax: 0.10.0
libtpu: 0.0.40
codegen_flags: <defaults>
</compile_context>

<pallas_src>
import functools
import math

import jax
import jax.numpy as jnp
from jax.experimental import pallas as pl
from jax.experimental.pallas import tpu as pltpu


# ----------------------------------------------------------------------------
# Pallas kernel: fused (W @ patches^T) + bias + activation, lane-dense output
# ----------------------------------------------------------------------------
def _gemm_bias_act_kernel(w_ref, p_ref, b_ref, o_ref, *, act):
    acc = jnp.dot(w_ref[...], p_ref[...], preferred_element_type=jnp.float32)
    acc = acc + b_ref[...]                      # (Cout, 1) broadcasts over lanes
    if act == "relu":
        acc = jnp.maximum(acc, 0.0)
    elif act == "sigmoid":
        acc = 1.0 / (1.0 + jnp.exp(-acc))       # exact; stays in [0, 1]
    o_ref[...] = acc.astype(o_ref.dtype)


def gemm_bias_act(wmat, patchesT, bias, *, act, out_dtype):
    """wmat: (Cout, K) bf16, patchesT: (K, M) bf16, bias: (Cout,) f32
    -> (Cout, M) out_dtype = act(wmat @ patchesT + bias)."""
    Cout, K = wmat.shape
    M = patchesT.shape[1]
    b2 = bias.reshape(Cout, 1).astype(jnp.float32)

    if M > 1024:
        # Only the last ConvTranspose hits this path (M = 2592): tile the lane
        # axis so both TensorCores (v7x) get work; tiny zero pad to a multiple.
        TM = 512
        Mp = ((M + TM - 1) // TM) * TM
        if Mp != M:
            patchesT = jnp.pad(patchesT, ((0, 0), (0, Mp - M)))
    else:
        # Small layers: one full block, no padding at all (full-dim BlockSpec).
        TM = M
        Mp = M

    out = pl.pallas_call(
        functools.partial(_gemm_bias_act_kernel, act=act),
        out_shape=jax.ShapeDtypeStruct((Cout, Mp), out_dtype),
        grid=(Mp // TM,),
        in_specs=[
            pl.BlockSpec((Cout, K), lambda i: (0, 0)),   # weights: VMEM-resident
            pl.BlockSpec((K, TM), lambda i: (0, i)),     # patches: lane-tiled
            pl.BlockSpec((Cout, 1), lambda i: (0, 0)),   # bias
        ],
        out_specs=pl.BlockSpec((Cout, TM), lambda i: (0, i)),
        compiler_params=pltpu.CompilerParams(
            dimension_semantics=("parallel",),
            vmem_limit_bytes=16 << 20,
        ),
    )(wmat, patchesT, b2)
    return out if Mp == M else out[:, :M]


# ----------------------------------------------------------------------------
# Layout glue (patch extraction only; all compute lives in the Pallas kernel)
# ----------------------------------------------------------------------------
def _im2col_T(x, kh, kw, stride):
    """x: (C, N, H, W) -> (C*kh*kw, N*oh*ow), K ordered (C, kh, kw)."""
    C, N, H, W = x.shape
    oh = (H - kh) // stride + 1
    ow = (W - kw) // stride + 1
    cols = []
    for i in range(kh):
        for j in range(kw):
            p = jax.lax.slice(
                x,
                (0, 0, i, j),
                (C, N, i + stride * (oh - 1) + 1, j + stride * (ow - 1) + 1),
                (1, 1, stride, stride),
            )                                    # (C, N, oh, ow)
            cols.append(p)
    cols = jnp.stack(cols, axis=1)               # (C, kh*kw, N, oh, ow)
    return cols.reshape(C * kh * kw, N * oh * ow), oh, ow


def conv2d_cnhw(x, w, b, *, stride, padding, act, out_dtype=jnp.bfloat16):
    """PyTorch-semantics Conv2d.  x: (Cin, N, H, W), w: (Cout, Cin, kh, kw)."""
    Cout, Cin, kh, kw = w.shape
    N = x.shape[1]
    if padding:
        x = jnp.pad(x, ((0, 0), (0, 0), (padding, padding), (padding, padding)))
    pT, oh, ow = _im2col_T(x, kh, kw, stride)                 # (K, N*oh*ow)
    wmat = w.reshape(Cout, Cin * kh * kw).astype(jnp.bfloat16)
    out = gemm_bias_act(wmat, pT, b, act=act, out_dtype=out_dtype)
    return out.reshape(Cout, N, oh, ow)


def conv_transpose2d_cnhw(x, w, b, *, stride, padding, act, out_dtype=jnp.bfloat16):
    """PyTorch-semantics ConvTranspose2d.  x: (Cin, N, H, W), w: (Cin, Cout, kh, kw)."""
    Cin, Cout, kh, kw = w.shape
    N = x.shape[1]
    ph, pw = kh - 1 - padding, kw - 1 - padding
    # zero-dilation by `stride` + edge pad (k-1-p) folded into one lax.pad
    cfg = ((0, 0, 0), (0, 0, 0), (ph, ph, stride - 1), (pw, pw, stride - 1))
    xd = jax.lax.pad(x, jnp.zeros((), x.dtype), cfg)
    # spatially flipped, channel-swapped kernel -> ordinary stride-1 conv
    w_conv = jnp.flip(w, axis=(2, 3)).transpose(1, 0, 2, 3)   # (Cout, Cin, kh, kw)
    pT, oh, ow = _im2col_T(xd, kh, kw, 1)
    wmat = w_conv.reshape(Cout, Cin * kh * kw).astype(jnp.bfloat16)
    out = gemm_bias_act(wmat, pT, b, act=act, out_dtype=out_dtype)
    return out.reshape(Cout, N, oh, ow)


# MaxPool glue (tiny tensors, ~13 KB; a dedicated pallas_call would cost more
# in launch overhead than it saves).
def maxpool_2x2_s2(x):                          # (C, N, H, W), H, W even
    C, N, H, W = x.shape
    return x.reshape(C, N, H // 2, 2, W // 2, 2).max(axis=(3, 5))


def maxpool_2x2_s1(x):                          # (C, N, H, W)
    return jnp.maximum(
        jnp.maximum(x[:, :, :-1, :-1], x[:, :, :-1, 1:]),
        jnp.maximum(x[:, :, 1:, :-1], x[:, :, 1:, 1:]),
    )


# ----------------------------------------------------------------------------
# Parameters (deterministic, PyTorch-style uniform(-1/sqrt(fan_in), +...))
# ----------------------------------------------------------------------------
def _init_conv(key, cout, cin, kh, kw):
    k1, k2 = jax.random.split(key)
    bound = 1.0 / math.sqrt(cin * kh * kw)
    w = jax.random.uniform(k1, (cout, cin, kh, kw), jnp.float32, -bound, bound)
    b = jax.random.uniform(k2, (cout,), jnp.float32, -bound, bound)
    return w, b


def _init_convT(key, cin, cout, kh, kw):
    k1, k2 = jax.random.split(key)
    bound = 1.0 / math.sqrt(cout * kh * kw)     # PyTorch fan_in uses weight dim 1
    w = jax.random.uniform(k1, (cin, cout, kh, kw), jnp.float32, -bound, bound)
    b = jax.random.uniform(k2, (cout,), jnp.float32, -bound, bound)
    return w, b


def init_params(seed=42):
    ks = jax.random.split(jax.random.PRNGKey(seed), 5)
    return {
        # encoder
        "e0": _init_conv(ks[0], 16, 1, 3, 3),     # Conv2d(1, 16, 3, s=3, p=1)
        "e1": _init_conv(ks[1], 8, 16, 3, 3),     # Conv2d(16, 8, 3, s=2, p=1)
        # decoder
        "d0": _init_convT(ks[2], 8, 16, 3, 3),    # ConvT(8, 16, 3, s=2)
        "d1": _init_convT(ks[3], 16, 8, 5, 5),    # ConvT(16, 8, 5, s=3, p=1)
        "d2": _init_convT(ks[4], 8, 1, 10, 10),   # ConvT(8, 1, 10, s=2, p=1)
    }


# ----------------------------------------------------------------------------
# Forward pass: autoencoder_1
# ----------------------------------------------------------------------------
def autoencoder_1_forward(params, x):
    # NCHW -> CNHW once, bf16 activations between layers
    h = x.astype(jnp.bfloat16).transpose(1, 0, 2, 3)              # (1, N, 28, 28)
    # encoder
    h = conv2d_cnhw(h, *params["e0"], stride=3, padding=1, act="relu")   # (16,N,10,10)
    h = maxpool_2x2_s2(h)                                                # (16,N, 5, 5)
    h = conv2d_cnhw(h, *params["e1"], stride=2, padding=1, act="relu")   # ( 8,N, 3, 3)
    h = maxpool_2x2_s1(h)                                                # ( 8,N, 2, 2)
    # decoder
    h = conv_transpose2d_cnhw(h, *params["d0"], stride=2, padding=0,
                              act="relu")                                # (16,N, 5, 5)
    h = conv_transpose2d_cnhw(h, *params["d1"], stride=3, padding=1,
                              act="relu")                                # ( 8,N,15,15)
    h = conv_transpose2d_cnhw(h, *params["d2"], stride=2, padding=1,
                              act="sigmoid", out_dtype=jnp.float32)      # ( 1,N,36,36)
    return h.transpose(1, 0, 2, 3)                                       # (N,1,36,36)


if __name__ == "__main__":
    params = init_params(seed=42)
    # MNIST-like input implied by the module: (N=2, C=1, 28, 28)
    x = jax.random.normal(jax.random.PRNGKey(0), (2, 1, 28, 28), jnp.float32)

    fwd = jax.jit(autoencoder_1_forward)
    y = fwd(params, x)
    jax.block_until_ready(y)

    assert y.shape == (2, 1, 36, 36), y.shape
    assert bool(jnp.all((y >= 0.0) & (y <= 1.0)))   # sigmoid output range
    print("KERNEL_OK")
</pallas_src>

<mosaic_0001>
module attributes {stable_mosaic.version = 11 : i64} {
  func.func @_gemm_bias_act_kernel(%arg0: i32, %arg1: memref<16x9xbf16, #tpu.memory_space<vmem>>, %arg2: memref<9x200xbf16, #tpu.memory_space<vmem>>, %arg3: memref<16x1xf32, #tpu.memory_space<vmem>>, %arg4: memref<16x200xbf16, #tpu.memory_space<vmem>>) attributes {dimension_semantics = [#tpu.dimension_semantics<parallel>], iteration_bounds = array<i64: 1>, scalar_prefetch = 0 : i64, scratch_operands = 0 : i64, tpu.core_type = #tpu.core_type<tc>, window_params = [{pipeline_mode = #tpu.pipeline_mode<synchronous>, transform_indices = @transform_0, window_bounds = array<i64: 16, 9>}, {transform_indices = @transform_1, window_bounds = array<i64: 9, 200>}, {pipeline_mode = #tpu.pipeline_mode<synchronous>, transform_indices = @transform_2, window_bounds = array<i64: 16, 1>}, {transform_indices = @transform_3, window_bounds = array<i64: 16, 200>}]} {
    %c0 = arith.constant 0 : index
    %c0_0 = arith.constant 0 : index
    %0 = vector.load %arg1[%c0, %c0_0] : memref<16x9xbf16, #tpu.memory_space<vmem>>, vector<16x9xbf16>
    %c0_1 = arith.constant 0 : index
    %c0_2 = arith.constant 0 : index
    %1 = vector.load %arg2[%c0_1, %c0_2] : memref<9x200xbf16, #tpu.memory_space<vmem>>, vector<9x200xbf16>
    %cst = arith.constant dense<0.000000e+00> : vector<16x200xf32>
    %2 = tpu.matmul %0, %1, %cst {dimension_numbers = #tpu.dot_dimension_numbers<[1], [0], [0], [1], [0, 0, 1, 1], [], []>} : vector<16x9xbf16>, vector<9x200xbf16>, vector<16x200xf32> -> vector<16x200xf32>
    %c0_3 = arith.constant 0 : index
    %c0_4 = arith.constant 0 : index
    %3 = vector.load %arg3[%c0_3, %c0_4] : memref<16x1xf32, #tpu.memory_space<vmem>>, vector<16x1xf32>
    %4 = vector.broadcast %3 : vector<16x1xf32> to vector<16x200xf32>
    %5 = arith.addf %2, %4 : vector<16x200xf32>
    %cst_5 = arith.constant 0.000000e+00 : f32
    %6 = vector.broadcast %cst_5 : f32 to vector<16x200xf32>
    %7 = arith.maximumf %5, %6 : vector<16x200xf32>
    %8 = arith.truncf %7 : vector<16x200xf32> to vector<16x200xbf16>
    %c0_6 = arith.constant 0 : index
    %c0_7 = arith.constant 0 : index
    %9 = vector.load %arg4[%c0_6, %c0_7] : memref<16x200xbf16, #tpu.memory_space<vmem>>, vector<16x200xbf16>
    tpu.vector_store %arg4[%c0_6, %c0_7], %8 {strides = array<i32>} : memref<16x200xbf16, #tpu.memory_space<vmem>>, vector<16x200xbf16>,
    return
  }
  func.func @transform_0(%arg0: i32) -> (i32, i32) {
    %c0_i32 = arith.constant 0 : i32
    %c0_i32_0 = arith.constant 0 : i32
    %c0_i32_1 = arith.constant 0 : i32
    return %c0_i32, %c0_i32_0 : i32, i32
  }
  func.func @transform_1(%arg0: i32) -> (i32, i32) {
    %c0_i32 = arith.constant 0 : i32
    %c0_i32_0 = arith.constant 0 : i32
    return %c0_i32, %arg0 : i32, i32
  }
  func.func @transform_2(%arg0: i32) -> (i32, i32) {
    %c0_i32 = arith.constant 0 : i32
    %c0_i32_0 = arith.constant 0 : i32
    %c0_i32_1 = arith.constant 0 : i32
    return %c0_i32, %c0_i32_0 : i32, i32
  }
  func.func @transform_3(%arg0: i32) -> (i32, i32) {
    %c0_i32 = arith.constant 0 : i32
    %c0_i32_0 = arith.constant 0 : i32
    return %c0_i32, %arg0 : i32, i32
  }
}

module attributes {stable_mosaic.version = 11 : i64} {
  func.func @_gemm_bias_act_kernel(%arg0: i32, %arg1: memref<8x144xbf16, #tpu.memory_space<vmem>>, %arg2: memref<144x18xbf16, #tpu.memory_space<vmem>>, %arg3: memref<8x1xf32, #tpu.memory_space<vmem>>, %arg4: memref<8x18xbf16, #tpu.memory_space<vmem>>) attributes {dimension_semantics = [#tpu.dimension_semantics<parallel>], iteration_bounds = array<i64: 1>, scalar_prefetch = 0 : i64, scratch_operands = 0 : i64, tpu.core_type = #tpu.core_type<tc>, window_params = [{pipeline_mode = #tpu.pipeline_mode<synchronous>, transform_indices = @transform_0, window_bounds = array<i64: 8, 144>}, {transform_indices = @transform_1, window_bounds = array<i64: 144, 18>}, {pipeline_mode = #tpu.pipeline_mode<synchronous>, transform_indices = @transform_2, window_bounds = array<i64: 8, 1>}, {transform_indices = @transform_3, window_bounds = array<i64: 8, 18>}]} {
    %c0 = arith.constant 0 : index
    %c0_0 = arith.constant 0 : index
    %0 = vector.load %arg1[%c0, %c0_0] : memref<8x144xbf16, #tpu.memory_space<vmem>>, vector<8x144xbf16>
    %c0_1 = arith.constant 0 : index
    %c0_2 = arith.constant 0 : index
    %1 = vector.load %arg2[%c0_1, %c0_2] : memref<144x18xbf16, #tpu.memory_space<vmem>>, vector<144x18xbf16>
    %cst = arith.constant dense<0.000000e+00> : vector<8x18xf32>
    %2 = tpu.matmul %0, %1, %cst {dimension_numbers = #tpu.dot_dimension_numbers<[1], [0], [0], [1], [0, 0, 1, 1], [], []>} : vector<8x144xbf16>, vector<144x18xbf16>, vector<8x18xf32> -> vector<8x18xf32>
    %c0_3 = arith.constant 0 : index
    %c0_4 = arith.constant 0 : index
    %3 = vector.load %arg3[%c0_3, %c0_4] : memref<8x1xf32, #tpu.memory_space<vmem>>, vector<8x1xf32>
    %4 = vector.broadcast %3 : vector<8x1xf32> to vector<8x18xf32>
    %5 = arith.addf %2, %4 : vector<8x18xf32>
    %cst_5 = arith.constant 0.000000e+00 : f32
    %6 = vector.broadcast %cst_5 : f32 to vector<8x18xf32>
    %7 = arith.maximumf %5, %6 : vector<8x18xf32>
    %8 = arith.truncf %7 : vector<8x18xf32> to vector<8x18xbf16>
    %c0_6 = arith.constant 0 : index
    %c0_7 = arith.constant 0 : index
    %9 = vector.load %arg4[%c0_6, %c0_7] : memref<8x18xbf16, #tpu.memory_space<vmem>>, vector<8x18xbf16>
    tpu.vector_store %arg4[%c0_6, %c0_7], %8 {strides = array<i32>} : memref<8x18xbf16, #tpu.memory_space<vmem>>, vector<8x18xbf16>,
    return
  }
  func.func @transform_0(%arg0: i32) -> (i32, i32) {
    %c0_i32 = arith.constant 0 : i32
    %c0_i32_0 = arith.constant 0 : i32
    %c0_i32_1 = arith.constant 0 : i32
    return %c0_i32, %c0_i32_0 : i32, i32
  }
  func.func @transform_1(%arg0: i32) -> (i32, i32) {
    %c0_i32 = arith.constant 0 : i32
    %c0_i32_0 = arith.constant 0 : i32
    return %c0_i32, %arg0 : i32, i32
  }
  func.func @transform_2(%arg0: i32) -> (i32, i32) {
    %c0_i32 = arith.constant 0 : i32
    %c0_i32_0 = arith.constant 0 : i32
    %c0_i32_1 = arith.constant 0 : i32
    return %c0_i32, %c0_i32_0 : i32, i32
  }
  func.func @transform_3(%arg0: i32) -> (i32, i32) {
    %c0_i32 = arith.constant 0 : i32
    %c0_i32_0 = arith.constant 0 : i32
    return %c0_i32, %arg0 : i32, i32
  }
}

module attributes {stable_mosaic.version = 11 : i64} {
  func.func @_gemm_bias_act_kernel(%arg0: i32, %arg1: memref<16x72xbf16, #tpu.memory_space<vmem>>, %arg2: memref<72x50xbf16, #tpu.memory_space<vmem>>, %arg3: memref<16x1xf32, #tpu.memory_space<vmem>>, %arg4: memref<16x50xbf16, #tpu.memory_space<vmem>>) attributes {dimension_semantics = [#tpu.dimension_semantics<parallel>], iteration_bounds = array<i64: 1>, scalar_prefetch = 0 : i64, scratch_operands = 0 : i64, tpu.core_type = #tpu.core_type<tc>, window_params = [{pipeline_mode = #tpu.pipeline_mode<synchronous>, transform_indices = @transform_0, window_bounds = array<i64: 16, 72>}, {transform_indices = @transform_1, window_bounds = array<i64: 72, 50>}, {pipeline_mode = #tpu.pipeline_mode<synchronous>, transform_indices = @transform_2, window_bounds = array<i64: 16, 1>}, {transform_indices = @transform_3, window_bounds = array<i64: 16, 50>}]} {
    %c0 = arith.constant 0 : index
    %c0_0 = arith.constant 0 : index
    %0 = vector.load %arg1[%c0, %c0_0] : memref<16x72xbf16, #tpu.memory_space<vmem>>, vector<16x72xbf16>
    %c0_1 = arith.constant 0 : index
    %c0_2 = arith.constant 0 : index
    %1 = vector.load %arg2[%c0_1, %c0_2] : memref<72x50xbf16, #tpu.memory_space<vmem>>, vector<72x50xbf16>
    %cst = arith.constant dense<0.000000e+00> : vector<16x50xf32>
    %2 = tpu.matmul %0, %1, %cst {dimension_numbers = #tpu.dot_dimension_numbers<[1], [0], [0], [1], [0, 0, 1, 1], [], []>} : vector<16x72xbf16>, vector<72x50xbf16>, vector<16x50xf32> -> vector<16x50xf32>
    %c0_3 = arith.constant 0 : index
    %c0_4 = arith.constant 0 : index
    %3 = vector.load %arg3[%c0_3, %c0_4] : memref<16x1xf32, #tpu.memory_space<vmem>>, vector<16x1xf32>
    %4 = vector.broadcast %3 : vector<16x1xf32> to vector<16x50xf32>
    %5 = arith.addf %2, %4 : vector<16x50xf32>
    %cst_5 = arith.constant 0.000000e+00 : f32
    %6 = vector.broadcast %cst_5 : f32 to vector<16x50xf32>
    %7 = arith.maximumf %5, %6 : vector<16x50xf32>
    %8 = arith.truncf %7 : vector<16x50xf32> to vector<16x50xbf16>
    %c0_6 = arith.constant 0 : index
    %c0_7 = arith.constant 0 : index
    %9 = vector.load %arg4[%c0_6, %c0_7] : memref<16x50xbf16, #tpu.memory_space<vmem>>, vector<16x50xbf16>
    tpu.vector_store %arg4[%c0_6, %c0_7], %8 {strides = array<i32>} : memref<16x50xbf16, #tpu.memory_space<vmem>>, vector<16x50xbf16>,
    return
  }
  func.func @transform_0(%arg0: i32) -> (i32, i32) {
    %c0_i32 = arith.constant 0 : i32
    %c0_i32_0 = arith.constant 0 : i32
    %c0_i32_1 = arith.constant 0 : i32
    return %c0_i32, %c0_i32_0 : i32, i32
  }
  func.func @transform_1(%arg0: i32) -> (i32, i32) {
    %c0_i32 = arith.constant 0 : i32
    %c0_i32_0 = arith.constant 0 : i32
    return %c0_i32, %arg0 : i32, i32
  }
  func.func @transform_2(%arg0: i32) -> (i32, i32) {
    %c0_i32 = arith.constant 0 : i32
    %c0_i32_0 = arith.constant 0 : i32
    %c0_i32_1 = arith.constant 0 : i32
    return %c0_i32, %c0_i32_0 : i32, i32
  }
  func.func @transform_3(%arg0: i32) -> (i32, i32) {
    %c0_i32 = arith.constant 0 : i32
    %c0_i32_0 = arith.constant 0 : i32
    return %c0_i32, %arg0 : i32, i32
  }
}

module attributes {stable_mosaic.version = 11 : i64} {
  func.func @_gemm_bias_act_kernel(%arg0: i32, %arg1: memref<8x400xbf16, #tpu.memory_space<vmem>>, %arg2: memref<400x450xbf16, #tpu.memory_space<vmem>>, %arg3: memref<8x1xf32, #tpu.memory_space<vmem>>, %arg4: memref<8x450xbf16, #tpu.memory_space<vmem>>) attributes {dimension_semantics = [#tpu.dimension_semantics<parallel>], iteration_bounds = array<i64: 1>, scalar_prefetch = 0 : i64, scratch_operands = 0 : i64, tpu.core_type = #tpu.core_type<tc>, window_params = [{pipeline_mode = #tpu.pipeline_mode<synchronous>, transform_indices = @transform_0, window_bounds = array<i64: 8, 400>}, {transform_indices = @transform_1, window_bounds = array<i64: 400, 450>}, {pipeline_mode = #tpu.pipeline_mode<synchronous>, transform_indices = @transform_2, window_bounds = array<i64: 8, 1>}, {transform_indices = @transform_3, window_bounds = array<i64: 8, 450>}]} {
    %c0 = arith.constant 0 : index
    %c0_0 = arith.constant 0 : index
    %0 = vector.load %arg1[%c0, %c0_0] : memref<8x400xbf16, #tpu.memory_space<vmem>>, vector<8x400xbf16>
    %c0_1 = arith.constant 0 : index
    %c0_2 = arith.constant 0 : index
    %1 = vector.load %arg2[%c0_1, %c0_2] : memref<400x450xbf16, #tpu.memory_space<vmem>>, vector<400x450xbf16>
    %cst = arith.constant dense<0.000000e+00> : vector<8x450xf32>
    %2 = tpu.matmul %0, %1, %cst {dimension_numbers = #tpu.dot_dimension_numbers<[1], [0], [0], [1], [0, 0, 1, 1], [], []>} : vector<8x400xbf16>, vector<400x450xbf16>, vector<8x450xf32> -> vector<8x450xf32>
    %c0_3 = arith.constant 0 : index
    %c0_4 = arith.constant 0 : index
    %3 = vector.load %arg3[%c0_3, %c0_4] : memref<8x1xf32, #tpu.memory_space<vmem>>, vector<8x1xf32>
    %4 = vector.broadcast %3 : vector<8x1xf32> to vector<8x450xf32>
    %5 = arith.addf %2, %4 : vector<8x450xf32>
    %cst_5 = arith.constant 0.000000e+00 : f32
    %6 = vector.broadcast %cst_5 : f32 to vector<8x450xf32>
    %7 = arith.maximumf %5, %6 : vector<8x450xf32>
    %8 = arith.truncf %7 : vector<8x450xf32> to vector<8x450xbf16>
    %c0_6 = arith.constant 0 : index
    %c0_7 = arith.constant 0 : index
    %9 = vector.load %arg4[%c0_6, %c0_7] : memref<8x450xbf16, #tpu.memory_space<vmem>>, vector<8x450xbf16>
    tpu.vector_store %arg4[%c0_6, %c0_7], %8 {strides = array<i32>} : memref<8x450xbf16, #tpu.memory_space<vmem>>, vector<8x450xbf16>,
    return
  }
  func.func @transform_0(%arg0: i32) -> (i32, i32) {
    %c0_i32 = arith.constant 0 : i32
    %c0_i32_0 = arith.constant 0 : i32
    %c0_i32_1 = arith.constant 0 : i32
    return %c0_i32, %c0_i32_0 : i32, i32
  }
  func.func @transform_1(%arg0: i32) -> (i32, i32) {
    %c0_i32 = arith.constant 0 : i32
    %c0_i32_0 = arith.constant 0 : i32
    return %c0_i32, %arg0 : i32, i32
  }
  func.func @transform_2(%arg0: i32) -> (i32, i32) {
    %c0_i32 = arith.constant 0 : i32
    %c0_i32_0 = arith.constant 0 : i32
    %c0_i32_1 = arith.constant 0 : i32
    return %c0_i32, %c0_i32_0 : i32, i32
  }
  func.func @transform_3(%arg0: i32) -> (i32, i32) {
    %c0_i32 = arith.constant 0 : i32
    %c0_i32_0 = arith.constant 0 : i32
    return %c0_i32, %arg0 : i32, i32
  }
}

module attributes {stable_mosaic.version = 11 : i64} {
  func.func @_gemm_bias_act_kernel(%arg0: i32, %arg1: memref<1x800xbf16, #tpu.memory_space<vmem>>, %arg2: memref<800x512xbf16, #tpu.memory_space<vmem>>, %arg3: memref<1x1xf32, #tpu.memory_space<vmem>>, %arg4: memref<1x512xf32, #tpu.memory_space<vmem>>) attributes {dimension_semantics = [#tpu.dimension_semantics<parallel>], iteration_bounds = array<i64: 6>, scalar_prefetch = 0 : i64, scratch_operands = 0 : i64, tpu.core_type = #tpu.core_type<tc>, window_params = [{pipeline_mode = #tpu.pipeline_mode<synchronous>, transform_indices = @transform_0, window_bounds = array<i64: 1, 800>}, {transform_indices = @transform_1, window_bounds = array<i64: 800, 512>}, {pipeline_mode = #tpu.pipeline_mode<synchronous>, transform_indices = @transform_2, window_bounds = array<i64: 1, 1>}, {transform_indices = @transform_3, window_bounds = array<i64: 1, 512>}]} {
    %c0 = arith.constant 0 : index
    %c0_0 = arith.constant 0 : index
    %0 = vector.load %arg1[%c0, %c0_0] : memref<1x800xbf16, #tpu.memory_space<vmem>>, vector<1x800xbf16>
    %c0_1 = arith.constant 0 : index
    %c0_2 = arith.constant 0 : index
    %1 = vector.load %arg2[%c0_1, %c0_2] : memref<800x512xbf16, #tpu.memory_space<vmem>>, vector<800x512xbf16>
    %cst = arith.constant dense<0.000000e+00> : vector<1x512xf32>
    %2 = tpu.matmul %0, %1, %cst {dimension_numbers = #tpu.dot_dimension_numbers<[1], [0], [0], [1], [0, 0, 1, 1], [], []>} : vector<1x800xbf16>, vector<800x512xbf16>, vector<1x512xf32> -> vector<1x512xf32>
    %c0_3 = arith.constant 0 : index
    %c0_4 = arith.constant 0 : index
    %3 = vector.load %arg3[%c0_3, %c0_4] : memref<1x1xf32, #tpu.memory_space<vmem>>, vector<1x1xf32>
    %4 = vector.broadcast %3 : vector<1x1xf32> to vector<1x512xf32>
    %5 = arith.addf %2, %4 : vector<1x512xf32>
    %cst_5 = arith.constant 0.000000e+00 : f32
    %6 = vector.broadcast %cst_5 : f32 to vector<1x512xf32>
    %7 = arith.subf %6, %5 : vector<1x512xf32>
    %8 = math.exp %7 : vector<1x512xf32>
    %cst_6 = arith.constant 1.000000e+00 : f32
    %9 = vector.broadcast %cst_6 : f32 to vector<1x512xf32>
    %10 = arith.addf %9, %8 : vector<1x512xf32>
    %cst_7 = arith.constant 1.000000e+00 : f32
    %11 = vector.broadcast %cst_7 : f32 to vector<1x512xf32>
    %12 = arith.divf %11, %10 : vector<1x512xf32>
    %c0_8 = arith.constant 0 : index
    %c0_9 = arith.constant 0 : index
    %13 = vector.load %arg4[%c0_8, %c0_9] : memref<1x512xf32, #tpu.memory_space<vmem>>, vector<1x512xf32>
    tpu.vector_store %arg4[%c0_8, %c0_9], %12 {strides = array<i32>} : memref<1x512xf32, #tpu.memory_space<vmem>>, vector<1x512xf32>,
    return
  }
  func.func @transform_0(%arg0: i32) -> (i32, i32) {
    %c0_i32 = arith.constant 0 : i32
    %c0_i32_0 = arith.constant 0 : i32
    %c0_i32_1 = arith.constant 0 : i32
    return %c0_i32, %c0_i32_0 : i32, i32
  }
  func.func @transform_1(%arg0: i32) -> (i32, i32) {
    %c0_i32 = arith.constant 0 : i32
    %c0_i32_0 = arith.constant 0 : i32
    return %c0_i32, %arg0 : i32, i32
  }
  func.func @transform_2(%arg0: i32) -> (i32, i32) {
    %c0_i32 = arith.constant 0 : i32
    %c0_i32_0 = arith.constant 0 : i32
    %c0_i32_1 = arith.constant 0 : i32
    return %c0_i32, %c0_i32_0 : i32, i32
  }
  func.func @transform_3(%arg0: i32) -> (i32, i32) {
    %c0_i32 = arith.constant 0 : i32
    %c0_i32_0 = arith.constant 0 : i32
    return %c0_i32, %arg0 : i32, i32
  }
}

</mosaic_0001>

<llo_original>
// kernel: autoencoder_1_forward.5
$region0: #{autoencoder_1_forward.5}
  #allocation0 [shape = 'u32[]', space=smem, size = 0x4, offset = 0x4, fixed_abs, tag = 'smem constant byte address 0x4 - core index']
  #allocation1 [shape = 'u32[144,128]{1,0:T(1,128)}', space=vmem, size = 0x12000, scoped, tag = 'internal scratch']
  %s0 = inlined_call_operand.vmem [shape: bf16[16,9], index: 0, kind: input, shape index: {}]
  %s1 = inlined_call_operand.vmem [shape: bf16[9,200], index: 1, kind: input, shape index: {}]
  %s2 = inlined_call_operand.vmem [shape: f32[16,1], index: 2, kind: input, shape index: {}]
  %s3 = inlined_call_operand.vmem [shape: bf16[16,200], index: 3, kind: output, shape index: {}]
  %s4 = sld [smem:[#allocation0]]
  $region22: #{autoencoder_1_forward.5} parent=0
    _
  %s6 = ssub.s32 1, %s4
  %s7 = scalar_select 0, %s6, %s4
  // Predicated region
  $region2: #{autoencoder_1_forward.5} parent=0 // pred_check
    _
  $region3: #{autoencoder_1_forward.5} parent=0 // pred_check_branch
    %9 = sbr.rel (0) target = $region5
  $region4: #{autoencoder_1_forward.5} parent=0 // pred_region
    _
  $region5: #{autoencoder_1_forward.5} parent=0 // pred_fallthru
    _
  // Predicated region
  $region6: #{autoencoder_1_forward.5} parent=0 // pred_check
    _
  $region7: #{autoencoder_1_forward.5} parent=0 // pred_check_branch
    %11 = sbr.rel (0) target = $region9
  $region8: #{autoencoder_1_forward.5} parent=0 // pred_region
    _
  $region9: #{autoencoder_1_forward.5} parent=0 // pred_fallthru
    _
  // Predicated region
  $region10: #{autoencoder_1_forward.5} parent=0 // pred_check
    _
  $region11: #{autoencoder_1_forward.5} parent=0 // pred_check_branch
    %13 = sbr.rel (0) target = $region13
  $region12: #{autoencoder_1_forward.5} parent=0 // pred_region
    _
  $region13: #{autoencoder_1_forward.5} parent=0 // pred_fallthru
    _
  %v15 = vld [vmem:[%s0] sm:$0xf]
  %v16 = vld [vmem:[%s0 + $0x4] sm:$0xf]
  %v17 = vld [vmem:[%s1] sm:$0xff]
  %v18 = vld [vmem:[%s1 + $0x8] sm:$0x11]
  %v19 = vld [vmem:[%s2] sm:$0xff]
  %v20 = vld [vmem:[%s2 + $0x8] sm:$0xff]
  %22 = vset.pattern.permute.xlu0 0
  %23 = vperm.xlu0 %22, %v19
  %v24 = vpop.permute.xlu0 %23
  %27 = vset.pattern.permute.xlu0 0
  %28 = vperm.xlu0 %27, %v20
  %v29 = vpop.permute.xlu0 %28
  %v33 = vunpack.c.l.b16 %v15
  %v34 = vunpack.c.l.b16 %v16
  %v35 = vpack.c.b16 %v34, %v33
  %v38 = vunpack.c.l.b16 %v17
  %v39 = vunpack.c.h.b16 %v17
  %v40 = vunpack.c.l.b16 %v18
  %v41 = vunpack.c.h.b16 %v18
  %v42 = vpack.c.b16 %v40, %v38
  %v43 = vpack.c.b16 %v41, %v39
  %vm44 = vcmask 72704
  %v46 = vsel %vm44, %v35, 0
  %vm48 = vcmask 1043456
  %vm49 = vcmask 1044480
  %v50 = vsel %vm48, 4294967295, 65535
  %v51 = vsel %vm49, %v50, 0
  %v53 = vand.u32 %v42, %v51
  %v56 = vand.u32 %v43, %v51
  %58 = vmatprep.subr.bf16.mxu0 %v56
  %59 = vmatpush1.bf16.msra.mxu0 %v53
  %60 = vmatprep.subr.bf16.mxu0 0
  %61 = vmatpush1.bf16.msra.mxu0 0
  %62 = vmatprep.subr.bf16.mxu0 0
  %63 = vmatpush1.bf16.msra.mxu0 0
  %64 = vmatprep.subr.bf16.mxu0 0
  %65 = vmatpush1.bf16.msra.mxu0 0
  %66 = vmatprep.subr.bf16.mxu0 0
  %67 = vmatpush1.bf16.msra.mxu0 0
  %68 = vmatprep.subr.bf16.mxu0 0
  %69 = vmatpush1.bf16.msra.mxu0 0
  %70 = vmatprep.subr.bf16.mxu0 0
  %71 = vmatpush1.bf16.msra.mxu0 0
  %72 = vmatprep.subr.bf16.mxu0 0
  %73 = vmatpush1.bf16.msra.mxu0 0
  %74 = vmatprep.subr.bf16.mxu0 0
  %75 = vmatpush1.bf16.msra.mxu0 0
  %76 = vmatprep.subr.bf16.mxu0 0
  %77 = vmatpush1.bf16.msra.mxu0 0
  %78 = vmatprep.subr.bf16.mxu0 0
  %79 = vmatpush1.bf16.msra.mxu0 0
  %80 = vmatprep.subr.bf16.mxu0 0
  %81 = vmatpush1.bf16.msra.mxu0 0
  %82 = vmatprep.subr.bf16.mxu0 0
  %83 = vmatpush1.bf16.msra.mxu0 0
  %84 = vmatprep.subr.bf16.mxu0 0
  %85 = vmatpush1.bf16.msra.mxu0 0
  %86 = vmatprep.subr.bf16.mxu0 0
  %87 = vmatpush1.bf16.msra.mxu0 0
  %88 = vmatprep.subr.bf16.mxu0 0
  %89 = vmatpush1.bf16.msra.mxu0 0
  %90 = vmatprep.mubr.bf16.mxu0 0
  %91 = vmatmul.mubr.bf16.gmra.mrb[0].mxu0 %v46
  %v92 = vpop.f32.mrb[0].mxu0
  %v93 = vadd.f32 %v24, %v92
  %v94 = vpop.f32.mrb[0].mxu0
  %v95 = vadd.f32 %v24, %v94
  %v96 = vpop.f32.mrb[0].mxu0
  %v97 = vadd.f32 %v29, %v96
  %v98 = vpop.f32.mrb[0].mxu0
  %v99 = vadd.f32 %v29, %v98
  %100 = vdwg.mxu0
  %v101 = vmax.f32 %v93, 0.0
  %v102 = vmax.f32 %v95, 0.0
  %v103 = vmax.f32 %v97, 0.0
  %v104 = vmax.f32 %v99, 0.0
  %v105 = vpack.c.bf16 %v103, %v101
  %v106 = vpack.c.bf16 %v104, %v102
  %v109 = vunpack.c.l.b16 %v105
  %v110 = vunpack.c.l.b16 %v106
  %v111 = vunpack.c.h.b16 %v105
  %v112 = vunpack.c.h.b16 %v106
  %v113 = vpack.c.b16 %v110, %v109
  %v114 = vpack.c.b16 %v112, %v111
  %vm117 = vcmask 588804
  %vm118 = vmor %vm117, %vm48
  %119 = vst.msk [vmem:[%s3] sm:$0xff] %vm118, %v113
  %120 = vst.msk [vmem:[%s3 + $0x8] sm:$0xff] %vm118, %v114
  // Predicated region
  $region14: #{autoencoder_1_forward.5} parent=0 // pred_check
    _
  $region15: #{autoencoder_1_forward.5} parent=0 // pred_check_branch
    %122 = sbr.rel (0) target = $region17
  $region16: #{autoencoder_1_forward.5} parent=0 // pred_region
    _
  $region17: #{autoencoder_1_forward.5} parent=0 // pred_fallthru
    _
  // Predicated region
  $region18: #{autoencoder_1_forward.5} parent=0 // pred_check
    _
  $region19: #{autoencoder_1_forward.5} parent=0 // pred_check_branch
    %124 = sbr.rel (0) target = $region21
  $region20: #{autoencoder_1_forward.5} parent=0 // pred_region
    _
  $region21: #{autoencoder_1_forward.5} parent=0 // pred_fallthru
    _

// kernel: autoencoder_1_forward.6
$region0: #{autoencoder_1_forward.6}
  #allocation0 [shape = 'u32[]', space=smem, size = 0x4, offset = 0x4, fixed_abs, tag = 'smem constant byte address 0x4 - core index']
  #allocation1 [shape = 'u32[144,128]{1,0:T(1,128)}', space=vmem, size = 0x12000, scoped, tag = 'internal scratch']
  %s0 = inlined_call_operand.vmem [shape: bf16[8,144], index: 0, kind: input, shape index: {}]
  %s1 = inlined_call_operand.vmem [shape: bf16[144,18], index: 1, kind: input, shape index: {}]
  %s2 = inlined_call_operand.vmem [shape: f32[8,1], index: 2, kind: input, shape index: {}]
  %s3 = inlined_call_operand.vmem [shape: bf16[8,18], index: 3, kind: output, shape index: {}]
  %s4 = sld [smem:[#allocation0]]
  $region22: #{autoencoder_1_forward.6} parent=0
    _
  %s6 = ssub.s32 1, %s4
  %s7 = scalar_select 0, %s6, %s4
  // Predicated region
  $region2: #{autoencoder_1_forward.6} parent=0 // pred_check
    _
  $region3: #{autoencoder_1_forward.6} parent=0 // pred_check_branch
    %9 = sbr.rel (0) target = $region5
  $region4: #{autoencoder_1_forward.6} parent=0 // pred_region
    _
  $region5: #{autoencoder_1_forward.6} parent=0 // pred_fallthru
    _
  // Predicated region
  $region6: #{autoencoder_1_forward.6} parent=0 // pred_check
    _
  $region7: #{autoencoder_1_forward.6} parent=0 // pred_check_branch
    %11 = sbr.rel (0) target = $region9
  $region8: #{autoencoder_1_forward.6} parent=0 // pred_region
    _
  $region9: #{autoencoder_1_forward.6} parent=0 // pred_fallthru
    _
  // Predicated region
  $region10: #{autoencoder_1_forward.6} parent=0 // pred_check
    _
  $region11: #{autoencoder_1_forward.6} parent=0 // pred_check_branch
    %13 = sbr.rel (0) target = $region13
  $region12: #{autoencoder_1_forward.6} parent=0 // pred_region
    _
  $region13: #{autoencoder_1_forward.6} parent=0 // pred_fallthru
    _
  %v15 = vld [vmem:[%s0] sm:$0xff]
  %v16 = vld [vmem:[%s1] sm:$0xf]
  %v17 = vld [vmem:[%s1 + $0x4] sm:$0xf]
  %v18 = vld [vmem:[%s1 + $0x8] sm:$0xf]
  %v19 = vld [vmem:[%s1 + $0xc] sm:$0xf]
  %v20 = vld [vmem:[%s1 + $0x10] sm:$0xf]
  %v21 = vld [vmem:[%s1 + $0x14] sm:$0xf]
  %v22 = vld [vmem:[%s1 + $0x18] sm:$0xf]
  %v23 = vld [vmem:[%s1 + $0x1c] sm:$0xf]
  %v24 = vld [vmem:[%s1 + $0x20] sm:$0xf]
  %v25 = vld [vmem:[%s1 + $0x24] sm:$0xf]
  %v26 = vld [vmem:[%s1 + $0x28] sm:$0xf]
  %v27 = vld [vmem:[%s1 + $0x2c] sm:$0xf]
  %v28 = vld [vmem:[%s1 + $0x30] sm:$0xf]
  %v29 = vld [vmem:[%s1 + $0x34] sm:$0xf]
  %v30 = vld [vmem:[%s1 + $0x38] sm:$0xf]
  %v31 = vld [vmem:[%s1 + $0x3c] sm:$0xf]
  %v32 = vld [vmem:[%s1 + $0x40] sm:$0xf]
  %v33 = vld [vmem:[%s1 + $0x44] sm:$0xf]
  %v34 = vld [vmem:[%s2] sm:$0xff]
  %36 = vset.pattern.permute.xlu0 0
  %37 = vperm.xlu0 %36, %v34
  %v38 = vpop.permute.xlu0 %37
  %v41 = vunpack.c.l.b16 %v15
  %v42 = vunpack.c.h.b16 %v15
  %v43 = vpack.c.b16 %v41, %v41
  %v44 = vpack.c.b16 %v42, %v42
  %v64 = vunpack.c.l.b16 %v16
  %v65 = vunpack.c.l.b16 %v17
  %v66 = vunpack.c.l.b16 %v18
  %v67 = vunpack.c.l.b16 %v19
  %v68 = vunpack.c.l.b16 %v20
  %v69 = vunpack.c.l.b16 %v21
  %v70 = vunpack.c.l.b16 %v22
  %v71 = vunpack.c.l.b16 %v23
  %v72 = vunpack.c.l.b16 %v24
  %v73 = vunpack.c.l.b16 %v25
  %v74 = vunpack.c.l.b16 %v26
  %v75 = vunpack.c.l.b16 %v27
  %v76 = vunpack.c.l.b16 %v28
  %v77 = vunpack.c.l.b16 %v29
  %v78 = vunpack.c.l.b16 %v30
  %v79 = vunpack.c.l.b16 %v31
  %v80 = vunpack.c.l.b16 %v32
  %v81 = vunpack.c.l.b16 %v33
  %v82 = vpack.c.b16 %v65, %v64
  %v83 = vpack.c.b16 %v67, %v66
  %v84 = vpack.c.b16 %v69, %v68
  %v85 = vpack.c.b16 %v71, %v70
  %v86 = vpack.c.b16 %v73, %v72
  %v87 = vpack.c.b16 %v75, %v74
  %v88 = vpack.c.b16 %v77, %v76
  %v89 = vpack.c.b16 %v79, %v78
  %v90 = vpack.c.b16 %v81, %v80
  %vm100 = vcmask 130048
  %v102 = vsel %vm100, %v44, 0
  %104 = vmatprep.subr.bf16.mxu0 0
  %105 = vmatpush1.bf16.msra.mxu0 %v82
  %106 = vmatprep.subr.bf16.mxu0 0
  %107 = vmatpush1.bf16.msra.mxu0 %v83
  %108 = vmatprep.subr.bf16.mxu0 0
  %109 = vmatpush1.bf16.msra.mxu0 %v84
  %110 = vmatprep.subr.bf16.mxu0 0
  %111 = vmatpush1.bf16.msra.mxu0 %v85
  %112 = vmatprep.subr.bf16.mxu0 0
  %113 = vmatpush1.bf16.msra.mxu0 %v86
  %114 = vmatprep.subr.bf16.mxu0 0
  %115 = vmatpush1.bf16.msra.mxu0 %v87
  %116 = vmatprep.subr.bf16.mxu0 0
  %117 = vmatpush1.bf16.msra.mxu0 %v88
  %118 = vmatprep.subr.bf16.mxu0 0
  %119 = vmatpush1.bf16.msra.mxu0 %v89
  %120 = vmatprep.subr.bf16.mxu0 0
  %121 = vmatpush1.bf16.msra.mxu0 %v90
  %122 = vmatprep.subr.bf16.mxu0 0
  %123 = vmatpush1.bf16.msra.mxu0 0
  %124 = vmatprep.subr.bf16.mxu0 0
  %125 = vmatpush1.bf16.msra.mxu0 0
  %126 = vmatprep.subr.bf16.mxu0 0
  %127 = vmatpush1.bf16.msra.mxu0 0
  %128 = vmatprep.subr.bf16.mxu0 0
  %129 = vmatpush1.bf16.msra.mxu0 0
  %130 = vmatprep.subr.bf16.mxu0 0
  %131 = vmatpush1.bf16.msra.mxu0 0
  %132 = vmatprep.subr.bf16.mxu0 0
  %133 = vmatpush1.bf16.msra.mxu0 0
  %134 = vmatprep.subr.bf16.mxu0 0
  %135 = vmatpush1.bf16.msra.mxu0 0
  %136 = vmatprep.mubr.bf16.mxu0 %v102
  %137 = vmatmul.mubr.bf16.gmra.mrb[0].mxu0 %v43
  %v138 = vpop.f32.mrb[0].mxu0
  %v139 = vadd.f32 %v38, %v138
  %v140 = vpop.f32.mrb[0].mxu0
  %v141 = vpop.f32.mrb[0].mxu0
  %v142 = vpop.f32.mrb[0].mxu0
  %143 = vdwg.mxu0
  %v144 = vmax.f32 %v139, 0.0
  %v145 = vpack.c.bf16 %v144, %v144
  %vm146 = vcmask 142336
  %147 = vst.msk [vmem:[%s3] sm:$0xf] %vm146, %v145
  // Predicated region
  $region14: #{autoencoder_1_forward.6} parent=0 // pred_check
    _
  $region15: #{autoencoder_1_forward.6} parent=0 // pred_check_branch
    %149 = sbr.rel (0) target = $region17
  $region16: #{autoencoder_1_forward.6} parent=0 // pred_region
    _
  $region17: #{autoencoder_1_forward.6} parent=0 // pred_fallthru
    _
  // Predicated region
  $region18: #{autoencoder_1_forward.6} parent=0 // pred_check
    _
  $region19: #{autoencoder_1_forward.6} parent=0 // pred_check_branch
    %151 = sbr.rel (0) target = $region21
  $region20: #{autoencoder_1_forward.6} parent=0 // pred_region
    _
  $region21: #{autoencoder_1_forward.6} parent=0 // pred_fallthru
    _

// kernel: autoencoder_1_forward.7
$region0: #{autoencoder_1_forward.7}
  #allocation0 [shape = 'u32[]', space=smem, size = 0x4, offset = 0x4, fixed_abs, tag = 'smem constant byte address 0x4 - core index']
  #allocation1 [shape = 'u32[144,128]{1,0:T(1,128)}', space=vmem, size = 0x12000, scoped, tag = 'internal scratch']
  %s0 = inlined_call_operand.vmem [shape: bf16[16,72], index: 0, kind: input, shape index: {}]
  %s1 = inlined_call_operand.vmem [shape: bf16[72,50], index: 1, kind: input, shape index: {}]
  %s2 = inlined_call_operand.vmem [shape: f32[16,1], index: 2, kind: input, shape index: {}]
  %s3 = inlined_call_operand.vmem [shape: bf16[16,50], index: 3, kind: output, shape index: {}]
  %s4 = sld [smem:[#allocation0]]
  $region22: #{autoencoder_1_forward.7} parent=0
    _
  %s6 = ssub.s32 1, %s4
  %s7 = scalar_select 0, %s6, %s4
  // Predicated region
  $region2: #{autoencoder_1_forward.7} parent=0 // pred_check
    _
  $region3: #{autoencoder_1_forward.7} parent=0 // pred_check_branch
    %9 = sbr.rel (0) target = $region5
  $region4: #{autoencoder_1_forward.7} parent=0 // pred_region
    _
  $region5: #{autoencoder_1_forward.7} parent=0 // pred_fallthru
    _
  // Predicated region
  $region6: #{autoencoder_1_forward.7} parent=0 // pred_check
    _
  $region7: #{autoencoder_1_forward.7} parent=0 // pred_check_branch
    %11 = sbr.rel (0) target = $region9
  $region8: #{autoencoder_1_forward.7} parent=0 // pred_region
    _
  $region9: #{autoencoder_1_forward.7} parent=0 // pred_fallthru
    _
  // Predicated region
  $region10: #{autoencoder_1_forward.7} parent=0 // pred_check
    _
  $region11: #{autoencoder_1_forward.7} parent=0 // pred_check_branch
    %13 = sbr.rel (0) target = $region13
  $region12: #{autoencoder_1_forward.7} parent=0 // pred_region
    _
  $region13: #{autoencoder_1_forward.7} parent=0 // pred_fallthru
    _
  %v15 = vld [vmem:[%s0] sm:$0xf]
  %v16 = vld [vmem:[%s0 + $0x4] sm:$0xf]
  %v17 = vld [vmem:[%s1] sm:$0xf]
  %v18 = vld [vmem:[%s1 + $0x4] sm:$0xf]
  %v19 = vld [vmem:[%s1 + $0x8] sm:$0xf]
  %v20 = vld [vmem:[%s1 + $0xc] sm:$0xf]
  %v21 = vld [vmem:[%s1 + $0x10] sm:$0xf]
  %v22 = vld [vmem:[%s1 + $0x14] sm:$0xf]
  %v23 = vld [vmem:[%s1 + $0x18] sm:$0xf]
  %v24 = vld [vmem:[%s1 + $0x1c] sm:$0xf]
  %v25 = vld [vmem:[%s1 + $0x20] sm:$0xf]
  %v26 = vld [vmem:[%s2] sm:$0xff]
  %v27 = vld [vmem:[%s2 + $0x8] sm:$0xff]
  %29 = vset.pattern.permute.xlu0 0
  %30 = vperm.xlu0 %29, %v26
  %v31 = vpop.permute.xlu0 %30
  %34 = vset.pattern.permute.xlu0 0
  %35 = vperm.xlu0 %34, %v27
  %v36 = vpop.permute.xlu0 %35
  %v40 = vunpack.c.l.b16 %v15
  %v41 = vunpack.c.l.b16 %v16
  %v42 = vpack.c.b16 %v41, %v40
  %v52 = vunpack.c.l.b16 %v17
  %v53 = vunpack.c.l.b16 %v18
  %v54 = vunpack.c.l.b16 %v19
  %v55 = vunpack.c.l.b16 %v20
  %v56 = vunpack.c.l.b16 %v21
  %v57 = vunpack.c.l.b16 %v22
  %v58 = vunpack.c.l.b16 %v23
  %v59 = vunpack.c.l.b16 %v24
  %v60 = vunpack.c.l.b16 %v25
  %v61 = vpack.c.b16 %v53, %v52
  %v62 = vpack.c.b16 %v55, %v54
  %v63 = vpack.c.b16 %v57, %v56
  %v64 = vpack.c.b16 %v59, %v58
  %v65 = vpack.c.b16 %v60, %v60
  %vm70 = vcmask 588800
  %v72 = vsel %vm70, %v42, 0
  %vm74 = vcmask 1043456
  %v76 = vsel %vm74, %v65, 0
  %78 = vmatprep.subr.bf16.mxu0 0
  %79 = vmatpush1.bf16.msra.mxu0 %v61
  %80 = vmatprep.subr.bf16.mxu0 0
  %81 = vmatpush1.bf16.msra.mxu0 %v62
  %82 = vmatprep.subr.bf16.mxu0 0
  %83 = vmatpush1.bf16.msra.mxu0 %v63
  %84 = vmatprep.subr.bf16.mxu0 0
  %85 = vmatpush1.bf16.msra.mxu0 %v64
  %86 = vmatprep.subr.bf16.mxu0 0
  %87 = vmatpush1.bf16.msra.mxu0 %v76
  %88 = vmatprep.subr.bf16.mxu0 0
  %89 = vmatpush1.bf16.msra.mxu0 0
  %90 = vmatprep.subr.bf16.mxu0 0
  %91 = vmatpush1.bf16.msra.mxu0 0
  %92 = vmatprep.subr.bf16.mxu0 0
  %93 = vmatpush1.bf16.msra.mxu0 0
  %94 = vmatprep.subr.bf16.mxu0 0
  %95 = vmatpush1.bf16.msra.mxu0 0
  %96 = vmatprep.subr.bf16.mxu0 0
  %97 = vmatpush1.bf16.msra.mxu0 0
  %98 = vmatprep.subr.bf16.mxu0 0
  %99 = vmatpush1.bf16.msra.mxu0 0
  %100 = vmatprep.subr.bf16.mxu0 0
  %101 = vmatpush1.bf16.msra.mxu0 0
  %102 = vmatprep.subr.bf16.mxu0 0
  %103 = vmatpush1.bf16.msra.mxu0 0
  %104 = vmatprep.subr.bf16.mxu0 0
  %105 = vmatpush1.bf16.msra.mxu0 0
  %106 = vmatprep.subr.bf16.mxu0 0
  %107 = vmatpush1.bf16.msra.mxu0 0
  %108 = vmatprep.subr.bf16.mxu0 0
  %109 = vmatpush1.bf16.msra.mxu0 0
  %110 = vmatprep.mubr.bf16.mxu0 0
  %111 = vmatmul.mubr.bf16.gmra.mrb[0].mxu0 %v72
  %v112 = vpop.f32.mrb[0].mxu0
  %v113 = vadd.f32 %v31, %v112
  %v114 = vpop.f32.mrb[0].mxu0
  %v115 = vpop.f32.mrb[0].mxu0
  %v116 = vadd.f32 %v36, %v115
  %v117 = vpop.f32.mrb[0].mxu0
  %118 = vdwg.mxu0
  %v119 = vmax.f32 %v113, 0.0
  %v120 = vmax.f32 %v116, 0.0
  %v121 = vpack.c.bf16 %v120, %v119
  %v123 = vunpack.c.l.b16 %v121
  %v124 = vunpack.c.h.b16 %v121
  %v125 = vpack.c.b16 %v123, %v123
  %v126 = vpack.c.b16 %v124, %v124
  %vm129 = vcmask 404480
  %130 = vst.msk [vmem:[%s3] sm:$0xf] %vm129, %v125
  %131 = vst.msk [vmem:[%s3 + $0x4] sm:$0xf] %vm129, %v126
  // Predicated region
  $region14: #{autoencoder_1_forward.7} parent=0 // pred_check
    _
  $region15: #{autoencoder_1_forward.7} parent=0 // pred_check_branch
    %133 = sbr.rel (0) target = $region17
  $region16: #{autoencoder_1_forward.7} parent=0 // pred_region
    _
  $region17: #{autoencoder_1_forward.7} parent=0 // pred_fallthru
    _
  // Predicated region
  $region18: #{autoencoder_1_forward.7} parent=0 // pred_check
    _
  $region19: #{autoencoder_1_forward.7} parent=0 // pred_check_branch
    %135 = sbr.rel (0) target = $region21
  $region20: #{autoencoder_1_forward.7} parent=0 // pred_region
    _
  $region21: #{autoencoder_1_forward.7} parent=0 // pred_fallthru
    _

// kernel: autoencoder_1_forward.8
$region0: #{autoencoder_1_forward.8}
  #allocation0 [shape = 'u32[]', space=smem, size = 0x4, offset = 0x4, fixed_abs, tag = 'smem constant byte address 0x4 - core index']
  #allocation1 [shape = 'u32[144,128]{1,0:T(1,128)}', space=vmem, size = 0x12000, scoped, tag = 'internal scratch']
  %s0 = inlined_call_operand.vmem [shape: bf16[8,400], index: 0, kind: input, shape index: {}]
  %s1 = inlined_call_operand.vmem [shape: bf16[400,450], index: 1, kind: input, shape index: {}]
  %s2 = inlined_call_operand.vmem [shape: f32[8,1], index: 2, kind: input, shape index: {}]
  %s3 = inlined_call_operand.vmem [shape: bf16[8,450], index: 3, kind: output, shape index: {}]
  %s4 = sld [smem:[#allocation0]]
  $region22: #{autoencoder_1_forward.8} parent=0
    _
  %s6 = ssub.s32 1, %s4
  %s7 = scalar_select 0, %s6, %s4
  // Predicated region
  $region2: #{autoencoder_1_forward.8} parent=0 // pred_check
    _
  $region3: #{autoencoder_1_forward.8} parent=0 // pred_check_branch
    %9 = sbr.rel (0) target = $region5
  $region4: #{autoencoder_1_forward.8} parent=0 // pred_region
    _
  $region5: #{autoencoder_1_forward.8} parent=0 // pred_fallthru
    _
  // Predicated region
  $region6: #{autoencoder_1_forward.8} parent=0 // pred_check
    _
  $region7: #{autoencoder_1_forward.8} parent=0 // pred_check_branch
    %11 = sbr.rel (0) target = $region9
  $region8: #{autoencoder_1_forward.8} parent=0 // pred_region
    _
  $region9: #{autoencoder_1_forward.8} parent=0 // pred_fallthru
    _
  // Predicated region
  $region10: #{autoencoder_1_forward.8} parent=0 // pred_check
    _
  $region11: #{autoencoder_1_forward.8} parent=0 // pred_check_branch
    %13 = sbr.rel (0) target = $region13
  $region12: #{autoencoder_1_forward.8} parent=0 // pred_region
    _
  $region13: #{autoencoder_1_forward.8} parent=0 // pred_fallthru
    _
  %v15 = vld [vmem:[%s0] sm:$0xff]
  %v16 = vld [vmem:[%s0 + $0x8] sm:$0xff]
  %v17 = vld [vmem:[%s1] sm:$0xff]
  %v18 = vld [vmem:[%s1 + $0x8] sm:$0xff]
  %v19 = vld [vmem:[%s1 + $0x10] sm:$0xff]
  %v20 = vld [vmem:[%s1 + $0x18] sm:$0xff]
  %v21 = vld [vmem:[%s1 + $0x20] sm:$0xff]
  %v22 = vld [vmem:[%s1 + $0x28] sm:$0xff]
  %v23 = vld [vmem:[%s1 + $0x30] sm:$0xff]
  %v24 = vld [vmem:[%s1 + $0x38] sm:$0xff]
  %v25 = vld [vmem:[%s1 + $0x40] sm:$0xff]
  %v26 = vld [vmem:[%s1 + $0x48] sm:$0xff]
  %v27 = vld [vmem:[%s1 + $0x50] sm:$0xff]
  %v28 = vld [vmem:[%s1 + $0x58] sm:$0xff]
  %v29 = vld [vmem:[%s1 + $0x60] sm:$0xff]
  %v30 = vld [vmem:[%s1 + $0x68] sm:$0xff]
  %v31 = vld [vmem:[%s1 + $0x70] sm:$0xff]
  %v32 = vld [vmem:[%s1 + $0x78] sm:$0xff]
  %v33 = vld [vmem:[%s1 + $0x80] sm:$0xff]
  %v34 = vld [vmem:[%s1 + $0x88] sm:$0xff]
  %v35 = vld [vmem:[%s1 + $0x90] sm:$0xff]
  %v36 = vld [vmem:[%s1 + $0x98] sm:$0xff]
  %v37 = vld [vmem:[%s1 + $0xa0] sm:$0xff]
  %v38 = vld [vmem:[%s1 + $0xa8] sm:$0xff]
  %v39 = vld [vmem:[%s1 + $0xb0] sm:$0xff]
  %v40 = vld [vmem:[%s1 + $0xb8] sm:$0xff]
  %v41 = vld [vmem:[%s1 + $0xc0] sm:$0xff]
  %v42 = vld [vmem:[%s1 + $0xc8] sm:$0xff]
  %v43 = vld [vmem:[%s1 + $0xd0] sm:$0xff]
  %v44 = vld [vmem:[%s1 + $0xd8] sm:$0xff]
  %v45 = vld [vmem:[%s1 + $0xe0] sm:$0xff]
  %v46 = vld [vmem:[%s1 + $0xe8] sm:$0xff]
  %v47 = vld [vmem:[%s1 + $0xf0] sm:$0xff]
  %v48 = vld [vmem:[%s1 + $0xf8] sm:$0xff]
  %v49 = vld [vmem:[%s1 + $0x100] sm:$0xff]
  %v50 = vld [vmem:[%s1 + $0x108] sm:$0xff]
  %v51 = vld [vmem:[%s1 + $0x110] sm:$0xff]
  %v52 = vld [vmem:[%s1 + $0x118] sm:$0xff]
  %v53 = vld [vmem:[%s1 + $0x120] sm:$0xff]
  %v54 = vld [vmem:[%s1 + $0x128] sm:$0xff]
  %v55 = vld [vmem:[%s1 + $0x130] sm:$0xff]
  %v56 = vld [vmem:[%s1 + $0x138] sm:$0xff]
  %v57 = vld [vmem:[%s1 + $0x140] sm:$0xff]
  %v58 = vld [vmem:[%s1 + $0x148] sm:$0xff]
  %v59 = vld [vmem:[%s1 + $0x150] sm:$0xff]
  %v60 = vld [vmem:[%s1 + $0x158] sm:$0xff]
  %v61 = vld [vmem:[%s1 + $0x160] sm:$0xff]
  %v62 = vld [vmem:[%s1 + $0x168] sm:$0xff]
  %v63 = vld [vmem:[%s1 + $0x170] sm:$0xff]
  %v64 = vld [vmem:[%s1 + $0x178] sm:$0xff]
  %v65 = vld [vmem:[%s1 + $0x180] sm:$0xff]
  %v66 = vld [vmem:[%s1 + $0x188] sm:$0xff]
  %v67 = vld [vmem:[%s1 + $0x190] sm:$0xff]
  %v68 = vld [vmem:[%s1 + $0x198] sm:$0xff]
  %v69 = vld [vmem:[%s1 + $0x1a0] sm:$0xff]
  %v70 = vld [vmem:[%s1 + $0x1a8] sm:$0xff]
  %v71 = vld [vmem:[%s1 + $0x1b0] sm:$0xff]
  %v72 = vld [vmem:[%s1 + $0x1b8] sm:$0xff]
  %v73 = vld [vmem:[%s1 + $0x1c0] sm:$0xff]
  %v74 = vld [vmem:[%s1 + $0x1c8] sm:$0xff]
  %v75 = vld [vmem:[%s1 + $0x1d0] sm:$0xff]
  %v76 = vld [vmem:[%s1 + $0x1d8] sm:$0xff]
  %v77 = vld [vmem:[%s1 + $0x1e0] sm:$0xff]
  %v78 = vld [vmem:[%s1 + $0x1e8] sm:$0xff]
  %v79 = vld [vmem:[%s1 + $0x1f0] sm:$0xff]
  %v80 = vld [vmem:[%s1 + $0x1f8] sm:$0xff]
  %v81 = vld [vmem:[%s1 + $0x200] sm:$0xff]
  %v82 = vld [vmem:[%s1 + $0x208] sm:$0xff]
  %v83 = vld [vmem:[%s1 + $0x210] sm:$0xff]
  %v84 = vld [vmem:[%s1 + $0x218] sm:$0xff]
  %v85 = vld [vmem:[%s1 + $0x220] sm:$0xff]
  %v86 = vld [vmem:[%s1 + $0x228] sm:$0xff]
  %v87 = vld [vmem:[%s1 + $0x230] sm:$0xff]
  %v88 = vld [vmem:[%s1 + $0x238] sm:$0xff]
  %v89 = vld [vmem:[%s1 + $0x240] sm:$0xff]
  %v90 = vld [vmem:[%s1 + $0x248] sm:$0xff]
  %v91 = vld [vmem:[%s1 + $0x250] sm:$0xff]
  %v92 = vld [vmem:[%s1 + $0x258] sm:$0xff]
  %v93 = vld [vmem:[%s1 + $0x260] sm:$0xff]
  %v94 = vld [vmem:[%s1 + $0x268] sm:$0xff]
  %v95 = vld [vmem:[%s1 + $0x270] sm:$0xff]
  %v96 = vld [vmem:[%s1 + $0x278] sm:$0xff]
  %v97 = vld [vmem:[%s1 + $0x280] sm:$0xff]
  %v98 = vld [vmem:[%s1 + $0x288] sm:$0xff]
  %v99 = vld [vmem:[%s1 + $0x290] sm:$0xff]
  %v100 = vld [vmem:[%s1 + $0x298] sm:$0xff]
  %v101 = vld [vmem:[%s1 + $0x2a0] sm:$0xff]
  %v102 = vld [vmem:[%s1 + $0x2a8] sm:$0xff]
  %v103 = vld [vmem:[%s1 + $0x2b0] sm:$0xff]
  %v104 = vld [vmem:[%s1 + $0x2b8] sm:$0xff]
  %v105 = vld [vmem:[%s1 + $0x2c0] sm:$0xff]
  %v106 = vld [vmem:[%s1 + $0x2c8] sm:$0xff]
  %v107 = vld [vmem:[%s1 + $0x2d0] sm:$0xff]
  %v108 = vld [vmem:[%s1 + $0x2d8] sm:$0xff]
  %v109 = vld [vmem:[%s1 + $0x2e0] sm:$0xff]
  %v110 = vld [vmem:[%s1 + $0x2e8] sm:$0xff]
  %v111 = vld [vmem:[%s1 + $0x2f0] sm:$0xff]
  %v112 = vld [vmem:[%s1 + $0x2f8] sm:$0xff]
  %v113 = vld [vmem:[%s1 + $0x300] sm:$0xff]
  %v114 = vld [vmem:[%s1 + $0x308] sm:$0xff]
  %v115 = vld [vmem:[%s1 + $0x310] sm:$0xff]
  %v116 = vld [vmem:[%s1 + $0x318] sm:$0xff]
  %v117 = vld [vmem:[%s2] sm:$0xff]
  %119 = vset.pattern.permute.xlu0 0
  %120 = vperm.xlu0 %119, %v117
  %v121 = vpop.permute.xlu0 %120
  %v125 = vunpack.c.l.b16 %v15
  %v126 = vunpack.c.h.b16 %v15
  %v127 = vunpack.c.l.b16 %v16
  %v128 = vunpack.c.h.b16 %v16
  %v129 = vpack.c.b16 %v125, %v125
  %v130 = vpack.c.b16 %v126, %v126
  %v131 = vpack.c.b16 %v127, %v127
  %v132 = vpack.c.b16 %v128, %v128
  %v236 = vunpack.c.l.b16 %v17
  %v237 = vunpack.c.h.b16 %v17
  %v238 = vunpack.c.l.b16 %v18
  %v239 = vunpack.c.h.b16 %v18
  %v240 = vunpack.c.l.b16 %v19
  %v241 = vunpack.c.h.b16 %v19
  %v242 = vunpack.c.l.b16 %v20
  %v243 = vunpack.c.h.b16 %v20
  %v244 = vunpack.c.l.b16 %v21
  %v245 = vunpack.c.h.b16 %v21
  %v246 = vunpack.c.l.b16 %v22
  %v247 = vunpack.c.h.b16 %v22
  %v248 = vunpack.c.l.b16 %v23
  %v249 = vunpack.c.h.b16 %v23
  %v250 = vunpack.c.l.b16 %v24
  %v251 = vunpack.c.h.b16 %v24
  %v252 = vunpack.c.l.b16 %v25
  %v253 = vunpack.c.h.b16 %v25
  %v254 = vunpack.c.l.b16 %v26
  %v255 = vunpack.c.h.b16 %v26
  %v256 = vunpack.c.l.b16 %v27
  %v257 = vunpack.c.h.b16 %v27
  %v258 = vunpack.c.l.b16 %v28
  %v259 = vunpack.c.h.b16 %v28
  %v260 = vunpack.c.l.b16 %v29
  %v261 = vunpack.c.h.b16 %v29
  %v262 = vunpack.c.l.b16 %v30
  %v263 = vunpack.c.h.b16 %v30
  %v264 = vunpack.c.l.b16 %v31
  %v265 = vunpack.c.h.b16 %v31
  %v266 = vunpack.c.l.b16 %v32
  %v267 = vunpack.c.h.b16 %v32
  %v268 = vunpack.c.l.b16 %v33
  %v269 = vunpack.c.h.b16 %v33
  %v270 = vunpack.c.l.b16 %v34
  %v271 = vunpack.c.h.b16 %v34
  %v272 = vunpack.c.l.b16 %v35
  %v273 = vunpack.c.h.b16 %v35
  %v274 = vunpack.c.l.b16 %v36
  %v275 = vunpack.c.h.b16 %v36
  %v276 = vunpack.c.l.b16 %v37
  %v277 = vunpack.c.h.b16 %v37
  %v278 = vunpack.c.l.b16 %v38
  %v279 = vunpack.c.h.b16 %v38
  %v280 = vunpack.c.l.b16 %v39
  %v281 = vunpack.c.h.b16 %v39
  %v282 = vunpack.c.l.b16 %v40
  %v283 = vunpack.c.h.b16 %v40
  %v284 = vunpack.c.l.b16 %v41
  %v285 = vunpack.c.h.b16 %v41
  %v286 = vunpack.c.l.b16 %v42
  %v287 = vunpack.c.h.b16 %v42
  %v288 = vunpack.c.l.b16 %v43
  %v289 = vunpack.c.h.b16 %v43
  %v290 = vunpack.c.l.b16 %v44
  %v291 = vunpack.c.h.b16 %v44
  %v292 = vunpack.c.l.b16 %v45
  %v293 = vunpack.c.h.b16 %v45
  %v294 = vunpack.c.l.b16 %v46
  %v295 = vunpack.c.h.b16 %v46
  %v296 = vunpack.c.l.b16 %v47
  %v297 = vunpack.c.h.b16 %v47
  %v298 = vunpack.c.l.b16 %v48
  %v299 = vunpack.c.h.b16 %v48
  %v300 = vunpack.c.l.b16 %v49
  %v301 = vunpack.c.h.b16 %v49
  %v302 = vunpack.c.l.b16 %v50
  %v303 = vunpack.c.h.b16 %v50
  %v304 = vunpack.c.l.b16 %v51
  %v305 = vunpack.c.h.b16 %v51
  %v306 = vunpack.c.l.b16 %v52
  %v307 = vunpack.c.h.b16 %v52
  %v308 = vunpack.c.l.b16 %v53
  %v309 = vunpack.c.h.b16 %v53
  %v310 = vunpack.c.l.b16 %v54
  %v311 = vunpack.c.h.b16 %v54
  %v312 = vunpack.c.l.b16 %v55
  %v313 = vunpack.c.h.b16 %v55
  %v314 = vunpack.c.l.b16 %v56
  %v315 = vunpack.c.h.b16 %v56
  %v316 = vunpack.c.l.b16 %v57
  %v317 = vunpack.c.h.b16 %v57
  %v318 = vunpack.c.l.b16 %v58
  %v319 = vunpack.c.h.b16 %v58
  %v320 = vunpack.c.l.b16 %v59
  %v321 = vunpack.c.h.b16 %v59
  %v322 = vunpack.c.l.b16 %v60
  %v323 = vunpack.c.h.b16 %v60
  %v324 = vunpack.c.l.b16 %v61
  %v325 = vunpack.c.h.b16 %v61
  %v326 = vunpack.c.l.b16 %v62
  %v327 = vunpack.c.h.b16 %v62
  %v328 = vunpack.c.l.b16 %v63
  %v329 = vunpack.c.h.b16 %v63
  %v330 = vunpack.c.l.b16 %v64
  %v331 = vunpack.c.h.b16 %v64
  %v332 = vunpack.c.l.b16 %v65
  %v333 = vunpack.c.h.b16 %v65
  %v334 = vunpack.c.l.b16 %v66
  %v335 = vunpack.c.h.b16 %v66
  %v336 = vunpack.c.l.b16 %v67
  %v337 = vunpack.c.h.b16 %v67
  %v338 = vunpack.c.l.b16 %v68
  %v339 = vunpack.c.h.b16 %v68
  %v340 = vunpack.c.l.b16 %v69
  %v341 = vunpack.c.h.b16 %v69
  %v342 = vunpack.c.l.b16 %v70
  %v343 = vunpack.c.h.b16 %v70
  %v344 = vunpack.c.l.b16 %v71
  %v345 = vunpack.c.h.b16 %v71
  %v346 = vunpack.c.l.b16 %v72
  %v347 = vunpack.c.h.b16 %v72
  %v348 = vunpack.c.l.b16 %v73
  %v349 = vunpack.c.h.b16 %v73
  %v350 = vunpack.c.l.b16 %v74
  %v351 = vunpack.c.h.b16 %v74
  %v352 = vunpack.c.l.b16 %v75
  %v353 = vunpack.c.h.b16 %v75
  %v354 = vunpack.c.l.b16 %v76
  %v355 = vunpack.c.h.b16 %v76
  %v356 = vunpack.c.l.b16 %v77
  %v357 = vunpack.c.h.b16 %v77
  %v358 = vunpack.c.l.b16 %v78
  %v359 = vunpack.c.h.b16 %v78
  %v360 = vunpack.c.l.b16 %v79
  %v361 = vunpack.c.h.b16 %v79
  %v362 = vunpack.c.l.b16 %v80
  %v363 = vunpack.c.h.b16 %v80
  %v364 = vunpack.c.l.b16 %v81
  %v365 = vunpack.c.h.b16 %v81
  %v366 = vunpack.c.l.b16 %v82
  %v367 = vunpack.c.h.b16 %v82
  %v368 = vunpack.c.l.b16 %v83
  %v369 = vunpack.c.h.b16 %v83
  %v370 = vunpack.c.l.b16 %v84
  %v371 = vunpack.c.h.b16 %v84
  %v372 = vunpack.c.l.b16 %v85
  %v373 = vunpack.c.h.b16 %v85
  %v374 = vunpack.c.l.b16 %v86
  %v375 = vunpack.c.h.b16 %v86
  %v376 = vunpack.c.l.b16 %v87
  %v377 = vunpack.c.h.b16 %v87
  %v378 = vunpack.c.l.b16 %v88
  %v379 = vunpack.c.h.b16 %v88
  %v380 = vunpack.c.l.b16 %v89
  %v381 = vunpack.c.h.b16 %v89
  %v382 = vunpack.c.l.b16 %v90
  %v383 = vunpack.c.h.b16 %v90
  %v384 = vunpack.c.l.b16 %v91
  %v385 = vunpack.c.h.b16 %v91
  %v386 = vunpack.c.l.b16 %v92
  %v387 = vunpack.c.h.b16 %v92
  %v388 = vunpack.c.l.b16 %v93
  %v389 = vunpack.c.h.b16 %v93
  %v390 = vunpack.c.l.b16 %v94
  %v391 = vunpack.c.h.b16 %v94
  %v392 = vunpack.c.l.b16 %v95
  %v393 = vunpack.c.h.b16 %v95
  %v394 = vunpack.c.l.b16 %v96
  %v395 = vunpack.c.h.b16 %v96
  %v396 = vunpack.c.l.b16 %v97
  %v397 = vunpack.c.h.b16 %v97
  %v398 = vunpack.c.l.b16 %v98
  %v399 = vunpack.c.h.b16 %v98
  %v400 = vunpack.c.l.b16 %v99
  %v401 = vunpack.c.h.b16 %v99
  %v402 = vunpack.c.l.b16 %v100
  %v403 = vunpack.c.h.b16 %v100
  %v404 = vunpack.c.l.b16 %v101
  %v405 = vunpack.c.h.b16 %v101
  %v406 = vunpack.c.l.b16 %v102
  %v407 = vunpack.c.h.b16 %v102
  %v408 = vunpack.c.l.b16 %v103
  %v409 = vunpack.c.h.b16 %v103
  %v410 = vunpack.c.l.b16 %v104
  %v411 = vunpack.c.h.b16 %v104
  %v412 = vunpack.c.l.b16 %v105
  %v413 = vunpack.c.h.b16 %v105
  %v414 = vunpack.c.l.b16 %v106
  %v415 = vunpack.c.h.b16 %v106
  %v416 = vunpack.c.l.b16 %v107
  %v417 = vunpack.c.h.b16 %v107
  %v418 = vunpack.c.l.b16 %v108
  %v419 = vunpack.c.h.b16 %v108
  %v420 = vunpack.c.l.b16 %v109
  %v421 = vunpack.c.h.b16 %v109
  %v422 = vunpack.c.l.b16 %v110
  %v423 = vunpack.c.h.b16 %v110
  %v424 = vunpack.c.l.b16 %v111
  %v425 = vunpack.c.h.b16 %v111
  %v426 = vunpack.c.l.b16 %v112
  %v427 = vunpack.c.h.b16 %v112
  %v428 = vunpack.c.l.b16 %v113
  %v429 = vunpack.c.h.b16 %v113
  %v430 = vunpack.c.l.b16 %v114
  %v431 = vunpack.c.h.b16 %v114
  %v432 = vunpack.c.l.b16 %v115
  %v433 = vunpack.c.h.b16 %v115
  %v434 = vunpack.c.l.b16 %v116
  %v435 = vunpack.c.h.b16 %v116
  %v436 = vpack.c.b16 %v240, %v236
  %v437 = vpack.c.b16 %v241, %v237
  %v438 = vpack.c.b16 %v242, %v238
  %v439 = vpack.c.b16 %v243, %v239
  %v440 = vpack.c.b16 %v248, %v244
  %v441 = vpack.c.b16 %v249, %v245
  %v442 = vpack.c.b16 %v250, %v246
  %v443 = vpack.c.b16 %v251, %v247
  %v444 = vpack.c.b16 %v256, %v252
  %v445 = vpack.c.b16 %v257, %v253
  %v446 = vpack.c.b16 %v258, %v254
  %v447 = vpack.c.b16 %v259, %v255
  %v448 = vpack.c.b16 %v264, %v260
  %v449 = vpack.c.b16 %v265, %v261
  %v450 = vpack.c.b16 %v266, %v262
  %v451 = vpack.c.b16 %v267, %v263
  %v452 = vpack.c.b16 %v272, %v268
  %v453 = vpack.c.b16 %v273, %v269
  %v454 = vpack.c.b16 %v274, %v270
  %v455 = vpack.c.b16 %v275, %v271
  %v456 = vpack.c.b16 %v280, %v276
  %v457 = vpack.c.b16 %v281, %v277
  %v458 = vpack.c.b16 %v282, %v278
  %v459 = vpack.c.b16 %v283, %v279
  %v460 = vpack.c.b16 %v288, %v284
  %v461 = vpack.c.b16 %v289, %v285
  %v462 = vpack.c.b16 %v290, %v286
  %v463 = vpack.c.b16 %v291, %v287
  %v464 = vpack.c.b16 %v296, %v292
  %v465 = vpack.c.b16 %v297, %v293
  %v466 = vpack.c.b16 %v298, %v294
  %v467 = vpack.c.b16 %v299, %v295
  %v468 = vpack.c.b16 %v304, %v300
  %v469 = vpack.c.b16 %v305, %v301
  %v470 = vpack.c.b16 %v306, %v302
  %v471 = vpack.c.b16 %v307, %v303
  %v472 = vpack.c.b16 %v312, %v308
  %v473 = vpack.c.b16 %v313, %v309
  %v474 = vpack.c.b16 %v314, %v310
  %v475 = vpack.c.b16 %v315, %v311
  %v476 = vpack.c.b16 %v320, %v316
  %v477 = vpack.c.b16 %v321, %v317
  %v478 = vpack.c.b16 %v322, %v318
  %v479 = vpack.c.b16 %v323, %v319
  %v480 = vpack.c.b16 %v328, %v324
  %v481 = vpack.c.b16 %v329, %v325
  %v482 = vpack.c.b16 %v330, %v326
  %v483 = vpack.c.b16 %v331, %v327
  %v484 = vpack.c.b16 %v336, %v332
  %v485 = vpack.c.b16 %v337, %v333
  %v486 = vpack.c.b16 %v338, %v334
  %v487 = vpack.c.b16 %v339, %v335
  %v488 = vpack.c.b16 %v344, %v340
  %v489 = vpack.c.b16 %v345, %v341
  %v490 = vpack.c.b16 %v346, %v342
  %v491 = vpack.c.b16 %v347, %v343
  %v492 = vpack.c.b16 %v352, %v348
  %v493 = vpack.c.b16 %v353, %v349
  %v494 = vpack.c.b16 %v354, %v350
  %v495 = vpack.c.b16 %v355, %v351
  %v496 = vpack.c.b16 %v360, %v356
  %v497 = vpack.c.b16 %v361, %v357
  %v498 = vpack.c.b16 %v362, %v358
  %v499 = vpack.c.b16 %v363, %v359
  %v500 = vpack.c.b16 %v368, %v364
  %v501 = vpack.c.b16 %v369, %v365
  %v502 = vpack.c.b16 %v370, %v366
  %v503 = vpack.c.b16 %v371, %v367
  %v504 = vpack.c.b16 %v376, %v372
  %v505 = vpack.c.b16 %v377, %v373
  %v506 = vpack.c.b16 %v378, %v374
  %v507 = vpack.c.b16 %v379, %v375
  %v508 = vpack.c.b16 %v384, %v380
  %v509 = vpack.c.b16 %v385, %v381
  %v510 = vpack.c.b16 %v386, %v382
  %v511 = vpack.c.b16 %v387, %v383
  %v512 = vpack.c.b16 %v392, %v388
  %v513 = vpack.c.b16 %v393, %v389
  %v514 = vpack.c.b16 %v394, %v390
  %v515 = vpack.c.b16 %v395, %v391
  %v516 = vpack.c.b16 %v400, %v396
  %v517 = vpack.c.b16 %v401, %v397
  %v518 = vpack.c.b16 %v402, %v398
  %v519 = vpack.c.b16 %v403, %v399
  %v520 = vpack.c.b16 %v408, %v404
  %v521 = vpack.c.b16 %v409, %v405
  %v522 = vpack.c.b16 %v410, %v406
  %v523 = vpack.c.b16 %v411, %v407
  %v524 = vpack.c.b16 %v416, %v412
  %v525 = vpack.c.b16 %v417, %v413
  %v526 = vpack.c.b16 %v418, %v414
  %v527 = vpack.c.b16 %v419, %v415
  %v528 = vpack.c.b16 %v424, %v420
  %v529 = vpack.c.b16 %v425, %v421
  %v530 = vpack.c.b16 %v426, %v422
  %v531 = vpack.c.b16 %v427, %v423
  %v532 = vpack.c.b16 %v432, %v428
  %v533 = vpack.c.b16 %v433, %v429
  %v534 = vpack.c.b16 %v434, %v430
  %v535 = vpack.c.b16 %v435, %v431
  %vm636 = vcmask 130048
  %v638 = vsel %vm636, %v132, 0
  %640 = vmatprep.subr.bf16.mxu0 %v437
  %641 = vmatpush1.bf16.msra.mxu0 %v436
  %642 = vmatprep.subr.bf16.mxu0 %v441
  %643 = vmatpush1.bf16.msra.mxu0 %v440
  %644 = vmatprep.subr.bf16.mxu0 %v445
  %645 = vmatpush1.bf16.msra.mxu0 %v444
  %646 = vmatprep.subr.bf16.mxu0 %v449
  %647 = vmatpush1.bf16.msra.mxu0 %v448
  %648 = vmatprep.subr.bf16.mxu0 %v453
  %649 = vmatpush1.bf16.msra.mxu0 %v452
  %650 = vmatprep.subr.bf16.mxu0 %v457
  %651 = vmatpush1.bf16.msra.mxu0 %v456
  %652 = vmatprep.subr.bf16.mxu0 %v461
  %653 = vmatpush1.bf16.msra.mxu0 %v460
  %654 = vmatprep.subr.bf16.mxu0 %v465
  %655 = vmatpush1.bf16.msra.mxu0 %v464
  %656 = vmatprep.subr.bf16.mxu0 %v469
  %657 = vmatpush1.bf16.msra.mxu0 %v468
  %658 = vmatprep.subr.bf16.mxu0 %v473
  %659 = vmatpush1.bf16.msra.mxu0 %v472
  %660 = vmatprep.subr.bf16.mxu0 %v477
  %661 = vmatpush1.bf16.msra.mxu0 %v476
  %662 = vmatprep.subr.bf16.mxu0 %v481
  %663 = vmatpush1.bf16.msra.mxu0 %v480
  %664 = vmatprep.subr.bf16.mxu0 %v485
  %665 = vmatpush1.bf16.msra.mxu0 %v484
  %666 = vmatprep.subr.bf16.mxu0 %v489
  %667 = vmatpush1.bf16.msra.mxu0 %v488
  %668 = vmatprep.subr.bf16.mxu0 %v493
  %669 = vmatpush1.bf16.msra.mxu0 %v492
  %670 = vmatprep.subr.bf16.mxu0 %v497
  %671 = vmatpush1.bf16.msra.mxu0 %v496
  %672 = vmatprep.mubr.bf16.mxu0 %v130
  %673 = vmatmul.mubr.bf16.gmra.mrb[0].mxu0 %v129
  %v674 = vpop.f32.mrb[0].mxu0
  %v675 = vadd.f32 %v121, %v674
  %v676 = vpop.f32.mrb[0].mxu0
  %v677 = vadd.f32 %v121, %v676
  %v678 = vpop.f32.mrb[0].mxu0
  %v679 = vpop.f32.mrb[0].mxu0
  %680 = vdwg.mxu0
  %681 = vmatprep.subr.bf16.mxu0 %v501
  %682 = vmatpush1.bf16.msra.mxu0 %v500
  %683 = vmatprep.subr.bf16.mxu0 %v505
  %684 = vmatpush1.bf16.msra.mxu0 %v504
  %685 = vmatprep.subr.bf16.mxu0 %v509
  %686 = vmatpush1.bf16.msra.mxu0 %v508
  %687 = vmatprep.subr.bf16.mxu0 %v513
  %688 = vmatpush1.bf16.msra.mxu0 %v512
  %689 = vmatprep.subr.bf16.mxu0 %v517
  %690 = vmatpush1.bf16.msra.mxu0 %v516
  %691 = vmatprep.subr.bf16.mxu0 %v521
  %692 = vmatpush1.bf16.msra.mxu0 %v520
  %693 = vmatprep.subr.bf16.mxu0 %v525
  %694 = vmatpush1.bf16.msra.mxu0 %v524
  %695 = vmatprep.subr.bf16.mxu0 %v529
  %696 = vmatpush1.bf16.msra.mxu0 %v528
  %697 = vmatprep.subr.bf16.mxu0 %v533
  %698 = vmatpush1.bf16.msra.mxu0 %v532
  %699 = vmatprep.subr.bf16.mxu0 0
  %700 = vmatpush1.bf16.msra.mxu0 0
  %701 = vmatprep.subr.bf16.mxu0 0
  %702 = vmatpush1.bf16.msra.mxu0 0
  %703 = vmatprep.subr.bf16.mxu0 0
  %704 = vmatpush1.bf16.msra.mxu0 0
  %705 = vmatprep.subr.bf16.mxu0 0
  %706 = vmatpush1.bf16.msra.mxu0 0
  %707 = vmatprep.subr.bf16.mxu0 0
  %708 = vmatpush1.bf16.msra.mxu0 0
  %709 = vmatprep.subr.bf16.mxu0 0
  %710 = vmatpush1.bf16.msra.mxu0 0
  %711 = vmatprep.subr.bf16.mxu0 0
  %712 = vmatpush1.bf16.msra.mxu0 0
  %713 = vmatprep.mubr.bf16.mxu0 %v638
  %714 = vmatmul.mubr.bf16.gmra.mrb[0].mxu0 %v131
  %v715 = vpop.f32.mrb[0].mxu0
  %v716 = vadd.f32 %v675, %v715
  %v717 = vpop.f32.mrb[0].mxu0
  %v718 = vadd.f32 %v677, %v717
  %v719 = vpop.f32.mrb[0].mxu0
  %v720 = vpop.f32.mrb[0].mxu0
  %721 = vdwg.mxu0
  %722 = vmatprep.subr.bf16.mxu0 %v439
  %723 = vmatpush1.bf16.msra.mxu0 %v438
  %724 = vmatprep.subr.bf16.mxu0 %v443
  %725 = vmatpush1.bf16.msra.mxu0 %v442
  %726 = vmatprep.subr.bf16.mxu0 %v447
  %727 = vmatpush1.bf16.msra.mxu0 %v446
  %728 = vmatprep.subr.bf16.mxu0 %v451
  %729 = vmatpush1.bf16.msra.mxu0 %v450
  %730 = vmatprep.subr.bf16.mxu0 %v455
  %731 = vmatpush1.bf16.msra.mxu0 %v454
  %732 = vmatprep.subr.bf16.mxu0 %v459
  %733 = vmatpush1.bf16.msra.mxu0 %v458
  %734 = vmatprep.subr.bf16.mxu0 %v463
  %735 = vmatpush1.bf16.msra.mxu0 %v462
  %736 = vmatprep.subr.bf16.mxu0 %v467
  %737 = vmatpush1.bf16.msra.mxu0 %v466
  %738 = vmatprep.subr.bf16.mxu0 %v471
  %739 = vmatpush1.bf16.msra.mxu0 %v470
  %740 = vmatprep.subr.bf16.mxu0 %v475
  %741 = vmatpush1.bf16.msra.mxu0 %v474
  %742 = vmatprep.subr.bf16.mxu0 %v479
  %743 = vmatpush1.bf16.msra.mxu0 %v478
  %744 = vmatprep.subr.bf16.mxu0 %v483
  %745 = vmatpush1.bf16.msra.mxu0 %v482
  %746 = vmatprep.subr.bf16.mxu0 %v487
  %747 = vmatpush1.bf16.msra.mxu0 %v486
  %748 = vmatprep.subr.bf16.mxu0 %v491
  %749 = vmatpush1.bf16.msra.mxu0 %v490
  %750 = vmatprep.subr.bf16.mxu0 %v495
  %751 = vmatpush1.bf16.msra.mxu0 %v494
  %752 = vmatprep.subr.bf16.mxu0 %v499
  %753 = vmatpush1.bf16.msra.mxu0 %v498
  %754 = vmatprep.mubr.bf16.mxu0 %v130
  %755 = vmatmul.mubr.bf16.gmra.mrb[0].mxu0 %v129
  %v756 = vpop.f32.mrb[0].mxu0
  %v757 = vadd.f32 %v121, %v756
  %v758 = vpop.f32.mrb[0].mxu0
  %v759 = vadd.f32 %v121, %v758
  %v760 = vpop.f32.mrb[0].mxu0
  %v761 = vpop.f32.mrb[0].mxu0
  %762 = vdwg.mxu0
  %763 = vmatprep.subr.bf16.mxu0 %v503
  %764 = vmatpush1.bf16.msra.mxu0 %v502
  %765 = vmatprep.subr.bf16.mxu0 %v507
  %766 = vmatpush1.bf16.msra.mxu0 %v506
  %767 = vmatprep.subr.bf16.mxu0 %v511
  %768 = vmatpush1.bf16.msra.mxu0 %v510
  %769 = vmatprep.subr.bf16.mxu0 %v515
  %770 = vmatpush1.bf16.msra.mxu0 %v514
  %771 = vmatprep.subr.bf16.mxu0 %v519
  %772 = vmatpush1.bf16.msra.mxu0 %v518
  %773 = vmatprep.subr.bf16.mxu0 %v523
  %774 = vmatpush1.bf16.msra.mxu0 %v522
  %775 = vmatprep.subr.bf16.mxu0 %v527
  %776 = vmatpush1.bf16.msra.mxu0 %v526
  %777 = vmatprep.subr.bf16.mxu0 %v531
  %778 = vmatpush1.bf16.msra.mxu0 %v530
  %779 = vmatprep.subr.bf16.mxu0 %v535
  %780 = vmatpush1.bf16.msra.mxu0 %v534
  %781 = vmatprep.subr.bf16.mxu0 0
  %782 = vmatpush1.bf16.msra.mxu0 0
  %783 = vmatprep.subr.bf16.mxu0 0
  %784 = vmatpush1.bf16.msra.mxu0 0
  %785 = vmatprep.subr.bf16.mxu0 0
  %786 = vmatpush1.bf16.msra.mxu0 0
  %787 = vmatprep.subr.bf16.mxu0 0
  %788 = vmatpush1.bf16.msra.mxu0 0
  %789 = vmatprep.subr.bf16.mxu0 0
  %790 = vmatpush1.bf16.msra.mxu0 0
  %791 = vmatprep.subr.bf16.mxu0 0
  %792 = vmatpush1.bf16.msra.mxu0 0
  %793 = vmatprep.subr.bf16.mxu0 0
  %794 = vmatpush1.bf16.msra.mxu0 0
  %795 = vmatprep.mubr.bf16.mxu0 %v638
  %796 = vmatmul.mubr.bf16.gmra.mrb[0].mxu0 %v131
  %v797 = vpop.f32.mrb[0].mxu0
  %v798 = vadd.f32 %v757, %v797
  %v799 = vpop.f32.mrb[0].mxu0
  %v800 = vadd.f32 %v759, %v799
  %v801 = vpop.f32.mrb[0].mxu0
  %v802 = vpop.f32.mrb[0].mxu0
  %803 = vdwg.mxu0
  %v804 = vmax.f32 %v716, 0.0
  %v805 = vmax.f32 %v718, 0.0
  %v806 = vmax.f32 %v798, 0.0
  %v807 = vmax.f32 %v800, 0.0
  %v808 = vpack.c.bf16 %v804, %v804
  %v809 = vpack.c.bf16 %v805, %v805
  %v810 = vpack.c.bf16 %v806, %v806
  %v811 = vpack.c.bf16 %v807, %v807
  %v816 = vunpack.c.l.b16 %v808
  %v817 = vunpack.c.l.b16 %v809
  %v818 = vunpack.c.l.b16 %v810
  %v819 = vunpack.c.l.b16 %v811
  %v820 = vpack.c.b16 %v817, %v816
  %v821 = vpack.c.b16 %v819, %v818
  %824 = vst [vmem:[%s3] sm:$0xff] %v820
  %vm825 = vcmask 1043456
  %vm826 = vcmask 539652
  %vm827 = vmor %vm826, %vm825
  %828 = vst.msk [vmem:[%s3 + $0x8] sm:$0xff] %vm827, %v821
  // Predicated region
  $region14: #{autoencoder_1_forward.8} parent=0 // pred_check
    _
  $region15: #{autoencoder_1_forward.8} parent=0 // pred_check_branch
    %830 = sbr.rel (0) target = $region17
  $region16: #{autoencoder_1_forward.8} parent=0 // pred_region
    _
  $region17: #{autoencoder_1_forward.8} parent=0 // pred_fallthru
    _
  // Predicated region
  $region18: #{autoencoder_1_forward.8} parent=0 // pred_check
    _
  $region19: #{autoencoder_1_forward.8} parent=0 // pred_check_branch
    %832 = sbr.rel (0) target = $region21
  $region20: #{autoencoder_1_forward.8} parent=0 // pred_region
    _
  $region21: #{autoencoder_1_forward.8} parent=0 // pred_fallthru
    _

// kernel: autoencoder_1_forward.9
$region0: #{autoencoder_1_forward.9}
  #allocation0 [shape = 'u32[]', space=smem, size = 0x4, offset = 0x4, fixed_abs, tag = 'smem constant byte address 0x4 - core index']
  #allocation1 [shape = 'u32[144,128]{1,0:T(1,128)}', space=vmem, size = 0x12000, scoped, tag = 'internal scratch']
  #allocation2 [shape = 'f32[1,1]{1,0:T(1,128)S(1)}', space=vmem, size = 0x200, scoped, tag = 'scoped memory for autoencoder_1_forward.9']
  %s0 = inlined_call_operand.vmem [shape: bf16[1,800], index: 0, kind: input, shape index: {}]
  %s1 = inlined_call_operand.vmem [shape: bf16[800,3072], index: 1, kind: input, shape index: {}]
  %s2 = inlined_call_operand.<no memory space> [shape: f32[1,1], index: 2, kind: input, shape index: {}]
  %s3 = inlined_call_operand.vmem [shape: f32[1,3072], index: 3, kind: output, shape index: {}]
  %s4 = sld [smem:[#allocation0]]
  $region68: #{autoencoder_1_forward.9} parent=0
    _
  %s6 = ssub.s32 1, %s4
  %s7 = scalar_select 0, %s6, %s4
  %v8 = vstv %s2
  %9 = vst [vmem:[#allocation2] sm:$0x1] %v8
  $region1: #{autoencoder_1_forward.9} parent=0
    #allocation3 [shape = 'u8[1638400]{0}', space=vmem, size = 0x190000, scoped, tag = 'input window, operand 1']
    loop: start=0, step=1, limit=8
    $region2: #{autoencoder_1_forward.9} parent=1 // loop_pre_header
      _
    $region3: #{autoencoder_1_forward.9} parent=1 // loop_header
      %s11 = sphi 0, %s15
      %p12 = scmp.ge.s32.totalorder %s11, 8
      %s19 = sphi 0, %s19
      %s21 = sphi 0, %s19
      %s22 = sphi 0, %s21
      %s36 = sphi 0, %s22
      %s42 = sphi 0, %s44
      %s45 = sphi 0, %s42
      %s46 = sphi 0, %s45
      %s62 = sphi 0, %s46
      %s66 = sphi 0, %s66
      %s68 = sphi 0, %s66
      %s69 = sphi 0, %s68
      %s83 = sphi 0, %s69
      %s89 = sphi 0, %s91
      %s92 = sphi 0, %s89
      %s93 = sphi 0, %s92
      %s109 = sphi 0, %s93
    $region4: #{autoencoder_1_forward.9} parent=1 // loop_header_branch
      %14 = sbr.rel (%p12) target = $region8
    $region5: #{autoencoder_1_forward.9} parent=1 // loop_body
      %s16 = ssub.s32 %s11, 1
      %s17 = ssub.s32 %s11, 2
      %s18 = sadd.s32 %s11, 1
      %s20 = sadd.s32 %s19, 1
      %p23 = scmp.eq.s32.totalorder %s11, 5
      %p24 = scmp.ne.s32.totalorder %s19, %s21
      %p25 = scmp.eq.s32.totalorder %s11, 0
      %p26 = por %p24, %p25
      %p27 = scmp.ne.s32.totalorder %s19, %s21
      %p28 = scmp.eq.s32.totalorder %s16, 5
      %p29 = por %p27, %p28
      %p30 = scmp.ne.s32.totalorder %s21, %s22
      %p31 = scmp.eq.s32.totalorder %s16, 0
      %p32 = por %p30, %p31
      %p33 = scmp.ne.s32.totalorder %s21, %s22
      %p34 = scmp.eq.s32.totalorder %s17, 5
      %p35 = por %p33, %p34
      %p37 = scmp.ne.s32.totalorder %s22, %s36
      %p38 = scmp.eq.s32.totalorder %s17, 0
      %p39 = por %p37, %p38
      %s40 = ssub.s32 %s11, %s18
      %p41 = scmp.eq.s32.totalorder %s40, 0
      %s43 = sadd.s32 %s42, 1
      %s44 = scalar_select %p41, %s42, %s43
      %p47 = pneg %p41
      %p48 = scmp.eq.s32.totalorder %s11, 5
      %p49 = por %p47, %p48
      %p50 = scmp.ne.s32.totalorder %s42, %s45
      %p51 = scmp.eq.s32.totalorder %s11, 0
      %p52 = por %p50, %p51
      %p53 = scmp.ne.s32.totalorder %s42, %s45
      %p54 = scmp.eq.s32.totalorder %s16, 5
      %p55 = por %p53, %p54
      %p56 = scmp.ne.s32.totalorder %s45, %s46
      %p57 = scmp.eq.s32.totalorder %s16, 0
      %p58 = por %p56, %p57
      %p59 = scmp.ne.s32.totalorder %s45, %s46
      %p60 = scmp.eq.s32.totalorder %s17, 5
      %p61 = por %p59, %p60
      %p63 = scmp.ne.s32.totalorder %s46, %s62
      %p64 = scmp.eq.s32.totalorder %s17, 0
      %p65 = por %p63, %p64
      %s67 = sadd.s32 %s66, 1
      %p70 = scmp.eq.s32.totalorder %s11, 5
      %p71 = scmp.ne.s32.totalorder %s66, %s68
      %p72 = scmp.eq.s32.totalorder %s11, 0
      %p73 = por %p71, %p72
      %p74 = scmp.ne.s32.totalorder %s66, %s68
      %p75 = scmp.eq.s32.totalorder %s16, 5
      %p76 = por %p74, %p75
      %p77 = scmp.ne.s32.totalorder %s68, %s69
      %p78 = scmp.eq.s32.totalorder %s16, 0
      %p79 = por %p77, %p78
      %p80 = scmp.ne.s32.totalorder %s68, %s69
      %p81 = scmp.eq.s32.totalorder %s17, 5
      %p82 = por %p80, %p81
      %p84 = scmp.ne.s32.totalorder %s69, %s83
      %p85 = scmp.eq.s32.totalorder %s17, 0
      %p86 = por %p84, %p85
      %s87 = ssub.s32 %s11, %s18
      %p88 = scmp.eq.s32.totalorder %s87, 0
      %s90 = sadd.s32 %s89, 1
      %s91 = scalar_select %p88, %s89, %s90
      %p94 = pneg %p88
      %p95 = scmp.eq.s32.totalorder %s11, 5
      %p96 = por %p94, %p95
      %p97 = scmp.ne.s32.totalorder %s89, %s92
      %p98 = scmp.eq.s32.totalorder %s11, 0
      %p99 = por %p97, %p98
      %p100 = scmp.ne.s32.totalorder %s89, %s92
      %p101 = scmp.eq.s32.totalorder %s16, 5
      %p102 = por %p100, %p101
      %p103 = scmp.ne.s32.totalorder %s92, %s93
      %p104 = scmp.eq.s32.totalorder %s16, 0
      %p105 = por %p103, %p104
      %p106 = scmp.ne.s32.totalorder %s92, %s93
      %p107 = scmp.eq.s32.totalorder %s17, 5
      %p108 = por %p106, %p107
      %p110 = scmp.ne.s32.totalorder %s93, %s109
      %p111 = scmp.eq.s32.totalorder %s17, 0
      %p112 = por %p110, %p111
      %p113 = scmp.le.s32.totalorder 1, %s11
      %p114 = scmp.lt.s32.totalorder %s11, 7
      %p115 = pnand %p113, %p114
      %p116 = pneg %p115
      // Predicated region
      $region9: #{autoencoder_1_forward.9} parent=5 // pred_check
        _
      $region10: #{autoencoder_1_forward.9} parent=5 // pred_check_branch
        %118 = sbr.rel (%p115) target = $region12
      $region11: #{autoencoder_1_forward.9} parent=5 // pred_region
        %s119 = ssub.s32 %s11, 1
        // Predicated region
        $region13: #{autoencoder_1_forward.9} parent=11 // pred_check
          %p120 = pneg %p32
        $region14: #{autoencoder_1_forward.9} parent=11 // pred_check_branch
          %122 = sbr.rel (%p120) target = $region16
        $region15: #{autoencoder_1_forward.9} parent=11 // pred_region
          _
        $region16: #{autoencoder_1_forward.9} parent=11 // pred_fallthru
          _
        // Predicated region
        $region17: #{autoencoder_1_forward.9} parent=11 // pred_check
          %p123 = pneg %p79
        $region18: #{autoencoder_1_forward.9} parent=11 // pred_check_branch
          %125 = sbr.rel (%p123) target = $region20
        $region19: #{autoencoder_1_forward.9} parent=11 // pred_region
          _
        $region20: #{autoencoder_1_forward.9} parent=11 // pred_fallthru
          _
      $region12: #{autoencoder_1_forward.9} parent=5 // pred_fallthru
        _
      %p126 = scmp.lt.s32.totalorder %s11, 6
      // Predicated region
      $region21: #{autoencoder_1_forward.9} parent=5 // pred_check
        %p127 = pneg %p126
      $region22: #{autoencoder_1_forward.9} parent=5 // pred_check_branch
        %129 = sbr.rel (%p127) target = $region24
      $region23: #{autoencoder_1_forward.9} parent=5 // pred_region
        // Predicated region
        $region25: #{autoencoder_1_forward.9} parent=23 // pred_check
          %p130 = pneg %p52
        $region26: #{autoencoder_1_forward.9} parent=23 // pred_check_branch
          %132 = sbr.rel (%p130) target = $region28
        $region27: #{autoencoder_1_forward.9} parent=23 // pred_region
          %s133 = sand.u32 %s42, 1
          %s134 = sand.u32 %s42, 1
          %s135 = smul.addr %s134, 1600
          %s136 = scalar_lea.vmem [#allocation3], %s135
          %s137 = smul.u32 4, %s11
          %s138 = smul.addr %s137, 4
          %s139 = scalar_lea.vmem %s1, %s138
          // Predicated region
          $region29: #{autoencoder_1_forward.9} parent=27 // pred_check
            _
          $region30: #{autoencoder_1_forward.9} parent=27 // pred_check_branch
            %141 = sbr.rel (0) target = $region32
          $region31: #{autoencoder_1_forward.9} parent=27 // pred_region
            // Predicated region
            $region33: #{autoencoder_1_forward.9} parent=31 // pred_check
              _
            $region34: #{autoencoder_1_forward.9} parent=31 // pred_check_branch
              %143 = sbr.rel (0) target = $region36
            $region35: #{autoencoder_1_forward.9} parent=31 // pred_region
              loop: start=0, step=1, limit=1
              $region37: #{autoencoder_1_forward.9} parent=35 // loop_pre_header
                _
              $region38: #{autoencoder_1_forward.9} parent=35 // loop_header
                %s145 = sphi 0, %s149
                %p146 = scmp.ge.s32.totalorder %s145, 1
                %s150 = sphi %s139, %s139
                %s151 = sphi %s136, %s136
              $region39: #{autoencoder_1_forward.9} parent=35 // loop_header_branch
                %148 = sbr.rel (%p146) target = $region43
              $region40: #{autoencoder_1_forward.9} parent=35 // loop_body
                %v152 = vld [vmem:[%s150] sm:$0xff]
                %153 = vst [vmem:[%s151] sm:$0xff] %v152
                %v154 = vld [vmem:[%s150 + $0x8] sm:$0xff]
                %155 = vst [vmem:[%s151 + $0x8] sm:$0xff] %v154
                %v156 = vld [vmem:[%s150 + $0x60] sm:$0xff]
                %157 = vst [vmem:[%s151 + $0x10] sm:$0xff] %v156
                %v158 = vld [vmem:[%s150 + $0x68] sm:$0xff]
                %159 = vst [vmem:[%s151 + $0x18] sm:$0xff] %v158
                %v160 = vld [vmem:[%s150 + $0xc0] sm:$0xff]
                %161 = vst [vmem:[%s151 + $0x20] sm:$0xff] %v160
                %v162 = vld [vmem:[%s150 + $0xc8] sm:$0xff]
                %163 = vst [vmem:[%s151 + $0x28] sm:$0xff] %v162
                %v164 = vld [vmem:[%s150 + $0x120] sm:$0xff]
                %165 = vst [vmem:[%s151 + $0x30] sm:$0xff] %v164
                %v166 = vld [vmem:[%s150 + $0x128] sm:$0xff]
                %167 = vst [vmem:[%s151 + $0x38] sm:$0xff] %v166
                %v168 = vld [vmem:[%s150 + $0x180] sm:$0xff]
                %169 = vst [vmem:[%s151 + $0x40] sm:$0xff] %v168
                %v170 = vld [vmem:[%s150 + $0x188] sm:$0xff]
                %171 = vst [vmem:[%s151 + $0x48] sm:$0xff] %v170
                %v172 = vld [vmem:[%s150 + $0x1e0] sm:$0xff]
                %173 = vst [vmem:[%s151 + $0x50] sm:$0xff] %v172
                %v174 = vld [vmem:[%s150 + $0x1e8] sm:$0xff]
                %175 = vst [vmem:[%s151 + $0x58] sm:$0xff] %v174
                %v176 = vld [vmem:[%s150 + $0x240] sm:$0xff]
                %177 = vst [vmem:[%s151 + $0x60] sm:$0xff] %v176
                %v178 = vld [vmem:[%s150 + $0x248] sm:$0xff]
                %179 = vst [vmem:[%s151 + $0x68] sm:$0xff] %v178
                %v180 = vld [vmem:[%s150 + $0x2a0] sm:$0xff]
                %181 = vst [vmem:[%s151 + $0x70] sm:$0xff] %v180
                %v182 = vld [vmem:[%s150 + $0x2a8] sm:$0xff]
                %183 = vst [vmem:[%s151 + $0x78] sm:$0xff] %v182
                %v184 = vld [vmem:[%s150 + $0x300] sm:$0xff]
                %185 = vst [vmem:[%s151 + $0x80] sm:$0xff] %v184
                %v186 = vld [vmem:[%s150 + $0x308] sm:$0xff]
                %187 = vst [vmem:[%s151 + $0x88] sm:$0xff] %v186
                %v188 = vld [vmem:[%s150 + $0x360] sm:$0xff]
                %189 = vst [vmem:[%s151 + $0x90] sm:$0xff] %v188
                %v190 = vld [vmem:[%s150 + $0x368] sm:$0xff]
                %191 = vst [vmem:[%s151 + $0x98] sm:$0xff] %v190
                %v192 = vld [vmem:[%s150 + $0x3c0] sm:$0xff]
                %193 = vst [vmem:[%s151 + $0xa0] sm:$0xff] %v192
                %v194 = vld [vmem:[%s150 + $0x3c8] sm:$0xff]
                %195 = vst [vmem:[%s151 + $0xa8] sm:$0xff] %v194
                %v196 = vld [vmem:[%s150 + $0x420] sm:$0xff]
                %197 = vst [vmem:[%s151 + $0xb0] sm:$0xff] %v196
                %v198 = vld [vmem:[%s150 + $0x428] sm:$0xff]
                %199 = vst [vmem:[%s151 + $0xb8] sm:$0xff] %v198
                %v200 = vld [vmem:[%s150 + $0x480] sm:$0xff]
                %201 = vst [vmem:[%s151 + $0xc0] sm:$0xff] %v200
                %v202 = vld [vmem:[%s150 + $0x488] sm:$0xff]
                %203 = vst [vmem:[%s151 + $0xc8] sm:$0xff] %v202
                %v204 = vld [vmem:[%s150 + $0x4e0] sm:$0xff]
                %205 = vst [vmem:[%s151 + $0xd0] sm:$0xff] %v204
                %v206 = vld [vmem:[%s150 + $0x4e8] sm:$0xff]
                %207 = vst [vmem:[%s151 + $0xd8] sm:$0xff] %v206
                %v208 = vld [vmem:[%s150 + $0x540] sm:$0xff]
                %209 = vst [vmem:[%s151 + $0xe0] sm:$0xff] %v208
                %v210 = vld [vmem:[%s150 + $0x548] sm:$0xff]
                %211 = vst [vmem:[%s151 + $0xe8] sm:$0xff] %v210
                %v212 = vld [vmem:[%s150 + $0x5a0] sm:$0xff]
                %213 = vst [vmem:[%s151 + $0xf0] sm:$0xff] %v212
                %v214 = vld [vmem:[%s150 + $0x5a8] sm:$0xff]
                %215 = vst [vmem:[%s151 + $0xf8] sm:$0xff] %v214
                %v216 = vld [vmem:[%s150 + $0x600] sm:$0xff]
                %217 = vst [vmem:[%s151 + $0x100] sm:$0xff] %v216
                %v218 = vld [vmem:[%s150 + $0x608] sm:$0xff]
                %219 = vst [vmem:[%s151 + $0x108] sm:$0xff] %v218
                %v220 = vld [vmem:[%s150 + $0x660] sm:$0xff]
                %221 = vst [vmem:[%s151 + $0x110] sm:$0xff] %v220
                %v222 = vld [vmem:[%s150 + $0x668] sm:$0xff]
                %223 = vst [vmem:[%s151 + $0x118] sm:$0xff] %v222
                %v224 = vld [vmem:[%s150 + $0x6c0] sm:$0xff]
                %225 = vst [vmem:[%s151 + $0x120] sm:$0xff] %v224
                %v226 = vld [vmem:[%s150 + $0x6c8] sm:$0xff]
                %227 = vst [vmem:[%s151 + $0x128] sm:$0xff] %v226
                %v228 = vld [vmem:[%s150 + $0x720] sm:$0xff]
                %229 = vst [vmem:[%s151 + $0x130] sm:$0xff] %v228
                %v230 = vld [vmem:[%s150 + $0x728] sm:$0xff]
                %231 = vst [vmem:[%s151 + $0x138] sm:$0xff] %v230
                %v232 = vld [vmem:[%s150 + $0x780] sm:$0xff]
                %233 = vst [vmem:[%s151 + $0x140] sm:$0xff] %v232
                %v234 = vld [vmem:[%s150 + $0x788] sm:$0xff]
                %235 = vst [vmem:[%s151 + $0x148] sm:$0xff] %v234
                %v236 = vld [vmem:[%s150 + $0x7e0] sm:$0xff]
                %237 = vst [vmem:[%s151 + $0x150] sm:$0xff] %v236
                %v238 = vld [vmem:[%s150 + $0x7e8] sm:$0xff]
                %239 = vst [vmem:[%s151 + $0x158] sm:$0xff] %v238
                %v240 = vld [vmem:[%s150 + $0x840] sm:$0xff]
                %241 = vst [vmem:[%s151 + $0x160] sm:$0xff] %v240
                %v242 = vld [vmem:[%s150 + $0x848] sm:$0xff]
                %243 = vst [vmem:[%s151 + $0x168] sm:$0xff] %v242
                %v244 = vld [vmem:[%s150 + $0x8a0] sm:$0xff]
                %245 = vst [vmem:[%s151 + $0x170] sm:$0xff] %v244
                %v246 = vld [vmem:[%s150 + $0x8a8] sm:$0xff]
                %247 = vst [vmem:[%s151 + $0x178] sm:$0xff] %v246
                %v248 = vld [vmem:[%s150 + $0x900] sm:$0xff]
                %249 = vst [vmem:[%s151 + $0x180] sm:$0xff] %v248
                %v250 = vld [vmem:[%s150 + $0x908] sm:$0xff]
                %251 = vst [vmem:[%s151 + $0x188] sm:$0xff] %v250
                %v252 = vld [vmem:[%s150 + $0x960] sm:$0xff]
                %253 = vst [vmem:[%s151 + $0x190] sm:$0xff] %v252
                %v254 = vld [vmem:[%s150 + $0x968] sm:$0xff]
                %255 = vst [vmem:[%s151 + $0x198] sm:$0xff] %v254
                %v256 = vld [vmem:[%s150 + $0x9c0] sm:$0xff]
                %257 = vst [vmem:[%s151 + $0x1a0] sm:$0xff] %v256
                %v258 = vld [vmem:[%s150 + $0x9c8] sm:$0xff]
                %259 = vst [vmem:[%s151 + $0x1a8] sm:$0xff] %v258
                %v260 = vld [vmem:[%s150 + $0xa20] sm:$0xff]
                %261 = vst [vmem:[%s151 + $0x1b0] sm:$0xff] %v260
                %v262 = vld [vmem:[%s150 + $0xa28] sm:$0xff]
                %263 = vst [vmem:[%s151 + $0x1b8] sm:$0xff] %v262
                %v264 = vld [vmem:[%s150 + $0xa80] sm:$0xff]
                %265 = vst [vmem:[%s151 + $0x1c0] sm:$0xff] %v264
                %v266 = vld [vmem:[%s150 + $0xa88] sm:$0xff]
                %267 = vst [vmem:[%s151 + $0x1c8] sm:$0xff] %v266
                %v268 = vld [vmem:[%s150 + $0xae0] sm:$0xff]
                %269 = vst [vmem:[%s151 + $0x1d0] sm:$0xff] %v268
                %v270 = vld [vmem:[%s150 + $0xae8] sm:$0xff]
                %271 = vst [vmem:[%s151 + $0x1d8] sm:$0xff] %v270
                %v272 = vld [vmem:[%s150 + $0xb40] sm:$0xff]
                %273 = vst [vmem:[%s151 + $0x1e0] sm:$0xff] %v272
                %v274 = vld [vmem:[%s150 + $0xb48] sm:$0xff]
                %275 = vst [vmem:[%s151 + $0x1e8] sm:$0xff] %v274
                %v276 = vld [vmem:[%s150 + $0xba0] sm:$0xff]
                %277 = vst [vmem:[%s151 + $0x1f0] sm:$0xff] %v276
                %v278 = vld [vmem:[%s150 + $0xba8] sm:$0xff]
                %279 = vst [vmem:[%s151 + $0x1f8] sm:$0xff] %v278
                %v280 = vld [vmem:[%s150 + $0xc00] sm:$0xff]
                %281 = vst [vmem:[%s151 + $0x200] sm:$0xff] %v280
                %v282 = vld [vmem:[%s150 + $0xc08] sm:$0xff]
                %283 = vst [vmem:[%s151 + $0x208] sm:$0xff] %v282
                %v284 = vld [vmem:[%s150 + $0xc60] sm:$0xff]
                %285 = vst [vmem:[%s151 + $0x210] sm:$0xff] %v284
                %v286 = vld [vmem:[%s150 + $0xc68] sm:$0xff]
                %287 = vst [vmem:[%s151 + $0x218] sm:$0xff] %v286
                %v288 = vld [vmem:[%s150 + $0xcc0] sm:$0xff]
                %289 = vst [vmem:[%s151 + $0x220] sm:$0xff] %v288
                %v290 = vld [vmem:[%s150 + $0xcc8] sm:$0xff]
                %291 = vst [vmem:[%s151 + $0x228] sm:$0xff] %v290
                %v292 = vld [vmem:[%s150 + $0xd20] sm:$0xff]
                %293 = vst [vmem:[%s151 + $0x230] sm:$0xff] %v292
                %v294 = vld [vmem:[%s150 + $0xd28] sm:$0xff]
                %295 = vst [vmem:[%s151 + $0x238] sm:$0xff] %v294
                %v296 = vld [vmem:[%s150 + $0xd80] sm:$0xff]
                %297 = vst [vmem:[%s151 + $0x240] sm:$0xff] %v296
                %v298 = vld [vmem:[%s150 + $0xd88] sm:$0xff]
                %299 = vst [vmem:[%s151 + $0x248] sm:$0xff] %v298
                %v300 = vld [vmem:[%s150 + $0xde0] sm:$0xff]
                %301 = vst [vmem:[%s151 + $0x250] sm:$0xff] %v300
                %v302 = vld [vmem:[%s150 + $0xde8] sm:$0xff]
                %303 = vst [vmem:[%s151 + $0x258] sm:$0xff] %v302
                %v304 = vld [vmem:[%s150 + $0xe40] sm:$0xff]
                %305 = vst [vmem:[%s151 + $0x260] sm:$0xff] %v304
                %v306 = vld [vmem:[%s150 + $0xe48] sm:$0xff]
                %307 = vst [vmem:[%s151 + $0x268] sm:$0xff] %v306
                %v308 = vld [vmem:[%s150 + $0xea0] sm:$0xff]
                %309 = vst [vmem:[%s151 + $0x270] sm:$0xff] %v308
                %v310 = vld [vmem:[%s150 + $0xea8] sm:$0xff]
                %311 = vst [vmem:[%s151 + $0x278] sm:$0xff] %v310
                %v312 = vld [vmem:[%s150 + $0xf00] sm:$0xff]
                %313 = vst [vmem:[%s151 + $0x280] sm:$0xff] %v312
                %v314 = vld [vmem:[%s150 + $0xf08] sm:$0xff]
                %315 = vst [vmem:[%s151 + $0x288] sm:$0xff] %v314
                %v316 = vld [vmem:[%s150 + $0xf60] sm:$0xff]
                %317 = vst [vmem:[%s151 + $0x290] sm:$0xff] %v316
                %v318 = vld [vmem:[%s150 + $0xf68] sm:$0xff]
                %319 = vst [vmem:[%s151 + $0x298] sm:$0xff] %v318
                %v320 = vld [vmem:[%s150 + $0xfc0] sm:$0xff]
                %321 = vst [vmem:[%s151 + $0x2a0] sm:$0xff] %v320
                %v322 = vld [vmem:[%s150 + $0xfc8] sm:$0xff]
                %323 = vst [vmem:[%s151 + $0x2a8] sm:$0xff] %v322
                %v324 = vld [vmem:[%s150 + $0x1020] sm:$0xff]
                %325 = vst [vmem:[%s151 + $0x2b0] sm:$0xff] %v324
                %v326 = vld [vmem:[%s150 + $0x1028] sm:$0xff]
                %327 = vst [vmem:[%s151 + $0x2b8] sm:$0xff] %v326
                %v328 = vld [vmem:[%s150 + $0x1080] sm:$0xff]
                %329 = vst [vmem:[%s151 + $0x2c0] sm:$0xff] %v328
                %v330 = vld [vmem:[%s150 + $0x1088] sm:$0xff]
                %331 = vst [vmem:[%s151 + $0x2c8] sm:$0xff] %v330
                %v332 = vld [vmem:[%s150 + $0x10e0] sm:$0xff]
                %333 = vst [vmem:[%s151 + $0x2d0] sm:$0xff] %v332
                %v334 = vld [vmem:[%s150 + $0x10e8] sm:$0xff]
                %335 = vst [vmem:[%s151 + $0x2d8] sm:$0xff] %v334
                %v336 = vld [vmem:[%s150 + $0x1140] sm:$0xff]
                %337 = vst [vmem:[%s151 + $0x2e0] sm:$0xff] %v336
                %v338 = vld [vmem:[%s150 + $0x1148] sm:$0xff]
                %339 = vst [vmem:[%s151 + $0x2e8] sm:$0xff] %v338
                %v340 = vld [vmem:[%s150 + $0x11a0] sm:$0xff]
                %341 = vst [vmem:[%s151 + $0x2f0] sm:$0xff] %v340
                %v342 = vld [vmem:[%s150 + $0x11a8] sm:$0xff]
                %343 = vst [vmem:[%s151 + $0x2f8] sm:$0xff] %v342
                %v344 = vld [vmem:[%s150 + $0x1200] sm:$0xff]
                %345 = vst [vmem:[%s151 + $0x300] sm:$0xff] %v344
                %v346 = vld [vmem:[%s150 + $0x1208] sm:$0xff]
                %347 = vst [vmem:[%s151 + $0x308] sm:$0xff] %v346
                %v348 = vld [vmem:[%s150 + $0x1260] sm:$0xff]
                %349 = vst [vmem:[%s151 + $0x310] sm:$0xff] %v348
                %v350 = vld [vmem:[%s150 + $0x1268] sm:$0xff]
                %351 = vst [vmem:[%s151 + $0x318] sm:$0xff] %v350
                %v352 = vld [vmem:[%s150 + $0x12c0] sm:$0xff]
                %353 = vst [vmem:[%s151 + $0x320] sm:$0xff] %v352
                %v354 = vld [vmem:[%s150 + $0x12c8] sm:$0xff]
                %355 = vst [vmem:[%s151 + $0x328] sm:$0xff] %v354
                %v356 = vld [vmem:[%s150 + $0x1320] sm:$0xff]
                %357 = vst [vmem:[%s151 + $0x330] sm:$0xff] %v356
                %v358 = vld [vmem:[%s150 + $0x1328] sm:$0xff]
                %359 = vst [vmem:[%s151 + $0x338] sm:$0xff] %v358
                %v360 = vld [vmem:[%s150 + $0x1380] sm:$0xff]
                %361 = vst [vmem:[%s151 + $0x340] sm:$0xff] %v360
                %v362 = vld [vmem:[%s150 + $0x1388] sm:$0xff]
                %363 = vst [vmem:[%s151 + $0x348] sm:$0xff] %v362
                %v364 = vld [vmem:[%s150 + $0x13e0] sm:$0xff]
                %365 = vst [vmem:[%s151 + $0x350] sm:$0xff] %v364
                %v366 = vld [vmem:[%s150 + $0x13e8] sm:$0xff]
                %367 = vst [vmem:[%s151 + $0x358] sm:$0xff] %v366
                %v368 = vld [vmem:[%s150 + $0x1440] sm:$0xff]
                %369 = vst [vmem:[%s151 + $0x360] sm:$0xff] %v368
                %v370 = vld [vmem:[%s150 + $0x1448] sm:$0xff]
                %371 = vst [vmem:[%s151 + $0x368] sm:$0xff] %v370
                %v372 = vld [vmem:[%s150 + $0x14a0] sm:$0xff]
                %373 = vst [vmem:[%s151 + $0x370] sm:$0xff] %v372
                %v374 = vld [vmem:[%s150 + $0x14a8] sm:$0xff]
                %375 = vst [vmem:[%s151 + $0x378] sm:$0xff] %v374
                %v376 = vld [vmem:[%s150 + $0x1500] sm:$0xff]
                %377 = vst [vmem:[%s151 + $0x380] sm:$0xff] %v376
                %v378 = vld [vmem:[%s150 + $0x1508] sm:$0xff]
                %379 = vst [vmem:[%s151 + $0x388] sm:$0xff] %v378
                %v380 = vld [vmem:[%s150 + $0x1560] sm:$0xff]
                %381 = vst [vmem:[%s151 + $0x390] sm:$0xff] %v380
                %v382 = vld [vmem:[%s150 + $0x1568] sm:$0xff]
                %383 = vst [vmem:[%s151 + $0x398] sm:$0xff] %v382
                %v384 = vld [vmem:[%s150 + $0x15c0] sm:$0xff]
                %385 = vst [vmem:[%s151 + $0x3a0] sm:$0xff] %v384
                %v386 = vld [vmem:[%s150 + $0x15c8] sm:$0xff]
                %387 = vst [vmem:[%s151 + $0x3a8] sm:$0xff] %v386
                %v388 = vld [vmem:[%s150 + $0x1620] sm:$0xff]
                %389 = vst [vmem:[%s151 + $0x3b0] sm:$0xff] %v388
                %v390 = vld [vmem:[%s150 + $0x1628] sm:$0xff]
                %391 = vst [vmem:[%s151 + $0x3b8] sm:$0xff] %v390
                %v392 = vld [vmem:[%s150 + $0x1680] sm:$0xff]
                %393 = vst [vmem:[%s151 + $0x3c0] sm:$0xff] %v392
                %v394 = vld [vmem:[%s150 + $0x1688] sm:$0xff]
                %395 = vst [vmem:[%s151 + $0x3c8] sm:$0xff] %v394
                %v396 = vld [vmem:[%s150 + $0x16e0] sm:$0xff]
                %397 = vst [vmem:[%s151 + $0x3d0] sm:$0xff] %v396
                %v398 = vld [vmem:[%s150 + $0x16e8] sm:$0xff]
                %399 = vst [vmem:[%s151 + $0x3d8] sm:$0xff] %v398
                %v400 = vld [vmem:[%s150 + $0x1740] sm:$0xff]
                %401 = vst [vmem:[%s151 + $0x3e0] sm:$0xff] %v400
                %v402 = vld [vmem:[%s150 + $0x1748] sm:$0xff]
                %403 = vst [vmem:[%s151 + $0x3e8] sm:$0xff] %v402
                %v404 = vld [vmem:[%s150 + $0x17a0] sm:$0xff]
                %405 = vst [vmem:[%s151 + $0x3f0] sm:$0xff] %v404
                %v406 = vld [vmem:[%s150 + $0x17a8] sm:$0xff]
                %407 = vst [vmem:[%s151 + $0x3f8] sm:$0xff] %v406
                %v408 = vld [vmem:[%s150 + $0x1800] sm:$0xff]
                %409 = vst [vmem:[%s151 + $0x400] sm:$0xff] %v408
                %v410 = vld [vmem:[%s150 + $0x1808] sm:$0xff]
                %411 = vst [vmem:[%s151 + $0x408] sm:$0xff] %v410
                %v412 = vld [vmem:[%s150 + $0x1860] sm:$0xff]
                %413 = vst [vmem:[%s151 + $0x410] sm:$0xff] %v412
                %v414 = vld [vmem:[%s150 + $0x1868] sm:$0xff]
                %415 = vst [vmem:[%s151 + $0x418] sm:$0xff] %v414
                %v416 = vld [vmem:[%s150 + $0x18c0] sm:$0xff]
                %417 = vst [vmem:[%s151 + $0x420] sm:$0xff] %v416
                %v418 = vld [vmem:[%s150 + $0x18c8] sm:$0xff]
                %419 = vst [vmem:[%s151 + $0x428] sm:$0xff] %v418
                %v420 = vld [vmem:[%s150 + $0x1920] sm:$0xff]
                %421 = vst [vmem:[%s151 + $0x430] sm:$0xff] %v420
                %v422 = vld [vmem:[%s150 + $0x1928] sm:$0xff]
                %423 = vst [vmem:[%s151 + $0x438] sm:$0xff] %v422
                %v424 = vld [vmem:[%s150 + $0x1980] sm:$0xff]
                %425 = vst [vmem:[%s151 + $0x440] sm:$0xff] %v424
                %v426 = vld [vmem:[%s150 + $0x1988] sm:$0xff]
                %427 = vst [vmem:[%s151 + $0x448] sm:$0xff] %v426
                %v428 = vld [vmem:[%s150 + $0x19e0] sm:$0xff]
                %429 = vst [vmem:[%s151 + $0x450] sm:$0xff] %v428
                %v430 = vld [vmem:[%s150 + $0x19e8] sm:$0xff]
                %431 = vst [vmem:[%s151 + $0x458] sm:$0xff] %v430
                %v432 = vld [vmem:[%s150 + $0x1a40] sm:$0xff]
                %433 = vst [vmem:[%s151 + $0x460] sm:$0xff] %v432
                %v434 = vld [vmem:[%s150 + $0x1a48] sm:$0xff]
                %435 = vst [vmem:[%s151 + $0x468] sm:$0xff] %v434
                %v436 = vld [vmem:[%s150 + $0x1aa0] sm:$0xff]
                %437 = vst [vmem:[%s151 + $0x470] sm:$0xff] %v436
                %v438 = vld [vmem:[%s150 + $0x1aa8] sm:$0xff]
                %439 = vst [vmem:[%s151 + $0x478] sm:$0xff] %v438
                %v440 = vld [vmem:[%s150 + $0x1b00] sm:$0xff]
                %441 = vst [vmem:[%s151 + $0x480] sm:$0xff] %v440
                %v442 = vld [vmem:[%s150 + $0x1b08] sm:$0xff]
                %443 = vst [vmem:[%s151 + $0x488] sm:$0xff] %v442
                %v444 = vld [vmem:[%s150 + $0x1b60] sm:$0xff]
                %445 = vst [vmem:[%s151 + $0x490] sm:$0xff] %v444
                %v446 = vld [vmem:[%s150 + $0x1b68] sm:$0xff]
                %447 = vst [vmem:[%s151 + $0x498] sm:$0xff] %v446
                %v448 = vld [vmem:[%s150 + $0x1bc0] sm:$0xff]
                %449 = vst [vmem:[%s151 + $0x4a0] sm:$0xff] %v448
                %v450 = vld [vmem:[%s150 + $0x1bc8] sm:$0xff]
                %451 = vst [vmem:[%s151 + $0x4a8] sm:$0xff] %v450
                %v452 = vld [vmem:[%s150 + $0x1c20] sm:$0xff]
                %453 = vst [vmem:[%s151 + $0x4b0] sm:$0xff] %v452
                %v454 = vld [vmem:[%s150 + $0x1c28] sm:$0xff]
                %455 = vst [vmem:[%s151 + $0x4b8] sm:$0xff] %v454
                %v456 = vld [vmem:[%s150 + $0x1c80] sm:$0xff]
                %457 = vst [vmem:[%s151 + $0x4c0] sm:$0xff] %v456
                %v458 = vld [vmem:[%s150 + $0x1c88] sm:$0xff]
                %459 = vst [vmem:[%s151 + $0x4c8] sm:$0xff] %v458
                %v460 = vld [vmem:[%s150 + $0x1ce0] sm:$0xff]
                %461 = vst [vmem:[%s151 + $0x4d0] sm:$0xff] %v460
                %v462 = vld [vmem:[%s150 + $0x1ce8] sm:$0xff]
                %463 = vst [vmem:[%s151 + $0x4d8] sm:$0xff] %v462
                %v464 = vld [vmem:[%s150 + $0x1d40] sm:$0xff]
                %465 = vst [vmem:[%s151 + $0x4e0] sm:$0xff] %v464
                %v466 = vld [vmem:[%s150 + $0x1d48] sm:$0xff]
                %467 = vst [vmem:[%s151 + $0x4e8] sm:$0xff] %v466
                %v468 = vld [vmem:[%s150 + $0x1da0] sm:$0xff]
                %469 = vst [vmem:[%s151 + $0x4f0] sm:$0xff] %v468
                %v470 = vld [vmem:[%s150 + $0x1da8] sm:$0xff]
                %471 = vst [vmem:[%s151 + $0x4f8] sm:$0xff] %v470
                %v472 = vld [vmem:[%s150 + $0x1e00] sm:$0xff]
                %473 = vst [vmem:[%s151 + $0x500] sm:$0xff] %v472
                %v474 = vld [vmem:[%s150 + $0x1e08] sm:$0xff]
                %475 = vst [vmem:[%s151 + $0x508] sm:$0xff] %v474
                %v476 = vld [vmem:[%s150 + $0x1e60] sm:$0xff]
                %477 = vst [vmem:[%s151 + $0x510] sm:$0xff] %v476
                %v478 = vld [vmem:[%s150 + $0x1e68] sm:$0xff]
                %479 = vst [vmem:[%s151 + $0x518] sm:$0xff] %v478
                %v480 = vld [vmem:[%s150 + $0x1ec0] sm:$0xff]
                %481 = vst [vmem:[%s151 + $0x520] sm:$0xff] %v480
                %v482 = vld [vmem:[%s150 + $0x1ec8] sm:$0xff]
                %483 = vst [vmem:[%s151 + $0x528] sm:$0xff] %v482
                %v484 = vld [vmem:[%s150 + $0x1f20] sm:$0xff]
                %485 = vst [vmem:[%s151 + $0x530] sm:$0xff] %v484
                %v486 = vld [vmem:[%s150 + $0x1f28] sm:$0xff]
                %487 = vst [vmem:[%s151 + $0x538] sm:$0xff] %v486
                %v488 = vld [vmem:[%s150 + $0x1f80] sm:$0xff]
                %489 = vst [vmem:[%s151 + $0x540] sm:$0xff] %v488
                %v490 = vld [vmem:[%s150 + $0x1f88] sm:$0xff]
                %491 = vst [vmem:[%s151 + $0x548] sm:$0xff] %v490
                %v492 = vld [vmem:[%s150 + $0x1fe0] sm:$0xff]
                %493 = vst [vmem:[%s151 + $0x550] sm:$0xff] %v492
                %v494 = vld [vmem:[%s150 + $0x1fe8] sm:$0xff]
                %495 = vst [vmem:[%s151 + $0x558] sm:$0xff] %v494
                %v496 = vld [vmem:[%s150 + $0x2040] sm:$0xff]
                %497 = vst [vmem:[%s151 + $0x560] sm:$0xff] %v496
                %v498 = vld [vmem:[%s150 + $0x2048] sm:$0xff]
                %499 = vst [vmem:[%s151 + $0x568] sm:$0xff] %v498
                %v500 = vld [vmem:[%s150 + $0x20a0] sm:$0xff]
                %501 = vst [vmem:[%s151 + $0x570] sm:$0xff] %v500
                %v502 = vld [vmem:[%s150 + $0x20a8] sm:$0xff]
                %503 = vst [vmem:[%s151 + $0x578] sm:$0xff] %v502
                %v504 = vld [vmem:[%s150 + $0x2100] sm:$0xff]
                %505 = vst [vmem:[%s151 + $0x580] sm:$0xff] %v504
                %v506 = vld [vmem:[%s150 + $0x2108] sm:$0xff]
                %507 = vst [vmem:[%s151 + $0x588] sm:$0xff] %v506
                %v508 = vld [vmem:[%s150 + $0x2160] sm:$0xff]
                %509 = vst [vmem:[%s151 + $0x590] sm:$0xff] %v508
                %v510 = vld [vmem:[%s150 + $0x2168] sm:$0xff]
                %511 = vst [vmem:[%s151 + $0x598] sm:$0xff] %v510
                %v512 = vld [vmem:[%s150 + $0x21c0] sm:$0xff]
                %513 = vst [vmem:[%s151 + $0x5a0] sm:$0xff] %v512
                %v514 = vld [vmem:[%s150 + $0x21c8] sm:$0xff]
                %515 = vst [vmem:[%s151 + $0x5a8] sm:$0xff] %v514
                %v516 = vld [vmem:[%s150 + $0x2220] sm:$0xff]
                %517 = vst [vmem:[%s151 + $0x5b0] sm:$0xff] %v516
                %v518 = vld [vmem:[%s150 + $0x2228] sm:$0xff]
                %519 = vst [vmem:[%s151 + $0x5b8] sm:$0xff] %v518
                %v520 = vld [vmem:[%s150 + $0x2280] sm:$0xff]
                %521 = vst [vmem:[%s151 + $0x5c0] sm:$0xff] %v520
                %v522 = vld [vmem:[%s150 + $0x2288] sm:$0xff]
                %523 = vst [vmem:[%s151 + $0x5c8] sm:$0xff] %v522
                %v524 = vld [vmem:[%s150 + $0x22e0] sm:$0xff]
                %525 = vst [vmem:[%s151 + $0x5d0] sm:$0xff] %v524
                %v526 = vld [vmem:[%s150 + $0x22e8] sm:$0xff]
                %527 = vst [vmem:[%s151 + $0x5d8] sm:$0xff] %v526
                %v528 = vld [vmem:[%s150 + $0x2340] sm:$0xff]
                %529 = vst [vmem:[%s151 + $0x5e0] sm:$0xff] %v528
                %v530 = vld [vmem:[%s150 + $0x2348] sm:$0xff]
                %531 = vst [vmem:[%s151 + $0x5e8] sm:$0xff] %v530
                %v532 = vld [vmem:[%s150 + $0x23a0] sm:$0xff]
                %533 = vst [vmem:[%s151 + $0x5f0] sm:$0xff] %v532
                %v534 = vld [vmem:[%s150 + $0x23a8] sm:$0xff]
                %535 = vst [vmem:[%s151 + $0x5f8] sm:$0xff] %v534
                %v536 = vld [vmem:[%s150 + $0x2400] sm:$0xff]
                %537 = vst [vmem:[%s151 + $0x600] sm:$0xff] %v536
                %v538 = vld [vmem:[%s150 + $0x2408] sm:$0xff]
                %539 = vst [vmem:[%s151 + $0x608] sm:$0xff] %v538
                %v540 = vld [vmem:[%s150 + $0x2460] sm:$0xff]
                %541 = vst [vmem:[%s151 + $0x610] sm:$0xff] %v540
                %v542 = vld [vmem:[%s150 + $0x2468] sm:$0xff]
                %543 = vst [vmem:[%s151 + $0x618] sm:$0xff] %v542
                %v544 = vld [vmem:[%s150 + $0x24c0] sm:$0xff]
                %545 = vst [vmem:[%s151 + $0x620] sm:$0xff] %v544
                %v546 = vld [vmem:[%s150 + $0x24c8] sm:$0xff]
                %547 = vst [vmem:[%s151 + $0x628] sm:$0xff] %v546
                %v548 = vld [vmem:[%s150 + $0x2520] sm:$0xff]
                %549 = vst [vmem:[%s151 + $0x630] sm:$0xff] %v548
                %v550 = vld [vmem:[%s150 + $0x2528] sm:$0xff]
                %551 = vst [vmem:[%s151 + $0x638] sm:$0xff] %v550
              $region41: #{autoencoder_1_forward.9} parent=35 // loop_footer
                %s149 = sadd.s32 1, %s145
              $region42: #{autoencoder_1_forward.9} parent=35 // loop_footer_branch
                %144 = sbr.rel target = $region38
              $region43: #{autoencoder_1_forward.9} parent=35 // loop_exit
                _
            $region36: #{autoencoder_1_forward.9} parent=31 // pred_fallthru
              _
            // Predicated region
            $region44: #{autoencoder_1_forward.9} parent=31 // pred_check
              _
            $region45: #{autoencoder_1_forward.9} parent=31 // pred_check_branch
              %553 = sbr.rel target = $region47
            $region46: #{autoencoder_1_forward.9} parent=31 // pred_region
              _
            $region47: #{autoencoder_1_forward.9} parent=31 // pred_fallthru
              _
          $region32: #{autoencoder_1_forward.9} parent=27 // pred_fallthru
            _
          %554 = vnop
        $region28: #{autoencoder_1_forward.9} parent=23 // pred_fallthru
          _
      $region24: #{autoencoder_1_forward.9} parent=5 // pred_fallthru
        _
      %p555 = scmp.le.s32.totalorder 1, %s11
      %p556 = scmp.lt.s32.totalorder %s11, 7
      %p557 = pnand %p555, %p556
      %p558 = pneg %p557
      // Predicated region
      $region48: #{autoencoder_1_forward.9} parent=5 // pred_check
        _
      $region49: #{autoencoder_1_forward.9} parent=5 // pred_check_branch
        %560 = sbr.rel (%p557) target = $region51
      $region50: #{autoencoder_1_forward.9} parent=5 // pred_region
        %s561 = ssub.s32 %s11, 1
        %s562 = sand.u32 %s45, 1
        %s563 = sand.u32 %s45, 1
        %s564 = smul.addr %s563, 1600
        %s565 = scalar_lea.vmem [#allocation3], %s564
        // Predicated region
        $region52: #{autoencoder_1_forward.9} parent=50 // pred_check
          %p566 = pneg %p58
        $region53: #{autoencoder_1_forward.9} parent=50 // pred_check_branch
          %568 = sbr.rel (%p566) target = $region55
        $region54: #{autoencoder_1_forward.9} parent=50 // pred_region
          _
        $region55: #{autoencoder_1_forward.9} parent=50 // pred_fallthru
          _
        %p569 = pneg %p32
        %p570 = pneg %p29
        %s571 = sand.u32 %s45, 1
        %s572 = sand.u32 %s45, 1
        %s573 = smul.addr %s572, 1600
        %s574 = scalar_lea.vmem [#allocation3], %s573
        %p575 = pneg %p58
        %p576 = pneg %p55
        %p577 = pneg %p79
        %p578 = pneg %p76
        %p579 = pneg %p105
        %p580 = pneg %p102
        %s581 = smul.u32 4, %s16
        %p582 = scmp.lt.s32.totalorder %s581, 23
        %s583 = scalar_select %p582, %s581, 23
        %s584 = scalar_lea.vmem %s3, %s583
        %s585 = smul.u32 4, %s16
        %s586 = smul.u32 4, %s16
        %p587 = scmp.lt.s32.totalorder %s586, 23
        %s588 = scalar_select %p587, %s586, 23
        %s589 = scalar_lea.vmem %s3, %s588
        %s590 = smul.u32 4, %s16
        %v592 = vld [vmem:[%s0] sm:$0x7f]
        %v593 = vld [vmem:[%s565] sm:$0xff]
        %v594 = vld [vmem:[%s565 + $0x8] sm:$0xff]
        %v595 = vld [vmem:[%s565 + $0x10] sm:$0xff]
        %v596 = vld [vmem:[%s565 + $0x18] sm:$0xff]
        %v597 = vld [vmem:[%s565 + $0x20] sm:$0xff]
        %v598 = vld [vmem:[%s565 + $0x28] sm:$0xff]
        %v599 = vld [vmem:[%s565 + $0x30] sm:$0xff]
        %v600 = vld [vmem:[%s565 + $0x38] sm:$0xff]
        %v601 = vld [vmem:[%s565 + $0x40] sm:$0xff]
        %v602 = vld [vmem:[%s565 + $0x48] sm:$0xff]
        %v603 = vld [vmem:[%s565 + $0x50] sm:$0xff]
        %v604 = vld [vmem:[%s565 + $0x58] sm:$0xff]
        %v605 = vld [vmem:[%s565 + $0x60] sm:$0xff]
        %v606 = vld [vmem:[%s565 + $0x68] sm:$0xff]
        %v607 = vld [vmem:[%s565 + $0x70] sm:$0xff]
        %v608 = vld [vmem:[%s565 + $0x78] sm:$0xff]
        %v609 = vld [vmem:[%s565 + $0x80] sm:$0xff]
        %v610 = vld [vmem:[%s565 + $0x88] sm:$0xff]
        %v611 = vld [vmem:[%s565 + $0x90] sm:$0xff]
        %v612 = vld [vmem:[%s565 + $0x98] sm:$0xff]
        %v613 = vld [vmem:[%s565 + $0xa0] sm:$0xff]
        %v614 = vld [vmem:[%s565 + $0xa8] sm:$0xff]
        %v615 = vld [vmem:[%s565 + $0xb0] sm:$0xff]
        %v616 = vld [vmem:[%s565 + $0xb8] sm:$0xff]
        %v617 = vld [vmem:[%s565 + $0xc0] sm:$0xff]
        %v618 = vld [vmem:[%s565 + $0xc8] sm:$0xff]
        %v619 = vld [vmem:[%s565 + $0xd0] sm:$0xff]
        %v620 = vld [vmem:[%s565 + $0xd8] sm:$0xff]
        %v621 = vld [vmem:[%s565 + $0xe0] sm:$0xff]
        %v622 = vld [vmem:[%s565 + $0xe8] sm:$0xff]
        %v623 = vld [vmem:[%s565 + $0xf0] sm:$0xff]
        %v624 = vld [vmem:[%s565 + $0xf8] sm:$0xff]
        %v625 = vld [vmem:[%s565 + $0x100] sm:$0xff]
        %v626 = vld [vmem:[%s565 + $0x108] sm:$0xff]
        %v627 = vld [vmem:[%s565 + $0x110] sm:$0xff]
        %v628 = vld [vmem:[%s565 + $0x118] sm:$0xff]
        %v629 = vld [vmem:[%s565 + $0x120] sm:$0xff]
        %v630 = vld [vmem:[%s565 + $0x128] sm:$0xff]
        %v631 = vld [vmem:[%s565 + $0x130] sm:$0xff]
        %v632 = vld [vmem:[%s565 + $0x138] sm:$0xff]
        %v633 = vld [vmem:[%s565 + $0x140] sm:$0xff]
        %v634 = vld [vmem:[%s565 + $0x148] sm:$0xff]
        %v635 = vld [vmem:[%s565 + $0x150] sm:$0xff]
        %v636 = vld [vmem:[%s565 + $0x158] sm:$0xff]
        %v637 = vld [vmem:[%s565 + $0x160] sm:$0xff]
        %v638 = vld [vmem:[%s565 + $0x168] sm:$0xff]
        %v639 = vld [vmem:[%s565 + $0x170] sm:$0xff]
        %v640 = vld [vmem:[%s565 + $0x178] sm:$0xff]
        %v641 = vld [vmem:[%s565 + $0x180] sm:$0xff]
        %v642 = vld [vmem:[%s565 + $0x188] sm:$0xff]
        %v643 = vld [vmem:[%s565 + $0x190] sm:$0xff]
        %v644 = vld [vmem:[%s565 + $0x198] sm:$0xff]
        %v645 = vld [vmem:[%s565 + $0x1a0] sm:$0xff]
        %v646 = vld [vmem:[%s565 + $0x1a8] sm:$0xff]
        %v647 = vld [vmem:[%s565 + $0x1b0] sm:$0xff]
        %v648 = vld [vmem:[%s565 + $0x1b8] sm:$0xff]
        %v649 = vld [vmem:[%s565 + $0x1c0] sm:$0xff]
        %v650 = vld [vmem:[%s565 + $0x1c8] sm:$0xff]
        %v651 = vld [vmem:[%s565 + $0x1d0] sm:$0xff]
        %v652 = vld [vmem:[%s565 + $0x1d8] sm:$0xff]
        %v653 = vld [vmem:[%s565 + $0x1e0] sm:$0xff]
        %v654 = vld [vmem:[%s565 + $0x1e8] sm:$0xff]
        %v655 = vld [vmem:[%s565 + $0x1f0] sm:$0xff]
        %v656 = vld [vmem:[%s565 + $0x1f8] sm:$0xff]
        %v657 = vld [vmem:[%s565 + $0x200] sm:$0xff]
        %v658 = vld [vmem:[%s565 + $0x208] sm:$0xff]
        %v659 = vld [vmem:[%s565 + $0x210] sm:$0xff]
        %v660 = vld [vmem:[%s565 + $0x218] sm:$0xff]
        %v661 = vld [vmem:[%s565 + $0x220] sm:$0xff]
        %v662 = vld [vmem:[%s565 + $0x228] sm:$0xff]
        %v663 = vld [vmem:[%s565 + $0x230] sm:$0xff]
        %v664 = vld [vmem:[%s565 + $0x238] sm:$0xff]
        %v665 = vld [vmem:[%s565 + $0x240] sm:$0xff]
        %v666 = vld [vmem:[%s565 + $0x248] sm:$0xff]
        %v667 = vld [vmem:[%s565 + $0x250] sm:$0xff]
        %v668 = vld [vmem:[%s565 + $0x258] sm:$0xff]
        %v669 = vld [vmem:[%s565 + $0x260] sm:$0xff]
        %v670 = vld [vmem:[%s565 + $0x268] sm:$0xff]
        %v671 = vld [vmem:[%s565 + $0x270] sm:$0xff]
        %v672 = vld [vmem:[%s565 + $0x278] sm:$0xff]
        %v673 = vld [vmem:[%s565 + $0x280] sm:$0xff]
        %v674 = vld [vmem:[%s565 + $0x288] sm:$0xff]
        %v675 = vld [vmem:[%s565 + $0x290] sm:$0xff]
        %v676 = vld [vmem:[%s565 + $0x298] sm:$0xff]
        %v677 = vld [vmem:[%s565 + $0x2a0] sm:$0xff]
        %v678 = vld [vmem:[%s565 + $0x2a8] sm:$0xff]
        %v679 = vld [vmem:[%s565 + $0x2b0] sm:$0xff]
        %v680 = vld [vmem:[%s565 + $0x2b8] sm:$0xff]
        %v681 = vld [vmem:[%s565 + $0x2c0] sm:$0xff]
        %v682 = vld [vmem:[%s565 + $0x2c8] sm:$0xff]
        %v683 = vld [vmem:[%s565 + $0x2d0] sm:$0xff]
        %v684 = vld [vmem:[%s565 + $0x2d8] sm:$0xff]
        %v685 = vld [vmem:[%s565 + $0x2e0] sm:$0xff]
        %v686 = vld [vmem:[%s565 + $0x2e8] sm:$0xff]
        %v687 = vld [vmem:[%s565 + $0x2f0] sm:$0xff]
        %v688 = vld [vmem:[%s565 + $0x2f8] sm:$0xff]
        %v689 = vld [vmem:[%s565 + $0x300] sm:$0xff]
        %v690 = vld [vmem:[%s565 + $0x308] sm:$0xff]
        %v691 = vld [vmem:[%s565 + $0x310] sm:$0xff]
        %v692 = vld [vmem:[%s565 + $0x318] sm:$0xff]
        %v693 = vld [vmem:[%s565 + $0x320] sm:$0xff]
        %v694 = vld [vmem:[%s565 + $0x328] sm:$0xff]
        %v695 = vld [vmem:[%s565 + $0x330] sm:$0xff]
        %v696 = vld [vmem:[%s565 + $0x338] sm:$0xff]
        %v697 = vld [vmem:[%s565 + $0x340] sm:$0xff]
        %v698 = vld [vmem:[%s565 + $0x348] sm:$0xff]
        %v699 = vld [vmem:[%s565 + $0x350] sm:$0xff]
        %v700 = vld [vmem:[%s565 + $0x358] sm:$0xff]
        %v701 = vld [vmem:[%s565 + $0x360] sm:$0xff]
        %v702 = vld [vmem:[%s565 + $0x368] sm:$0xff]
        %v703 = vld [vmem:[%s565 + $0x370] sm:$0xff]
        %v704 = vld [vmem:[%s565 + $0x378] sm:$0xff]
        %v705 = vld [vmem:[%s565 + $0x380] sm:$0xff]
        %v706 = vld [vmem:[%s565 + $0x388] sm:$0xff]
        %v707 = vld [vmem:[%s565 + $0x390] sm:$0xff]
        %v708 = vld [vmem:[%s565 + $0x398] sm:$0xff]
        %v709 = vld [vmem:[%s565 + $0x3a0] sm:$0xff]
        %v710 = vld [vmem:[%s565 + $0x3a8] sm:$0xff]
        %v711 = vld [vmem:[%s565 + $0x3b0] sm:$0xff]
        %v712 = vld [vmem:[%s565 + $0x3b8] sm:$0xff]
        %v713 = vld [vmem:[%s565 + $0x3c0] sm:$0xff]
        %v714 = vld [vmem:[%s565 + $0x3c8] sm:$0xff]
        %v715 = vld [vmem:[%s565 + $0x3d0] sm:$0xff]
        %v716 = vld [vmem:[%s565 + $0x3d8] sm:$0xff]
        %v717 = vld [vmem:[%s565 + $0x3e0] sm:$0xff]
        %v718 = vld [vmem:[%s565 + $0x3e8] sm:$0xff]
        %v719 = vld [vmem:[%s565 + $0x3f0] sm:$0xff]
        %v720 = vld [vmem:[%s565 + $0x3f8] sm:$0xff]
        %v721 = vld [vmem:[%s565 + $0x400] sm:$0xff]
        %v722 = vld [vmem:[%s565 + $0x408] sm:$0xff]
        %v723 = vld [vmem:[%s565 + $0x410] sm:$0xff]
        %v724 = vld [vmem:[%s565 + $0x418] sm:$0xff]
        %v725 = vld [vmem:[%s565 + $0x420] sm:$0xff]
        %v726 = vld [vmem:[%s565 + $0x428] sm:$0xff]
        %v727 = vld [vmem:[%s565 + $0x430] sm:$0xff]
        %v728 = vld [vmem:[%s565 + $0x438] sm:$0xff]
        %v729 = vld [vmem:[%s565 + $0x440] sm:$0xff]
        %v730 = vld [vmem:[%s565 + $0x448] sm:$0xff]
        %v731 = vld [vmem:[%s565 + $0x450] sm:$0xff]
        %v732 = vld [vmem:[%s565 + $0x458] sm:$0xff]
        %v733 = vld [vmem:[%s565 + $0x460] sm:$0xff]
        %v734 = vld [vmem:[%s565 + $0x468] sm:$0xff]
        %v735 = vld [vmem:[%s565 + $0x470] sm:$0xff]
        %v736 = vld [vmem:[%s565 + $0x478] sm:$0xff]
        %v737 = vld [vmem:[%s565 + $0x480] sm:$0xff]
        %v738 = vld [vmem:[%s565 + $0x488] sm:$0xff]
        %v739 = vld [vmem:[%s565 + $0x490] sm:$0xff]
        %v740 = vld [vmem:[%s565 + $0x498] sm:$0xff]
        %v741 = vld [vmem:[%s565 + $0x4a0] sm:$0xff]
        %v742 = vld [vmem:[%s565 + $0x4a8] sm:$0xff]
        %v743 = vld [vmem:[%s565 + $0x4b0] sm:$0xff]
        %v744 = vld [vmem:[%s565 + $0x4b8] sm:$0xff]
        %v745 = vld [vmem:[%s565 + $0x4c0] sm:$0xff]
        %v746 = vld [vmem:[%s565 + $0x4c8] sm:$0xff]
        %v747 = vld [vmem:[%s565 + $0x4d0] sm:$0xff]
        %v748 = vld [vmem:[%s565 + $0x4d8] sm:$0xff]
        %v749 = vld [vmem:[%s565 + $0x4e0] sm:$0xff]
        %v750 = vld [vmem:[%s565 + $0x4e8] sm:$0xff]
        %v751 = vld [vmem:[%s565 + $0x4f0] sm:$0xff]
        %v752 = vld [vmem:[%s565 + $0x4f8] sm:$0xff]
        %v753 = vld [vmem:[%s565 + $0x500] sm:$0xff]
        %v754 = vld [vmem:[%s565 + $0x508] sm:$0xff]
        %v755 = vld [vmem:[%s565 + $0x510] sm:$0xff]
        %v756 = vld [vmem:[%s565 + $0x518] sm:$0xff]
        %v757 = vld [vmem:[%s565 + $0x520] sm:$0xff]
        %v758 = vld [vmem:[%s565 + $0x528] sm:$0xff]
        %v759 = vld [vmem:[%s565 + $0x530] sm:$0xff]
        %v760 = vld [vmem:[%s565 + $0x538] sm:$0xff]
        %v761 = vld [vmem:[%s565 + $0x540] sm:$0xff]
        %v762 = vld [vmem:[%s565 + $0x548] sm:$0xff]
        %v763 = vld [vmem:[%s565 + $0x550] sm:$0xff]
        %v764 = vld [vmem:[%s565 + $0x558] sm:$0xff]
        %v765 = vld [vmem:[%s565 + $0x560] sm:$0xff]
        %v766 = vld [vmem:[%s565 + $0x568] sm:$0xff]
        %v767 = vld [vmem:[%s565 + $0x570] sm:$0xff]
        %v768 = vld [vmem:[%s565 + $0x578] sm:$0xff]
        %v769 = vld [vmem:[%s565 + $0x580] sm:$0xff]
        %v770 = vld [vmem:[%s565 + $0x588] sm:$0xff]
        %v771 = vld [vmem:[%s565 + $0x590] sm:$0xff]
        %v772 = vld [vmem:[%s565 + $0x598] sm:$0xff]
        %v773 = vld [vmem:[%s565 + $0x5a0] sm:$0xff]
        %v774 = vld [vmem:[%s565 + $0x5a8] sm:$0xff]
        %v775 = vld [vmem:[%s565 + $0x5b0] sm:$0xff]
        %v776 = vld [vmem:[%s565 + $0x5b8] sm:$0xff]
        %v777 = vld [vmem:[%s565 + $0x5c0] sm:$0xff]
        %v778 = vld [vmem:[%s565 + $0x5c8] sm:$0xff]
        %v779 = vld [vmem:[%s565 + $0x5d0] sm:$0xff]
        %v780 = vld [vmem:[%s565 + $0x5d8] sm:$0xff]
        %v781 = vld [vmem:[%s565 + $0x5e0] sm:$0xff]
        %v782 = vld [vmem:[%s565 + $0x5e8] sm:$0xff]
        %v783 = vld [vmem:[%s565 + $0x5f0] sm:$0xff]
        %v784 = vld [vmem:[%s565 + $0x5f8] sm:$0xff]
        %v785 = vld [vmem:[%s565 + $0x600] sm:$0xff]
        %v786 = vld [vmem:[%s565 + $0x608] sm:$0xff]
        %v787 = vld [vmem:[%s565 + $0x610] sm:$0xff]
        %v788 = vld [vmem:[%s565 + $0x618] sm:$0xff]
        %v789 = vld [vmem:[%s565 + $0x620] sm:$0xff]
        %v790 = vld [vmem:[%s565 + $0x628] sm:$0xff]
        %v791 = vld [vmem:[%s565 + $0x630] sm:$0xff]
        %v792 = vld [vmem:[%s565 + $0x638] sm:$0xff]
        %v793 = vld [vmem:[#allocation2] sm:$0x1]
        %795 = vset.pattern.permute.xlu0 0
        %796 = vperm.xlu0 %795, %v793
        %v797 = vpop.permute.xlu0 %796
        %v799 = vlaneseq
        %v800 = vshrl.u32 %v799, 7
        %v801 = vsub.s32 0, %v800
        %v802 = vrot.slane %v797, %v801
        %v804 = vcombine.high %v592, %v592
        %v806 = vunpack.c.l.s4 1966171168
        %v807 = vunpack.c.0.s8 %v806
        %v808 = vlaneseq
        %v809 = vshrl.u32 %v808, 7
        %v810 = vsub.s32 %v807, %v809
        %v811 = vrot.slane %v592, %v810
        %v813 = vunpack.c.l.s4 1966171168
        %v814 = vunpack.c.0.s8 %v813
        %v815 = vlaneseq
        %v816 = vshrl.u32 %v815, 7
        %v817 = vsub.s32 %v814, %v816
        %v818 = vrot.slane %v804, %v817
        %v819 = vcombine.high %v811, %v811
        %v820 = vcombine.high %v818, %v818
        %v822 = vunpack.c.l.s4 1966171168
        %v823 = vunpack.c.0.s8 %v822
        %v824 = vlaneseq
        %v825 = vshrl.u32 %v824, 7
        %v826 = vsub.s32 %v823, %v825
        %v827 = vrot.slane %v811, %v826
        %v829 = vunpack.c.l.s4 1966171168
        %v830 = vunpack.c.0.s8 %v829
        %v831 = vlaneseq
        %v832 = vshrl.u32 %v831, 7
        %v833 = vsub.s32 %v830, %v832
        %v834 = vrot.slane %v818, %v833
        %v836 = vunpack.c.l.s4 1966171168
        %v837 = vunpack.c.0.s8 %v836
        %v838 = vlaneseq
        %v839 = vshrl.u32 %v838, 7
        %v840 = vsub.s32 %v837, %v839
        %v841 = vrot.slane %v819, %v840
        %v843 = vunpack.c.l.s4 1966171168
        %v844 = vunpack.c.0.s8 %v843
        %v845 = vlaneseq
        %v846 = vshrl.u32 %v845, 7
        %v847 = vsub.s32 %v844, %v846
        %v848 = vrot.slane %v820, %v847
        %v849 = vcombine.high %v827, %v827
        %v850 = vcombine.high %v834, %v834
        %v851 = vcombine.high %v841, %v841
        %v1058 = vunpack.c.l.b16 %v593
        %v1059 = vunpack.c.h.b16 %v593
        %v1060 = vunpack.c.l.b16 %v594
        %v1061 = vunpack.c.h.b16 %v594
        %v1062 = vunpack.c.l.b16 %v595
        %v1063 = vunpack.c.h.b16 %v595
        %v1064 = vunpack.c.l.b16 %v596
        %v1065 = vunpack.c.h.b16 %v596
        %v1066 = vunpack.c.l.b16 %v597
        %v1067 = vunpack.c.h.b16 %v597
        %v1068 = vunpack.c.l.b16 %v598
        %v1069 = vunpack.c.h.b16 %v598
        %v1070 = vunpack.c.l.b16 %v599
        %v1071 = vunpack.c.h.b16 %v599
        %v1072 = vunpack.c.l.b16 %v600
        %v1073 = vunpack.c.h.b16 %v600
        %v1074 = vunpack.c.l.b16 %v601
        %v1075 = vunpack.c.h.b16 %v601
        %v1076 = vunpack.c.l.b16 %v602
        %v1077 = vunpack.c.h.b16 %v602
        %v1078 = vunpack.c.l.b16 %v603
        %v1079 = vunpack.c.h.b16 %v603
        %v1080 = vunpack.c.l.b16 %v604
        %v1081 = vunpack.c.h.b16 %v604
        %v1082 = vunpack.c.l.b16 %v605
        %v1083 = vunpack.c.h.b16 %v605
        %v1084 = vunpack.c.l.b16 %v606
        %v1085 = vunpack.c.h.b16 %v606
        %v1086 = vunpack.c.l.b16 %v607
        %v1087 = vunpack.c.h.b16 %v607
        %v1088 = vunpack.c.l.b16 %v608
        %v1089 = vunpack.c.h.b16 %v608
        %v1090 = vunpack.c.l.b16 %v609
        %v1091 = vunpack.c.h.b16 %v609
        %v1092 = vunpack.c.l.b16 %v610
        %v1093 = vunpack.c.h.b16 %v610
        %v1094 = vunpack.c.l.b16 %v611
        %v1095 = vunpack.c.h.b16 %v611
        %v1096 = vunpack.c.l.b16 %v612
        %v1097 = vunpack.c.h.b16 %v612
        %v1098 = vunpack.c.l.b16 %v613
        %v1099 = vunpack.c.h.b16 %v613
        %v1100 = vunpack.c.l.b16 %v614
        %v1101 = vunpack.c.h.b16 %v614
        %v1102 = vunpack.c.l.b16 %v615
        %v1103 = vunpack.c.h.b16 %v615
        %v1104 = vunpack.c.l.b16 %v616
        %v1105 = vunpack.c.h.b16 %v616
        %v1106 = vunpack.c.l.b16 %v617
        %v1107 = vunpack.c.h.b16 %v617
        %v1108 = vunpack.c.l.b16 %v618
        %v1109 = vunpack.c.h.b16 %v618
        %v1110 = vunpack.c.l.b16 %v619
        %v1111 = vunpack.c.h.b16 %v619
        %v1112 = vunpack.c.l.b16 %v620
        %v1113 = vunpack.c.h.b16 %v620
        %v1114 = vunpack.c.l.b16 %v621
        %v1115 = vunpack.c.h.b16 %v621
        %v1116 = vunpack.c.l.b16 %v622
        %v1117 = vunpack.c.h.b16 %v622
        %v1118 = vunpack.c.l.b16 %v623
        %v1119 = vunpack.c.h.b16 %v623
        %v1120 = vunpack.c.l.b16 %v624
        %v1121 = vunpack.c.h.b16 %v624
        %v1122 = vunpack.c.l.b16 %v625
        %v1123 = vunpack.c.h.b16 %v625
        %v1124 = vunpack.c.l.b16 %v626
        %v1125 = vunpack.c.h.b16 %v626
        %v1126 = vunpack.c.l.b16 %v627
        %v1127 = vunpack.c.h.b16 %v627
        %v1128 = vunpack.c.l.b16 %v628
        %v1129 = vunpack.c.h.b16 %v628
        %v1130 = vunpack.c.l.b16 %v629
        %v1131 = vunpack.c.h.b16 %v629
        %v1132 = vunpack.c.l.b16 %v630
        %v1133 = vunpack.c.h.b16 %v630
        %v1134 = vunpack.c.l.b16 %v631
        %v1135 = vunpack.c.h.b16 %v631
        %v1136 = vunpack.c.l.b16 %v632
        %v1137 = vunpack.c.h.b16 %v632
        %v1138 = vunpack.c.l.b16 %v633
        %v1139 = vunpack.c.h.b16 %v633
        %v1140 = vunpack.c.l.b16 %v634
        %v1141 = vunpack.c.h.b16 %v634
        %v1142 = vunpack.c.l.b16 %v635
        %v1143 = vunpack.c.h.b16 %v635
        %v1144 = vunpack.c.l.b16 %v636
        %v1145 = vunpack.c.h.b16 %v636
        %v1146 = vunpack.c.l.b16 %v637
        %v1147 = vunpack.c.h.b16 %v637
        %v1148 = vunpack.c.l.b16 %v638
        %v1149 = vunpack.c.h.b16 %v638
        %v1150 = vunpack.c.l.b16 %v639
        %v1151 = vunpack.c.h.b16 %v639
        %v1152 = vunpack.c.l.b16 %v640
        %v1153 = vunpack.c.h.b16 %v640
        %v1154 = vunpack.c.l.b16 %v641
        %v1155 = vunpack.c.h.b16 %v641
        %v1156 = vunpack.c.l.b16 %v642
        %v1157 = vunpack.c.h.b16 %v642
        %v1158 = vunpack.c.l.b16 %v643
        %v1159 = vunpack.c.h.b16 %v643
        %v1160 = vunpack.c.l.b16 %v644
        %v1161 = vunpack.c.h.b16 %v644
        %v1162 = vunpack.c.l.b16 %v645
        %v1163 = vunpack.c.h.b16 %v645
        %v1164 = vunpack.c.l.b16 %v646
        %v1165 = vunpack.c.h.b16 %v646
        %v1166 = vunpack.c.l.b16 %v647
        %v1167 = vunpack.c.h.b16 %v647
        %v1168 = vunpack.c.l.b16 %v648
        %v1169 = vunpack.c.h.b16 %v648
        %v1170 = vunpack.c.l.b16 %v649
        %v1171 = vunpack.c.h.b16 %v649
        %v1172 = vunpack.c.l.b16 %v650
        %v1173 = vunpack.c.h.b16 %v650
        %v1174 = vunpack.c.l.b16 %v651
        %v1175 = vunpack.c.h.b16 %v651
        %v1176 = vunpack.c.l.b16 %v652
        %v1177 = vunpack.c.h.b16 %v652
        %v1178 = vunpack.c.l.b16 %v653
        %v1179 = vunpack.c.h.b16 %v653
        %v1180 = vunpack.c.l.b16 %v654
        %v1181 = vunpack.c.h.b16 %v654
        %v1182 = vunpack.c.l.b16 %v655
        %v1183 = vunpack.c.h.b16 %v655
        %v1184 = vunpack.c.l.b16 %v656
        %v1185 = vunpack.c.h.b16 %v656
        %v1186 = vunpack.c.l.b16 %v657
        %v1187 = vunpack.c.h.b16 %v657
        %v1188 = vunpack.c.l.b16 %v658
        %v1189 = vunpack.c.h.b16 %v658
        %v1190 = vunpack.c.l.b16 %v659
        %v1191 = vunpack.c.h.b16 %v659
        %v1192 = vunpack.c.l.b16 %v660
        %v1193 = vunpack.c.h.b16 %v660
        %v1194 = vunpack.c.l.b16 %v661
        %v1195 = vunpack.c.h.b16 %v661
        %v1196 = vunpack.c.l.b16 %v662
        %v1197 = vunpack.c.h.b16 %v662
        %v1198 = vunpack.c.l.b16 %v663
        %v1199 = vunpack.c.h.b16 %v663
        %v1200 = vunpack.c.l.b16 %v664
        %v1201 = vunpack.c.h.b16 %v664
        %v1202 = vunpack.c.l.b16 %v665
        %v1203 = vunpack.c.h.b16 %v665
        %v1204 = vunpack.c.l.b16 %v666
        %v1205 = vunpack.c.h.b16 %v666
        %v1206 = vunpack.c.l.b16 %v667
        %v1207 = vunpack.c.h.b16 %v667
        %v1208 = vunpack.c.l.b16 %v668
        %v1209 = vunpack.c.h.b16 %v668
        %v1210 = vunpack.c.l.b16 %v669
        %v1211 = vunpack.c.h.b16 %v669
        %v1212 = vunpack.c.l.b16 %v670
        %v1213 = vunpack.c.h.b16 %v670
        %v1214 = vunpack.c.l.b16 %v671
        %v1215 = vunpack.c.h.b16 %v671
        %v1216 = vunpack.c.l.b16 %v672
        %v1217 = vunpack.c.h.b16 %v672
        %v1218 = vunpack.c.l.b16 %v673
        %v1219 = vunpack.c.h.b16 %v673
        %v1220 = vunpack.c.l.b16 %v674
        %v1221 = vunpack.c.h.b16 %v674
        %v1222 = vunpack.c.l.b16 %v675
        %v1223 = vunpack.c.h.b16 %v675
        %v1224 = vunpack.c.l.b16 %v676
        %v1225 = vunpack.c.h.b16 %v676
        %v1226 = vunpack.c.l.b16 %v677
        %v1227 = vunpack.c.h.b16 %v677
        %v1228 = vunpack.c.l.b16 %v678
        %v1229 = vunpack.c.h.b16 %v678
        %v1230 = vunpack.c.l.b16 %v679
        %v1231 = vunpack.c.h.b16 %v679
        %v1232 = vunpack.c.l.b16 %v680
        %v1233 = vunpack.c.h.b16 %v680
        %v1234 = vunpack.c.l.b16 %v681
        %v1235 = vunpack.c.h.b16 %v681
        %v1236 = vunpack.c.l.b16 %v682
        %v1237 = vunpack.c.h.b16 %v682
        %v1238 = vunpack.c.l.b16 %v683
        %v1239 = vunpack.c.h.b16 %v683
        %v1240 = vunpack.c.l.b16 %v684
        %v1241 = vunpack.c.h.b16 %v684
        %v1242 = vunpack.c.l.b16 %v685
        %v1243 = vunpack.c.h.b16 %v685
        %v1244 = vunpack.c.l.b16 %v686
        %v1245 = vunpack.c.h.b16 %v686
        %v1246 = vunpack.c.l.b16 %v687
        %v1247 = vunpack.c.h.b16 %v687
        %v1248 = vunpack.c.l.b16 %v688
        %v1249 = vunpack.c.h.b16 %v688
        %v1250 = vunpack.c.l.b16 %v689
        %v1251 = vunpack.c.h.b16 %v689
        %v1252 = vunpack.c.l.b16 %v690
        %v1253 = vunpack.c.h.b16 %v690
        %v1254 = vunpack.c.l.b16 %v691
        %v1255 = vunpack.c.h.b16 %v691
        %v1256 = vunpack.c.l.b16 %v692
        %v1257 = vunpack.c.h.b16 %v692
        %v1258 = vunpack.c.l.b16 %v693
        %v1259 = vunpack.c.h.b16 %v693
        %v1260 = vunpack.c.l.b16 %v694
        %v1261 = vunpack.c.h.b16 %v694
        %v1262 = vunpack.c.l.b16 %v695
        %v1263 = vunpack.c.h.b16 %v695
        %v1264 = vunpack.c.l.b16 %v696
        %v1265 = vunpack.c.h.b16 %v696
        %v1266 = vunpack.c.l.b16 %v697
        %v1267 = vunpack.c.h.b16 %v697
        %v1268 = vunpack.c.l.b16 %v698
        %v1269 = vunpack.c.h.b16 %v698
        %v1270 = vunpack.c.l.b16 %v699
        %v1271 = vunpack.c.h.b16 %v699
        %v1272 = vunpack.c.l.b16 %v700
        %v1273 = vunpack.c.h.b16 %v700
        %v1274 = vunpack.c.l.b16 %v701
        %v1275 = vunpack.c.h.b16 %v701
        %v1276 = vunpack.c.l.b16 %v702
        %v1277 = vunpack.c.h.b16 %v702
        %v1278 = vunpack.c.l.b16 %v703
        %v1279 = vunpack.c.h.b16 %v703
        %v1280 = vunpack.c.l.b16 %v704
        %v1281 = vunpack.c.h.b16 %v704
        %v1282 = vunpack.c.l.b16 %v705
        %v1283 = vunpack.c.h.b16 %v705
        %v1284 = vunpack.c.l.b16 %v706
        %v1285 = vunpack.c.h.b16 %v706
        %v1286 = vunpack.c.l.b16 %v707
        %v1287 = vunpack.c.h.b16 %v707
        %v1288 = vunpack.c.l.b16 %v708
        %v1289 = vunpack.c.h.b16 %v708
        %v1290 = vunpack.c.l.b16 %v709
        %v1291 = vunpack.c.h.b16 %v709
        %v1292 = vunpack.c.l.b16 %v710
        %v1293 = vunpack.c.h.b16 %v710
        %v1294 = vunpack.c.l.b16 %v711
        %v1295 = vunpack.c.h.b16 %v711
        %v1296 = vunpack.c.l.b16 %v712
        %v1297 = vunpack.c.h.b16 %v712
        %v1298 = vunpack.c.l.b16 %v713
        %v1299 = vunpack.c.h.b16 %v713
        %v1300 = vunpack.c.l.b16 %v714
        %v1301 = vunpack.c.h.b16 %v714
        %v1302 = vunpack.c.l.b16 %v715
        %v1303 = vunpack.c.h.b16 %v715
        %v1304 = vunpack.c.l.b16 %v716
        %v1305 = vunpack.c.h.b16 %v716
        %v1306 = vunpack.c.l.b16 %v717
        %v1307 = vunpack.c.h.b16 %v717
        %v1308 = vunpack.c.l.b16 %v718
        %v1309 = vunpack.c.h.b16 %v718
        %v1310 = vunpack.c.l.b16 %v719
        %v1311 = vunpack.c.h.b16 %v719
        %v1312 = vunpack.c.l.b16 %v720
        %v1313 = vunpack.c.h.b16 %v720
        %v1314 = vunpack.c.l.b16 %v721
        %v1315 = vunpack.c.h.b16 %v721
        %v1316 = vunpack.c.l.b16 %v722
        %v1317 = vunpack.c.h.b16 %v722
        %v1318 = vunpack.c.l.b16 %v723
        %v1319 = vunpack.c.h.b16 %v723
        %v1320 = vunpack.c.l.b16 %v724
        %v1321 = vunpack.c.h.b16 %v724
        %v1322 = vunpack.c.l.b16 %v725
        %v1323 = vunpack.c.h.b16 %v725
        %v1324 = vunpack.c.l.b16 %v726
        %v1325 = vunpack.c.h.b16 %v726
        %v1326 = vunpack.c.l.b16 %v727
        %v1327 = vunpack.c.h.b16 %v727
        %v1328 = vunpack.c.l.b16 %v728
        %v1329 = vunpack.c.h.b16 %v728
        %v1330 = vunpack.c.l.b16 %v729
        %v1331 = vunpack.c.h.b16 %v729
        %v1332 = vunpack.c.l.b16 %v730
        %v1333 = vunpack.c.h.b16 %v730
        %v1334 = vunpack.c.l.b16 %v731
        %v1335 = vunpack.c.h.b16 %v731
        %v1336 = vunpack.c.l.b16 %v732
        %v1337 = vunpack.c.h.b16 %v732
        %v1338 = vunpack.c.l.b16 %v733
        %v1339 = vunpack.c.h.b16 %v733
        %v1340 = vunpack.c.l.b16 %v734
        %v1341 = vunpack.c.h.b16 %v734
        %v1342 = vunpack.c.l.b16 %v735
        %v1343 = vunpack.c.h.b16 %v735
        %v1344 = vunpack.c.l.b16 %v736
        %v1345 = vunpack.c.h.b16 %v736
        %v1346 = vunpack.c.l.b16 %v737
        %v1347 = vunpack.c.h.b16 %v737
        %v1348 = vunpack.c.l.b16 %v738
        %v1349 = vunpack.c.h.b16 %v738
        %v1350 = vunpack.c.l.b16 %v739
        %v1351 = vunpack.c.h.b16 %v739
        %v1352 = vunpack.c.l.b16 %v740
        %v1353 = vunpack.c.h.b16 %v740
        %v1354 = vunpack.c.l.b16 %v741
        %v1355 = vunpack.c.h.b16 %v741
        %v1356 = vunpack.c.l.b16 %v742
        %v1357 = vunpack.c.h.b16 %v742
        %v1358 = vunpack.c.l.b16 %v743
        %v1359 = vunpack.c.h.b16 %v743
        %v1360 = vunpack.c.l.b16 %v744
        %v1361 = vunpack.c.h.b16 %v744
        %v1362 = vunpack.c.l.b16 %v745
        %v1363 = vunpack.c.h.b16 %v745
        %v1364 = vunpack.c.l.b16 %v746
        %v1365 = vunpack.c.h.b16 %v746
        %v1366 = vunpack.c.l.b16 %v747
        %v1367 = vunpack.c.h.b16 %v747
        %v1368 = vunpack.c.l.b16 %v748
        %v1369 = vunpack.c.h.b16 %v748
        %v1370 = vunpack.c.l.b16 %v749
        %v1371 = vunpack.c.h.b16 %v749
        %v1372 = vunpack.c.l.b16 %v750
        %v1373 = vunpack.c.h.b16 %v750
        %v1374 = vunpack.c.l.b16 %v751
        %v1375 = vunpack.c.h.b16 %v751
        %v1376 = vunpack.c.l.b16 %v752
        %v1377 = vunpack.c.h.b16 %v752
        %v1378 = vunpack.c.l.b16 %v753
        %v1379 = vunpack.c.h.b16 %v753
        %v1380 = vunpack.c.l.b16 %v754
        %v1381 = vunpack.c.h.b16 %v754
        %v1382 = vunpack.c.l.b16 %v755
        %v1383 = vunpack.c.h.b16 %v755
        %v1384 = vunpack.c.l.b16 %v756
        %v1385 = vunpack.c.h.b16 %v756
        %v1386 = vunpack.c.l.b16 %v757
        %v1387 = vunpack.c.h.b16 %v757
        %v1388 = vunpack.c.l.b16 %v758
        %v1389 = vunpack.c.h.b16 %v758
        %v1390 = vunpack.c.l.b16 %v759
        %v1391 = vunpack.c.h.b16 %v759
        %v1392 = vunpack.c.l.b16 %v760
        %v1393 = vunpack.c.h.b16 %v760
        %v1394 = vunpack.c.l.b16 %v761
        %v1395 = vunpack.c.h.b16 %v761
        %v1396 = vunpack.c.l.b16 %v762
        %v1397 = vunpack.c.h.b16 %v762
        %v1398 = vunpack.c.l.b16 %v763
        %v1399 = vunpack.c.h.b16 %v763
        %v1400 = vunpack.c.l.b16 %v764
        %v1401 = vunpack.c.h.b16 %v764
        %v1402 = vunpack.c.l.b16 %v765
        %v1403 = vunpack.c.h.b16 %v765
        %v1404 = vunpack.c.l.b16 %v766
        %v1405 = vunpack.c.h.b16 %v766
        %v1406 = vunpack.c.l.b16 %v767
        %v1407 = vunpack.c.h.b16 %v767
        %v1408 = vunpack.c.l.b16 %v768
        %v1409 = vunpack.c.h.b16 %v768
        %v1410 = vunpack.c.l.b16 %v769
        %v1411 = vunpack.c.h.b16 %v769
        %v1412 = vunpack.c.l.b16 %v770
        %v1413 = vunpack.c.h.b16 %v770
        %v1414 = vunpack.c.l.b16 %v771
        %v1415 = vunpack.c.h.b16 %v771
        %v1416 = vunpack.c.l.b16 %v772
        %v1417 = vunpack.c.h.b16 %v772
        %v1418 = vunpack.c.l.b16 %v773
        %v1419 = vunpack.c.h.b16 %v773
        %v1420 = vunpack.c.l.b16 %v774
        %v1421 = vunpack.c.h.b16 %v774
        %v1422 = vunpack.c.l.b16 %v775
        %v1423 = vunpack.c.h.b16 %v775
        %v1424 = vunpack.c.l.b16 %v776
        %v1425 = vunpack.c.h.b16 %v776
        %v1426 = vunpack.c.l.b16 %v777
        %v1427 = vunpack.c.h.b16 %v777
        %v1428 = vunpack.c.l.b16 %v778
        %v1429 = vunpack.c.h.b16 %v778
        %v1430 = vunpack.c.l.b16 %v779
        %v1431 = vunpack.c.h.b16 %v779
        %v1432 = vunpack.c.l.b16 %v780
        %v1433 = vunpack.c.h.b16 %v780
        %v1434 = vunpack.c.l.b16 %v781
        %v1435 = vunpack.c.h.b16 %v781
        %v1436 = vunpack.c.l.b16 %v782
        %v1437 = vunpack.c.h.b16 %v782
        %v1438 = vunpack.c.l.b16 %v783
        %v1439 = vunpack.c.h.b16 %v783
        %v1440 = vunpack.c.l.b16 %v784
        %v1441 = vunpack.c.h.b16 %v784
        %v1442 = vunpack.c.l.b16 %v785
        %v1443 = vunpack.c.h.b16 %v785
        %v1444 = vunpack.c.l.b16 %v786
        %v1445 = vunpack.c.h.b16 %v786
        %v1446 = vunpack.c.l.b16 %v787
        %v1447 = vunpack.c.h.b16 %v787
        %v1448 = vunpack.c.l.b16 %v788
        %v1449 = vunpack.c.h.b16 %v788
        %v1450 = vunpack.c.l.b16 %v789
        %v1451 = vunpack.c.h.b16 %v789
        %v1452 = vunpack.c.l.b16 %v790
        %v1453 = vunpack.c.h.b16 %v790
        %v1454 = vunpack.c.l.b16 %v791
        %v1455 = vunpack.c.h.b16 %v791
        %v1456 = vunpack.c.l.b16 %v792
        %v1457 = vunpack.c.h.b16 %v792
        %v1458 = vpack.c.b16 %v1062, %v1058
        %v1459 = vpack.c.b16 %v1063, %v1059
        %v1460 = vpack.c.b16 %v1064, %v1060
        %v1461 = vpack.c.b16 %v1065, %v1061
        %v1462 = vpack.c.b16 %v1070, %v1066
        %v1463 = vpack.c.b16 %v1071, %v1067
        %v1464 = vpack.c.b16 %v1072, %v1068
        %v1465 = vpack.c.b16 %v1073, %v1069
        %v1466 = vpack.c.b16 %v1078, %v1074
        %v1467 = vpack.c.b16 %v1079, %v1075
        %v1468 = vpack.c.b16 %v1080, %v1076
        %v1469 = vpack.c.b16 %v1081, %v1077
        %v1470 = vpack.c.b16 %v1086, %v1082
        %v1471 = vpack.c.b16 %v1087, %v1083
        %v1472 = vpack.c.b16 %v1088, %v1084
        %v1473 = vpack.c.b16 %v1089, %v1085
        %v1474 = vpack.c.b16 %v1094, %v1090
        %v1475 = vpack.c.b16 %v1095, %v1091
        %v1476 = vpack.c.b16 %v1096, %v1092
        %v1477 = vpack.c.b16 %v1097, %v1093
        %v1478 = vpack.c.b16 %v1102, %v1098
        %v1479 = vpack.c.b16 %v1103, %v1099
        %v1480 = vpack.c.b16 %v1104, %v1100
        %v1481 = vpack.c.b16 %v1105, %v1101
        %v1482 = vpack.c.b16 %v1110, %v1106
        %v1483 = vpack.c.b16 %v1111, %v1107
        %v1484 = vpack.c.b16 %v1112, %v1108
        %v1485 = vpack.c.b16 %v1113, %v1109
        %v1486 = vpack.c.b16 %v1118, %v1114
        %v1487 = vpack.c.b16 %v1119, %v1115
        %v1488 = vpack.c.b16 %v1120, %v1116
        %v1489 = vpack.c.b16 %v1121, %v1117
        %v1490 = vpack.c.b16 %v1126, %v1122
        %v1491 = vpack.c.b16 %v1127, %v1123
        %v1492 = vpack.c.b16 %v1128, %v1124
        %v1493 = vpack.c.b16 %v1129, %v1125
        %v1494 = vpack.c.b16 %v1134, %v1130
        %v1495 = vpack.c.b16 %v1135, %v1131
        %v1496 = vpack.c.b16 %v1136, %v1132
        %v1497 = vpack.c.b16 %v1137, %v1133
        %v1498 = vpack.c.b16 %v1142, %v1138
        %v1499 = vpack.c.b16 %v1143, %v1139
        %v1500 = vpack.c.b16 %v1144, %v1140
        %v1501 = vpack.c.b16 %v1145, %v1141
        %v1502 = vpack.c.b16 %v1150, %v1146
        %v1503 = vpack.c.b16 %v1151, %v1147
        %v1504 = vpack.c.b16 %v1152, %v1148
        %v1505 = vpack.c.b16 %v1153, %v1149
        %v1506 = vpack.c.b16 %v1158, %v1154
        %v1507 = vpack.c.b16 %v1159, %v1155
        %v1508 = vpack.c.b16 %v1160, %v1156
        %v1509 = vpack.c.b16 %v1161, %v1157
        %v1510 = vpack.c.b16 %v1166, %v1162
        %v1511 = vpack.c.b16 %v1167, %v1163
        %v1512 = vpack.c.b16 %v1168, %v1164
        %v1513 = vpack.c.b16 %v1169, %v1165
        %v1514 = vpack.c.b16 %v1174, %v1170
        %v1515 = vpack.c.b16 %v1175, %v1171
        %v1516 = vpack.c.b16 %v1176, %v1172
        %v1517 = vpack.c.b16 %v1177, %v1173
        %v1518 = vpack.c.b16 %v1182, %v1178
        %v1519 = vpack.c.b16 %v1183, %v1179
        %v1520 = vpack.c.b16 %v1184, %v1180
        %v1521 = vpack.c.b16 %v1185, %v1181
        %v1522 = vpack.c.b16 %v1190, %v1186
        %v1523 = vpack.c.b16 %v1191, %v1187
        %v1524 = vpack.c.b16 %v1192, %v1188
        %v1525 = vpack.c.b16 %v1193, %v1189
        %v1526 = vpack.c.b16 %v1198, %v1194
        %v1527 = vpack.c.b16 %v1199, %v1195
        %v1528 = vpack.c.b16 %v1200, %v1196
        %v1529 = vpack.c.b16 %v1201, %v1197
        %v1530 = vpack.c.b16 %v1206, %v1202
        %v1531 = vpack.c.b16 %v1207, %v1203
        %v1532 = vpack.c.b16 %v1208, %v1204
        %v1533 = vpack.c.b16 %v1209, %v1205
        %v1534 = vpack.c.b16 %v1214, %v1210
        %v1535 = vpack.c.b16 %v1215, %v1211
        %v1536 = vpack.c.b16 %v1216, %v1212
        %v1537 = vpack.c.b16 %v1217, %v1213
        %v1538 = vpack.c.b16 %v1222, %v1218
        %v1539 = vpack.c.b16 %v1223, %v1219
        %v1540 = vpack.c.b16 %v1224, %v1220
        %v1541 = vpack.c.b16 %v1225, %v1221
        %v1542 = vpack.c.b16 %v1230, %v1226
        %v1543 = vpack.c.b16 %v1231, %v1227
        %v1544 = vpack.c.b16 %v1232, %v1228
        %v1545 = vpack.c.b16 %v1233, %v1229
        %v1546 = vpack.c.b16 %v1238, %v1234
        %v1547 = vpack.c.b16 %v1239, %v1235
        %v1548 = vpack.c.b16 %v1240, %v1236
        %v1549 = vpack.c.b16 %v1241, %v1237
        %v1550 = vpack.c.b16 %v1246, %v1242
        %v1551 = vpack.c.b16 %v1247, %v1243
        %v1552 = vpack.c.b16 %v1248, %v1244
        %v1553 = vpack.c.b16 %v1249, %v1245
        %v1554 = vpack.c.b16 %v1254, %v1250
        %v1555 = vpack.c.b16 %v1255, %v1251
        %v1556 = vpack.c.b16 %v1256, %v1252
        %v1557 = vpack.c.b16 %v1257, %v1253
        %v1558 = vpack.c.b16 %v1262, %v1258
        %v1559 = vpack.c.b16 %v1263, %v1259
        %v1560 = vpack.c.b16 %v1264, %v1260
        %v1561 = vpack.c.b16 %v1265, %v1261
        %v1562 = vpack.c.b16 %v1270, %v1266
        %v1563 = vpack.c.b16 %v1271, %v1267
        %v1564 = vpack.c.b16 %v1272, %v1268
        %v1565 = vpack.c.b16 %v1273, %v1269
        %v1566 = vpack.c.b16 %v1278, %v1274
        %v1567 = vpack.c.b16 %v1279, %v1275
        %v1568 = vpack.c.b16 %v1280, %v1276
        %v1569 = vpack.c.b16 %v1281, %v1277
        %v1570 = vpack.c.b16 %v1286, %v1282
        %v1571 = vpack.c.b16 %v1287, %v1283
        %v1572 = vpack.c.b16 %v1288, %v1284
        %v1573 = vpack.c.b16 %v1289, %v1285
        %v1574 = vpack.c.b16 %v1294, %v1290
        %v1575 = vpack.c.b16 %v1295, %v1291
        %v1576 = vpack.c.b16 %v1296, %v1292
        %v1577 = vpack.c.b16 %v1297, %v1293
        %v1578 = vpack.c.b16 %v1302, %v1298
        %v1579 = vpack.c.b16 %v1303, %v1299
        %v1580 = vpack.c.b16 %v1304, %v1300
        %v1581 = vpack.c.b16 %v1305, %v1301
        %v1582 = vpack.c.b16 %v1310, %v1306
        %v1583 = vpack.c.b16 %v1311, %v1307
        %v1584 = vpack.c.b16 %v1312, %v1308
        %v1585 = vpack.c.b16 %v1313, %v1309
        %v1586 = vpack.c.b16 %v1318, %v1314
        %v1587 = vpack.c.b16 %v1319, %v1315
        %v1588 = vpack.c.b16 %v1320, %v1316
        %v1589 = vpack.c.b16 %v1321, %v1317
        %v1590 = vpack.c.b16 %v1326, %v1322
        %v1591 = vpack.c.b16 %v1327, %v1323
        %v1592 = vpack.c.b16 %v1328, %v1324
        %v1593 = vpack.c.b16 %v1329, %v1325
        %v1594 = vpack.c.b16 %v1334, %v1330
        %v1595 = vpack.c.b16 %v1335, %v1331
        %v1596 = vpack.c.b16 %v1336, %v1332
        %v1597 = vpack.c.b16 %v1337, %v1333
        %v1598 = vpack.c.b16 %v1342, %v1338
        %v1599 = vpack.c.b16 %v1343, %v1339
        %v1600 = vpack.c.b16 %v1344, %v1340
        %v1601 = vpack.c.b16 %v1345, %v1341
        %v1602 = vpack.c.b16 %v1350, %v1346
        %v1603 = vpack.c.b16 %v1351, %v1347
        %v1604 = vpack.c.b16 %v1352, %v1348
        %v1605 = vpack.c.b16 %v1353, %v1349
        %v1606 = vpack.c.b16 %v1358, %v1354
        %v1607 = vpack.c.b16 %v1359, %v1355
        %v1608 = vpack.c.b16 %v1360, %v1356
        %v1609 = vpack.c.b16 %v1361, %v1357
        %v1610 = vpack.c.b16 %v1366, %v1362
        %v1611 = vpack.c.b16 %v1367, %v1363
        %v1612 = vpack.c.b16 %v1368, %v1364
        %v1613 = vpack.c.b16 %v1369, %v1365
        %v1614 = vpack.c.b16 %v1374, %v1370
        %v1615 = vpack.c.b16 %v1375, %v1371
        %v1616 = vpack.c.b16 %v1376, %v1372
        %v1617 = vpack.c.b16 %v1377, %v1373
        %v1618 = vpack.c.b16 %v1382, %v1378
        %v1619 = vpack.c.b16 %v1383, %v1379
        %v1620 = vpack.c.b16 %v1384, %v1380
        %v1621 = vpack.c.b16 %v1385, %v1381
        %v1622 = vpack.c.b16 %v1390, %v1386
        %v1623 = vpack.c.b16 %v1391, %v1387
        %v1624 = vpack.c.b16 %v1392, %v1388
        %v1625 = vpack.c.b16 %v1393, %v1389
        %v1626 = vpack.c.b16 %v1398, %v1394
        %v1627 = vpack.c.b16 %v1399, %v1395
        %v1628 = vpack.c.b16 %v1400, %v1396
        %v1629 = vpack.c.b16 %v1401, %v1397
        %v1630 = vpack.c.b16 %v1406, %v1402
        %v1631 = vpack.c.b16 %v1407, %v1403
        %v1632 = vpack.c.b16 %v1408, %v1404
        %v1633 = vpack.c.b16 %v1409, %v1405
        %v1634 = vpack.c.b16 %v1414, %v1410
        %v1635 = vpack.c.b16 %v1415, %v1411
        %v1636 = vpack.c.b16 %v1416, %v1412
        %v1637 = vpack.c.b16 %v1417, %v1413
        %v1638 = vpack.c.b16 %v1422, %v1418
        %v1639 = vpack.c.b16 %v1423, %v1419
        %v1640 = vpack.c.b16 %v1424, %v1420
        %v1641 = vpack.c.b16 %v1425, %v1421
        %v1642 = vpack.c.b16 %v1430, %v1426
        %v1643 = vpack.c.b16 %v1431, %v1427
        %v1644 = vpack.c.b16 %v1432, %v1428
        %v1645 = vpack.c.b16 %v1433, %v1429
        %v1646 = vpack.c.b16 %v1438, %v1434
        %v1647 = vpack.c.b16 %v1439, %v1435
        %v1648 = vpack.c.b16 %v1440, %v1436
        %v1649 = vpack.c.b16 %v1441, %v1437
        %v1650 = vpack.c.b16 %v1446, %v1442
        %v1651 = vpack.c.b16 %v1447, %v1443
        %v1652 = vpack.c.b16 %v1448, %v1444
        %v1653 = vpack.c.b16 %v1449, %v1445
        %v1654 = vpack.c.b16 %v1454, %v1450
        %v1655 = vpack.c.b16 %v1455, %v1451
        %v1656 = vpack.c.b16 %v1456, %v1452
        %v1657 = vpack.c.b16 %v1457, %v1453
        %vm1858 = vcmask 261120
        %v1860 = vsel %vm1858, %v850, 0
        %1862 = vmatprep.subr.bf16.mxu0 %v1459
        %1863 = vmatpush1.bf16.msra.mxu0 %v1458
        %1864 = vmatprep.subr.bf16.mxu0 %v1463
        %1865 = vmatpush1.bf16.msra.mxu0 %v1462
        %1866 = vmatprep.subr.bf16.mxu0 %v1467
        %1867 = vmatpush1.bf16.msra.mxu0 %v1466
        %1868 = vmatprep.subr.bf16.mxu0 %v1471
        %1869 = vmatpush1.bf16.msra.mxu0 %v1470
        %1870 = vmatprep.subr.bf16.mxu0 %v1475
        %1871 = vmatpush1.bf16.msra.mxu0 %v1474
        %1872 = vmatprep.subr.bf16.mxu0 %v1479
        %1873 = vmatpush1.bf16.msra.mxu0 %v1478
        %1874 = vmatprep.subr.bf16.mxu0 %v1483
        %1875 = vmatpush1.bf16.msra.mxu0 %v1482
        %1876 = vmatprep.subr.bf16.mxu0 %v1487
        %1877 = vmatpush1.bf16.msra.mxu0 %v1486
        %1878 = vmatprep.subr.bf16.mxu0 %v1491
        %1879 = vmatpush1.bf16.msra.mxu0 %v1490
        %1880 = vmatprep.subr.bf16.mxu0 %v1495
        %1881 = vmatpush1.bf16.msra.mxu0 %v1494
        %1882 = vmatprep.subr.bf16.mxu0 %v1499
        %1883 = vmatpush1.bf16.msra.mxu0 %v1498
        %1884 = vmatprep.subr.bf16.mxu0 %v1503
        %1885 = vmatpush1.bf16.msra.mxu0 %v1502
        %1886 = vmatprep.subr.bf16.mxu0 %v1507
        %1887 = vmatpush1.bf16.msra.mxu0 %v1506
        %1888 = vmatprep.subr.bf16.mxu0 %v1511
        %1889 = vmatpush1.bf16.msra.mxu0 %v1510
        %1890 = vmatprep.subr.bf16.mxu0 %v1515
        %1891 = vmatpush1.bf16.msra.mxu0 %v1514
        %1892 = vmatprep.subr.bf16.mxu0 %v1519
        %1893 = vmatpush1.bf16.msra.mxu0 %v1518
        %1894 = vmatprep.mubr.bf16.mxu0 %v841
        %1895 = vmatmul.mubr.bf16.gmra.mrb[0].mxu0 %v827
        %v1896 = vpop.f32.mrb[0].mxu0
        %v1897 = vadd.f32 %v802, %v1896
        %v1898 = vpop.f32.mrb[0].mxu0
        %v1899 = vadd.f32 %v802, %v1898
        %v1900 = vpop.f32.mrb[0].mxu0
        %v1901 = vpop.f32.mrb[0].mxu0
        %1902 = vdwg.mxu0
        %1903 = vmatprep.subr.bf16.mxu0 %v1523
        %1904 = vmatpush1.bf16.msra.mxu0 %v1522
        %1905 = vmatprep.subr.bf16.mxu0 %v1527
        %1906 = vmatpush1.bf16.msra.mxu0 %v1526
        %1907 = vmatprep.subr.bf16.mxu0 %v1531
        %1908 = vmatpush1.bf16.msra.mxu0 %v1530
        %1909 = vmatprep.subr.bf16.mxu0 %v1535
        %1910 = vmatpush1.bf16.msra.mxu0 %v1534
        %1911 = vmatprep.subr.bf16.mxu0 %v1539
        %1912 = vmatpush1.bf16.msra.mxu0 %v1538
        %1913 = vmatprep.subr.bf16.mxu0 %v1543
        %1914 = vmatpush1.bf16.msra.mxu0 %v1542
        %1915 = vmatprep.subr.bf16.mxu0 %v1547
        %1916 = vmatpush1.bf16.msra.mxu0 %v1546
        %1917 = vmatprep.subr.bf16.mxu0 %v1551
        %1918 = vmatpush1.bf16.msra.mxu0 %v1550
        %1919 = vmatprep.subr.bf16.mxu0 %v1555
        %1920 = vmatpush1.bf16.msra.mxu0 %v1554
        %1921 = vmatprep.subr.bf16.mxu0 %v1559
        %1922 = vmatpush1.bf16.msra.mxu0 %v1558
        %1923 = vmatprep.subr.bf16.mxu0 %v1563
        %1924 = vmatpush1.bf16.msra.mxu0 %v1562
        %1925 = vmatprep.subr.bf16.mxu0 %v1567
        %1926 = vmatpush1.bf16.msra.mxu0 %v1566
        %1927 = vmatprep.subr.bf16.mxu0 %v1571
        %1928 = vmatpush1.bf16.msra.mxu0 %v1570
        %1929 = vmatprep.subr.bf16.mxu0 %v1575
        %1930 = vmatpush1.bf16.msra.mxu0 %v1574
        %1931 = vmatprep.subr.bf16.mxu0 %v1579
        %1932 = vmatpush1.bf16.msra.mxu0 %v1578
        %1933 = vmatprep.subr.bf16.mxu0 %v1583
        %1934 = vmatpush1.bf16.msra.mxu0 %v1582
        %1935 = vmatprep.mubr.bf16.mxu0 %v851
        %1936 = vmatmul.mubr.bf16.gmra.mrb[0].mxu0 %v849
        %v1937 = vpop.f32.mrb[0].mxu0
        %v1938 = vadd.f32 %v1897, %v1937
        %v1939 = vpop.f32.mrb[0].mxu0
        %v1940 = vadd.f32 %v1899, %v1939
        %v1941 = vpop.f32.mrb[0].mxu0
        %v1942 = vpop.f32.mrb[0].mxu0
        %1943 = vdwg.mxu0
        %1944 = vmatprep.subr.bf16.mxu0 %v1587
        %1945 = vmatpush1.bf16.msra.mxu0 %v1586
        %1946 = vmatprep.subr.bf16.mxu0 %v1591
        %1947 = vmatpush1.bf16.msra.mxu0 %v1590
        %1948 = vmatprep.subr.bf16.mxu0 %v1595
        %1949 = vmatpush1.bf16.msra.mxu0 %v1594
        %1950 = vmatprep.subr.bf16.mxu0 %v1599
        %1951 = vmatpush1.bf16.msra.mxu0 %v1598
        %1952 = vmatprep.subr.bf16.mxu0 %v1603
        %1953 = vmatpush1.bf16.msra.mxu0 %v1602
        %1954 = vmatprep.subr.bf16.mxu0 %v1607
        %1955 = vmatpush1.bf16.msra.mxu0 %v1606
        %1956 = vmatprep.subr.bf16.mxu0 %v1611
        %1957 = vmatpush1.bf16.msra.mxu0 %v1610
        %1958 = vmatprep.subr.bf16.mxu0 %v1615
        %1959 = vmatpush1.bf16.msra.mxu0 %v1614
        %1960 = vmatprep.subr.bf16.mxu0 %v1619
        %1961 = vmatpush1.bf16.msra.mxu0 %v1618
        %1962 = vmatprep.subr.bf16.mxu0 %v1623
        %1963 = vmatpush1.bf16.msra.mxu0 %v1622
        %1964 = vmatprep.subr.bf16.mxu0 %v1627
        %1965 = vmatpush1.bf16.msra.mxu0 %v1626
        %1966 = vmatprep.subr.bf16.mxu0 %v1631
        %1967 = vmatpush1.bf16.msra.mxu0 %v1630
        %1968 = vmatprep.subr.bf16.mxu0 %v1635
        %1969 = vmatpush1.bf16.msra.mxu0 %v1634
        %1970 = vmatprep.subr.bf16.mxu0 %v1639
        %1971 = vmatpush1.bf16.msra.mxu0 %v1638
        %1972 = vmatprep.subr.bf16.mxu0 %v1643
        %1973 = vmatpush1.bf16.msra.mxu0 %v1642
        %1974 = vmatprep.subr.bf16.mxu0 %v1647
        %1975 = vmatpush1.bf16.msra.mxu0 %v1646
        %1976 = vmatprep.mubr.bf16.mxu0 %v848
        %1977 = vmatmul.mubr.bf16.gmra.mrb[0].mxu0 %v834
        %v1978 = vpop.f32.mrb[0].mxu0
        %v1979 = vadd.f32 %v1938, %v1978
        %v1980 = vpop.f32.mrb[0].mxu0
        %v1981 = vadd.f32 %v1940, %v1980
        %v1982 = vpop.f32.mrb[0].mxu0
        %v1983 = vpop.f32.mrb[0].mxu0
        %1984 = vdwg.mxu0
        %1985 = vmatprep.subr.bf16.mxu0 %v1651
        %1986 = vmatpush1.bf16.msra.mxu0 %v1650
        %1987 = vmatprep.subr.bf16.mxu0 %v1655
        %1988 = vmatpush1.bf16.msra.mxu0 %v1654
        %1989 = vmatprep.subr.bf16.mxu0 0
        %1990 = vmatpush1.bf16.msra.mxu0 0
        %1991 = vmatprep.subr.bf16.mxu0 0
        %1992 = vmatpush1.bf16.msra.mxu0 0
        %1993 = vmatprep.subr.bf16.mxu0 0
        %1994 = vmatpush1.bf16.msra.mxu0 0
        %1995 = vmatprep.subr.bf16.mxu0 0
        %1996 = vmatpush1.bf16.msra.mxu0 0
        %1997 = vmatprep.subr.bf16.mxu0 0
        %1998 = vmatpush1.bf16.msra.mxu0 0
        %1999 = vmatprep.subr.bf16.mxu0 0
        %2000 = vmatpush1.bf16.msra.mxu0 0
        %2001 = vmatprep.subr.bf16.mxu0 0
        %2002 = vmatpush1.bf16.msra.mxu0 0
        %2003 = vmatprep.subr.bf16.mxu0 0
        %2004 = vmatpush1.bf16.msra.mxu0 0
        %2005 = vmatprep.subr.bf16.mxu0 0
        %2006 = vmatpush1.bf16.msra.mxu0 0
        %2007 = vmatprep.subr.bf16.mxu0 0
        %2008 = vmatpush1.bf16.msra.mxu0 0
        %2009 = vmatprep.subr.bf16.mxu0 0
        %2010 = vmatpush1.bf16.msra.mxu0 0
        %2011 = vmatprep.subr.bf16.mxu0 0
        %2012 = vmatpush1.bf16.msra.mxu0 0
        %2013 = vmatprep.subr.bf16.mxu0 0
        %2014 = vmatpush1.bf16.msra.mxu0 0
        %2015 = vmatprep.subr.bf16.mxu0 0
        %2016 = vmatpush1.bf16.msra.mxu0 0
        %2017 = vmatprep.mubr.bf16.mxu0 0
        %2018 = vmatmul.mubr.bf16.gmra.mrb[0].mxu0 %v1860
        %v2019 = vpop.f32.mrb[0].mxu0
        %v2020 = vadd.f32 %v1979, %v2019
        %v2021 = vpop.f32.mrb[0].mxu0
        %v2022 = vadd.f32 %v1981, %v2021
        %v2023 = vpop.f32.mrb[0].mxu0
        %v2024 = vpop.f32.mrb[0].mxu0
        %2025 = vdwg.mxu0
        %2026 = vmatprep.subr.bf16.mxu0 %v1461
        %2027 = vmatpush1.bf16.msra.mxu0 %v1460
        %2028 = vmatprep.subr.bf16.mxu0 %v1465
        %2029 = vmatpush1.bf16.msra.mxu0 %v1464
        %2030 = vmatprep.subr.bf16.mxu0 %v1469
        %2031 = vmatpush1.bf16.msra.mxu0 %v1468
        %2032 = vmatprep.subr.bf16.mxu0 %v1473
        %2033 = vmatpush1.bf16.msra.mxu0 %v1472
        %2034 = vmatprep.subr.bf16.mxu0 %v1477
        %2035 = vmatpush1.bf16.msra.mxu0 %v1476
        %2036 = vmatprep.subr.bf16.mxu0 %v1481
        %2037 = vmatpush1.bf16.msra.mxu0 %v1480
        %2038 = vmatprep.subr.bf16.mxu0 %v1485
        %2039 = vmatpush1.bf16.msra.mxu0 %v1484
        %2040 = vmatprep.subr.bf16.mxu0 %v1489
        %2041 = vmatpush1.bf16.msra.mxu0 %v1488
        %2042 = vmatprep.subr.bf16.mxu0 %v1493
        %2043 = vmatpush1.bf16.msra.mxu0 %v1492
        %2044 = vmatprep.subr.bf16.mxu0 %v1497
        %2045 = vmatpush1.bf16.msra.mxu0 %v1496
        %2046 = vmatprep.subr.bf16.mxu0 %v1501
        %2047 = vmatpush1.bf16.msra.mxu0 %v1500
        %2048 = vmatprep.subr.bf16.mxu0 %v1505
        %2049 = vmatpush1.bf16.msra.mxu0 %v1504
        %2050 = vmatprep.subr.bf16.mxu0 %v1509
        %2051 = vmatpush1.bf16.msra.mxu0 %v1508
        %2052 = vmatprep.subr.bf16.mxu0 %v1513
        %2053 = vmatpush1.bf16.msra.mxu0 %v1512
        %2054 = vmatprep.subr.bf16.mxu0 %v1517
        %2055 = vmatpush1.bf16.msra.mxu0 %v1516
        %2056 = vmatprep.subr.bf16.mxu0 %v1521
        %2057 = vmatpush1.bf16.msra.mxu0 %v1520
        %2058 = vmatprep.mubr.bf16.mxu0 %v841
        %2059 = vmatmul.mubr.bf16.gmra.mrb[0].mxu0 %v827
        %v2060 = vpop.f32.mrb[0].mxu0
        %v2061 = vadd.f32 %v802, %v2060
        %v2062 = vpop.f32.mrb[0].mxu0
        %v2063 = vadd.f32 %v802, %v2062
        %v2064 = vpop.f32.mrb[0].mxu0
        %v2065 = vpop.f32.mrb[0].mxu0
        %2066 = vdwg.mxu0
        %2067 = vmatprep.subr.bf16.mxu0 %v1525
        %2068 = vmatpush1.bf16.msra.mxu0 %v1524
        %2069 = vmatprep.subr.bf16.mxu0 %v1529
        %2070 = vmatpush1.bf16.msra.mxu0 %v1528
        %2071 = vmatprep.subr.bf16.mxu0 %v1533
        %2072 = vmatpush1.bf16.msra.mxu0 %v1532
        %2073 = vmatprep.subr.bf16.mxu0 %v1537
        %2074 = vmatpush1.bf16.msra.mxu0 %v1536
        %2075 = vmatprep.subr.bf16.mxu0 %v1541
        %2076 = vmatpush1.bf16.msra.mxu0 %v1540
        %2077 = vmatprep.subr.bf16.mxu0 %v1545
        %2078 = vmatpush1.bf16.msra.mxu0 %v1544
        %2079 = vmatprep.subr.bf16.mxu0 %v1549
        %2080 = vmatpush1.bf16.msra.mxu0 %v1548
        %2081 = vmatprep.subr.bf16.mxu0 %v1553
        %2082 = vmatpush1.bf16.msra.mxu0 %v1552
        %2083 = vmatprep.subr.bf16.mxu0 %v1557
        %2084 = vmatpush1.bf16.msra.mxu0 %v1556
        %2085 = vmatprep.subr.bf16.mxu0 %v1561
        %2086 = vmatpush1.bf16.msra.mxu0 %v1560
        %2087 = vmatprep.subr.bf16.mxu0 %v1565
        %2088 = vmatpush1.bf16.msra.mxu0 %v1564
        %2089 = vmatprep.subr.bf16.mxu0 %v1569
        %2090 = vmatpush1.bf16.msra.mxu0 %v1568
        %2091 = vmatprep.subr.bf16.mxu0 %v1573
        %2092 = vmatpush1.bf16.msra.mxu0 %v1572
        %2093 = vmatprep.subr.bf16.mxu0 %v1577
        %2094 = vmatpush1.bf16.msra.mxu0 %v1576
        %2095 = vmatprep.subr.bf16.mxu0 %v1581
        %2096 = vmatpush1.bf16.msra.mxu0 %v1580
        %2097 = vmatprep.subr.bf16.mxu0 %v1585
        %2098 = vmatpush1.bf16.msra.mxu0 %v1584
        %2099 = vmatprep.mubr.bf16.mxu0 %v851
        %2100 = vmatmul.mubr.bf16.gmra.mrb[0].mxu0 %v849
        %v2101 = vpop.f32.mrb[0].mxu0
        %v2102 = vadd.f32 %v2061, %v2101
        %v2103 = vpop.f32.mrb[0].mxu0
        %v2104 = vadd.f32 %v2063, %v2103
        %v2105 = vpop.f32.mrb[0].mxu0
        %v2106 = vpop.f32.mrb[0].mxu0
        %2107 = vdwg.mxu0
        %2108 = vmatprep.subr.bf16.mxu0 %v1589
        %2109 = vmatpush1.bf16.msra.mxu0 %v1588
        %2110 = vmatprep.subr.bf16.mxu0 %v1593
        %2111 = vmatpush1.bf16.msra.mxu0 %v1592
        %2112 = vmatprep.subr.bf16.mxu0 %v1597
        %2113 = vmatpush1.bf16.msra.mxu0 %v1596
        %2114 = vmatprep.subr.bf16.mxu0 %v1601
        %2115 = vmatpush1.bf16.msra.mxu0 %v1600
        %2116 = vmatprep.subr.bf16.mxu0 %v1605
        %2117 = vmatpush1.bf16.msra.mxu0 %v1604
        %2118 = vmatprep.subr.bf16.mxu0 %v1609
        %2119 = vmatpush1.bf16.msra.mxu0 %v1608
        %2120 = vmatprep.subr.bf16.mxu0 %v1613
        %2121 = vmatpush1.bf16.msra.mxu0 %v1612
        %2122 = vmatprep.subr.bf16.mxu0 %v1617
        %2123 = vmatpush1.bf16.msra.mxu0 %v1616
        %2124 = vmatprep.subr.bf16.mxu0 %v1621
        %2125 = vmatpush1.bf16.msra.mxu0 %v1620
        %2126 = vmatprep.subr.bf16.mxu0 %v1625
        %2127 = vmatpush1.bf16.msra.mxu0 %v1624
        %2128 = vmatprep.subr.bf16.mxu0 %v1629
        %2129 = vmatpush1.bf16.msra.mxu0 %v1628
        %2130 = vmatprep.subr.bf16.mxu0 %v1633
        %2131 = vmatpush1.bf16.msra.mxu0 %v1632
        %2132 = vmatprep.subr.bf16.mxu0 %v1637
        %2133 = vmatpush1.bf16.msra.mxu0 %v1636
        %2134 = vmatprep.subr.bf16.mxu0 %v1641
        %2135 = vmatpush1.bf16.msra.mxu0 %v1640
        %2136 = vmatprep.subr.bf16.mxu0 %v1645
        %2137 = vmatpush1.bf16.msra.mxu0 %v1644
        %2138 = vmatprep.subr.bf16.mxu0 %v1649
        %2139 = vmatpush1.bf16.msra.mxu0 %v1648
        %2140 = vmatprep.mubr.bf16.mxu0 %v848
        %2141 = vmatmul.mubr.bf16.gmra.mrb[0].mxu0 %v834
        %v2142 = vpop.f32.mrb[0].mxu0
        %v2143 = vadd.f32 %v2102, %v2142
        %v2144 = vpop.f32.mrb[0].mxu0
        %v2145 = vadd.f32 %v2104, %v2144
        %v2146 = vpop.f32.mrb[0].mxu0
        %v2147 = vpop.f32.mrb[0].mxu0
        %2148 = vdwg.mxu0
        %2149 = vmatprep.subr.bf16.mxu0 %v1653
        %2150 = vmatpush1.bf16.msra.mxu0 %v1652
        %2151 = vmatprep.subr.bf16.mxu0 %v1657
        %2152 = vmatpush1.bf16.msra.mxu0 %v1656
        %2153 = vmatprep.subr.bf16.mxu0 0
        %2154 = vmatpush1.bf16.msra.mxu0 0
        %2155 = vmatprep.subr.bf16.mxu0 0
        %2156 = vmatpush1.bf16.msra.mxu0 0
        %2157 = vmatprep.subr.bf16.mxu0 0
        %2158 = vmatpush1.bf16.msra.mxu0 0
        %2159 = vmatprep.subr.bf16.mxu0 0
        %2160 = vmatpush1.bf16.msra.mxu0 0
        %2161 = vmatprep.subr.bf16.mxu0 0
        %2162 = vmatpush1.bf16.msra.mxu0 0
        %2163 = vmatprep.subr.bf16.mxu0 0
        %2164 = vmatpush1.bf16.msra.mxu0 0
        %2165 = vmatprep.subr.bf16.mxu0 0
        %2166 = vmatpush1.bf16.msra.mxu0 0
        %2167 = vmatprep.subr.bf16.mxu0 0
        %2168 = vmatpush1.bf16.msra.mxu0 0
        %2169 = vmatprep.subr.bf16.mxu0 0
        %2170 = vmatpush1.bf16.msra.mxu0 0
        %2171 = vmatprep.subr.bf16.mxu0 0
        %2172 = vmatpush1.bf16.msra.mxu0 0
        %2173 = vmatprep.subr.bf16.mxu0 0
        %2174 = vmatpush1.bf16.msra.mxu0 0
        %2175 = vmatprep.subr.bf16.mxu0 0
        %2176 = vmatpush1.bf16.msra.mxu0 0
        %2177 = vmatprep.subr.bf16.mxu0 0
        %2178 = vmatpush1.bf16.msra.mxu0 0
        %2179 = vmatprep.subr.bf16.mxu0 0
        %2180 = vmatpush1.bf16.msra.mxu0 0
        %2181 = vmatprep.mubr.bf16.mxu0 0
        %2182 = vmatmul.mubr.bf16.gmra.mrb[0].mxu0 %v1860
        %v2183 = vpop.f32.mrb[0].mxu0
        %v2184 = vadd.f32 %v2143, %v2183
        %v2185 = vpop.f32.mrb[0].mxu0
        %v2186 = vadd.f32 %v2145, %v2185
        %v2187 = vpop.f32.mrb[0].mxu0
        %v2188 = vpop.f32.mrb[0].mxu0
        %2189 = vdwg.mxu0
        %v2190 = vsub.f32 0.0, %v2020
        %v2191 = vsub.f32 0.0, %v2022
        %v2192 = vsub.f32 0.0, %v2184
        %v2193 = vsub.f32 0.0, %v2186
        %v2194 = vmul.f32 %v2190, 1.442695
        %v2195 = vpow.pop %v2194
        %v2196 = vmul.f32 %v2191, 1.442695
        %v2197 = vpow.pop %v2196
        %v2198 = vmul.f32 %v2192, 1.442695
        %v2199 = vpow.pop %v2198
        %v2200 = vmul.f32 %v2193, 1.442695
        %v2201 = vpow.pop %v2200
        %v2202 = vadd.f32 %v2195, 1.0
        %v2203 = vadd.f32 %v2197, 1.0
        %v2204 = vadd.f32 %v2199, 1.0
        %v2205 = vadd.f32 %v2201, 1.0
        %v2206 = vrcp.pop %v2202
        %v2207 = vmul.f32 1.0, %v2206
        %v2208 = vrcp.pop %v2203
        %v2209 = vmul.f32 1.0, %v2208
        %v2210 = vrcp.pop %v2204
        %v2211 = vmul.f32 1.0, %v2210
        %v2212 = vrcp.pop %v2205
        %v2213 = vmul.f32 1.0, %v2212
        %v2218 = vcombine.low %v2207, %v2209
        %v2219 = vcombine.low %v2211, %v2213
        %v2221 = vunpack.c.l.s4 1966171168
        %v2222 = vunpack.c.0.s8 %v2221
        %v2223 = vlaneseq
        %v2224 = vshrl.u32 %v2223, 7
        %v2225 = vsub.s32 %v2222, %v2224
        %v2226 = vrot.slane %v2218, %v2225
        %v2228 = vunpack.c.l.s4 1966171168
        %v2229 = vunpack.c.0.s8 %v2228
        %v2230 = vlaneseq
        %v2231 = vshrl.u32 %v2230, 7
        %v2232 = vsub.s32 %v2229, %v2231
        %v2233 = vrot.slane %v2219, %v2232
        %v2234 = vcombine.low %v2226, %v2233
        %v2236 = vunpack.c.l.s4 1966171168
        %v2237 = vunpack.c.0.s8 %v2236
        %v2238 = vlaneseq
        %v2239 = vshrl.u32 %v2238, 7
        %v2240 = vsub.s32 %v2237, %v2239
        %v2241 = vrot.slane %v2234, %v2240
        %v2243 = vlaneseq
        %vm2244 = vcmp.ge.s32.totalorder %v2243, 0
        %vm2245 = vcmp.lt.s32.totalorder %v2243, 512
        %vm2246 = vmand %vm2244, %vm2245
        %2247 = vst.msk [vmem:[%s589] sm:$0xf] %vm2246, %v2241
        %s2248 = smul.u32 4, %s16
        %p2249 = scmp.lt.s32.totalorder %s2248, 23
        %s2250 = scalar_select %p2249, %s2248, 23
        %s2251 = scalar_lea.vmem %s3, %s2250
        // Predicated region
        $region56: #{autoencoder_1_forward.9} parent=50 // pred_check
          %p2252 = pneg %p102
        $region57: #{autoencoder_1_forward.9} parent=50 // pred_check_branch
          %2254 = sbr.rel (%p2252) target = $region59
        $region58: #{autoencoder_1_forward.9} parent=50 // pred_region
          %s2255 = smul.u32 4, %s16
        $region59: #{autoencoder_1_forward.9} parent=50 // pred_fallthru
          _
      $region51: #{autoencoder_1_forward.9} parent=5 // pred_fallthru
        _
      %p2256 = scmp.le.s32.totalorder 2, %s11
      // Predicated region
      $region60: #{autoencoder_1_forward.9} parent=5 // pred_check
        %p2257 = pneg %p2256
      $region61: #{autoencoder_1_forward.9} parent=5 // pred_check_branch
        %2259 = sbr.rel (%p2257) target = $region63
      $region62: #{autoencoder_1_forward.9} parent=5 // pred_region
        %s2260 = ssub.s32 %s11, 2
        // Predicated region
        $region64: #{autoencoder_1_forward.9} parent=62 // pred_check
          %p2261 = pneg %p108
        $region65: #{autoencoder_1_forward.9} parent=62 // pred_check_branch
          %2263 = sbr.rel (%p2261) target = $region67
        $region66: #{autoencoder_1_forward.9} parent=62 // pred_region
          %s2264 = smul.u32 4, %s17
          %p2265 = scmp.lt.s32.totalorder %s2264, 23
          %s2266 = scalar_select %p2265, %s2264, 23
          %s2267 = scalar_lea.vmem %s3, %s2266
        $region67: #{autoencoder_1_forward.9} parent=62 // pred_fallthru
          _
      $region63: #{autoencoder_1_forward.9} parent=5 // pred_fallthru
        _
    $region6: #{autoencoder_1_forward.9} parent=1 // loop_footer
      %s15 = sadd.s32 1, %s11
    $region7: #{autoencoder_1_forward.9} parent=1 // loop_footer_branch
      %10 = sbr.rel target = $region3
    $region8: #{autoencoder_1_forward.9} parent=1 // loop_exit
      _

</llo_original>
